<compile_context>
chip_gen: v7x
topology: tpu7x:2x2x1
jax: 0.10.0
libtpu: 0.0.40
codegen_flags: <defaults>
</compile_context>

<pallas_src>
import functools

import jax
import jax.numpy as jnp
from jax import lax
from jax.experimental import pallas as pl
from jax.experimental.pallas import tpu as pltpu


# ----------------------------------------------------------------------------
# Fused LiteSRNet body kernel (all convs + activations, VMEM resident)
# ----------------------------------------------------------------------------
def _make_lite_body_kernel(H, W, Cin, F, Cy, Cyp, num_layers):
    """Kernel computing the full conv stack for one batch element.

    Inputs : x (1, H*W, Cin),
             wh (num_layers, 9F, F), bh (num_layers, 1, F), ah (num_layers,1,F),
             wl (9F, Cyp), bl (1, Cyp),
             ml (H*W, 1), mr (H*W, 1)   lateral padding masks
    Output : (1, Cy, H*W)   transposed, lane-dense last-conv result
    Scratch: fpad (P, F) f32 flat zero-bordered activations,
             patch (H*W, 9F) f32 im2col buffer
    """
    HW = H * W
    BASE = ((W + 1 + 7) // 8) * 8          # sublane-aligned top zero border
    P = BASE + HW + W + 1                  # flat padded activation length
    TAPS = tuple((dy, dx) for dy in (-1, 0, 1) for dx in (-1, 0, 1))

    def kernel(x_ref, wh_ref, bh_ref, ah_ref, wl_ref, bl_ref,
               ml_ref, mr_ref, o_ref, fpad_ref, patch_ref):
        # One cheap zero pass doubles as (a) the top/bottom 'same' zero border
        # and (b) the Cin->F input-channel zero padding of the first layer.
        fpad_ref[...] = jnp.zeros_like(fpad_ref)
        fpad_ref[BASE:BASE + HW, :Cin] = x_ref[0].astype(jnp.float32)

        ml = ml_ref[...]                   # (HW,1) 0/1: kills the w==0 wrap
        mr = mr_ref[...]                   # (HW,1) 0/1: kills the w==W-1 wrap

        def build_patch():
            # One layout pass per layer: 9 shifted copies of the flat feature
            # map into the (HW, 9F) im2col scratch.  Tap order (ky, kx, cin)
            # matches HWIO.reshape(9F, Cout).
            for t, (dy, dx) in enumerate(TAPS):
                s = BASE + dy * W + dx     # static sublane offset
                v = fpad_ref[s:s + HW, :]
                if dx == -1:
                    v = v * ml
                elif dx == 1:
                    v = v * mr
                patch_ref[:, t * F:(t + 1) * F] = v

        def layer(i, carry):
            build_patch()
            y = jnp.dot(patch_ref[...], wh_ref[i],
                        preferred_element_type=jnp.float32) + bh_ref[i]
            # PReLU / LeakyReLU / ReLU(alpha=0), per-channel alpha, f32.
            y = jnp.where(y > 0, y, ah_ref[i] * y)
            fpad_ref[BASE:BASE + HW, :] = y
            return carry

        # first conv + num_conv hidden convs as identical fori_loop layers.
        lax.fori_loop(0, num_layers, layer, 0)

        # last conv (no activation); output channels padded to Cyp (128
        # multiple, free on the MXU) so the transposed store is lane-dense.
        build_patch()
        y = jnp.dot(patch_ref[...], wl_ref[...],
                    preferred_element_type=jnp.float32) + bl_ref[...]
        o_ref[0, :, :] = y.T[:Cy, :].astype(o_ref.dtype)   # (Cy, HW) store

    return kernel, P


# ----------------------------------------------------------------------------
# Wrapper: fused Pallas body + PixelShuffle + nearest-upsample residual
# ----------------------------------------------------------------------------
@functools.partial(jax.jit, static_argnames=("upscale",))
def lite_srnet_forward(x_nchw, params, upscale):
    N, Cin, H, W = x_nchw.shape
    F = params["w0"].shape[-1]
    Cy = params["wl"].shape[-1]
    num_conv = params["wh"].shape[0]
    r = upscale
    num_out_ch = Cy // (r * r)
    assert num_out_ch == Cin, "residual add requires num_in_ch == num_out_ch"
    assert num_conv >= 1

    HW = H * W
    L = num_conv + 1                       # first conv folded into the loop
    Cyp = ((Cy + 127) // 128) * 128        # lane-dense MXU N-dim padding
    f32 = jnp.float32

    # NCHW -> flat channels-last (N, H*W, Cin) for the kernel.
    x_flat = jnp.transpose(x_nchw, (0, 2, 3, 1)).reshape(N, HW, Cin)

    # First-conv weight zero-padded along input channels to F so every body
    # layer shares the same (9F, F) im2col contraction.
    w0p = jnp.zeros((3, 3, F, F), f32).at[:, :, :Cin, :].set(params["w0"])
    wh_all = jnp.concatenate([w0p[None], params["wh"]], axis=0).reshape(L, 9 * F, F)
    bh_all = jnp.concatenate([params["b0"][None], params["bh"]], axis=0).reshape(L, 1, F)
    ah_all = jnp.concatenate([params["a0"][None], params["ah"]], axis=0).reshape(L, 1, F)

    # Last conv: pad output channels to Cyp (extra columns are zero).
    wl_p = jnp.zeros((9 * F, Cyp), f32).at[:, :Cy].set(
        params["wl"].reshape(9 * F, Cy))
    bl_p = jnp.zeros((1, Cyp), f32).at[0, :Cy].set(params["bl"])

    # Lateral 'same'-padding masks (zero the wrapped-around column neighbours).
    wcol = jnp.arange(HW, dtype=jnp.int32) % W
    mask_l = (wcol != 0).astype(f32).reshape(HW, 1)
    mask_r = (wcol != W - 1).astype(f32).reshape(HW, 1)

    kernel, P = _make_lite_body_kernel(H, W, Cin, F, Cy, Cyp, L)

    y = pl.pallas_call(
        kernel,
        out_shape=jax.ShapeDtypeStruct((N, Cy, HW), x_nchw.dtype),
        grid_spec=pltpu.PrefetchScalarGridSpec(
            num_scalar_prefetch=0,
            grid=(N,),
            in_specs=[
                pl.BlockSpec((1, HW, Cin), lambda n: (n, 0, 0)),
                pl.BlockSpec((L, 9 * F, F), lambda n: (0, 0, 0)),
                pl.BlockSpec((L, 1, F), lambda n: (0, 0, 0)),
                pl.BlockSpec((L, 1, F), lambda n: (0, 0, 0)),
                pl.BlockSpec((9 * F, Cyp), lambda n: (0, 0)),
                pl.BlockSpec((1, Cyp), lambda n: (0, 0)),
                pl.BlockSpec((HW, 1), lambda n: (0, 0)),
                pl.BlockSpec((HW, 1), lambda n: (0, 0)),
            ],
            out_specs=pl.BlockSpec((1, Cy, HW), lambda n: (n, 0, 0)),
            scratch_shapes=[
                pltpu.VMEM((P, F), jnp.float32),        # flat padded activations
                pltpu.VMEM((HW, 9 * F), jnp.float32),   # im2col patch
            ],
        ),
        compiler_params=pltpu.CompilerParams(
            dimension_semantics=("parallel",),
            vmem_limit_bytes=64 * 1024 * 1024),
    )(x_flat, wh_all, bh_all, ah_all, wl_p, bl_p, mask_l, mask_r)

    # PixelShuffle(r) directly from the transposed (N, Cy, H*W) layout,
    # producing NCHW: out[n, c, h*r+i, w*r+j] = y[n, c*r*r + i*r + j, h*W + w].
    y = y.reshape(N, num_out_ch, r, r, H, W)
    y = jnp.transpose(y, (0, 1, 4, 2, 5, 3)).reshape(N, num_out_ch, H * r, W * r)

    # Nearest-neighbour upsample residual (F.interpolate(..., mode='nearest')).
    base = jnp.repeat(jnp.repeat(x_nchw, r, axis=2), r, axis=3)
    return y + base                        # NCHW


# ----------------------------------------------------------------------------
# Deterministic parameter init (weights stored HWIO)
# ----------------------------------------------------------------------------
def init_lite_srnet_params(key, num_in_ch=3, num_out_ch=3, num_feat=32,
                           num_conv=4, upscale=2, act_type="prelu"):
    Cy = num_out_ch * upscale * upscale

    def conv_init(k, cin, cout):
        kw, kb = jax.random.split(k)
        std = (2.0 / (cin * 9)) ** 0.5
        w = jax.random.normal(kw, (3, 3, cin, cout), jnp.float32) * std
        b = jax.random.normal(kb, (cout,), jnp.float32) * 0.1
        return w, b

    def act_init(k, cout):
        if act_type == "relu":
            return jnp.zeros((cout,), jnp.float32)
        if act_type == "leakyrelu":
            return jnp.full((cout,), 0.1, jnp.float32)
        # prelu: per-channel, PyTorch default 0.25 (+ jitter to exercise it)
        return 0.25 + 0.05 * jax.random.normal(k, (cout,), jnp.float32)

    keys = jax.random.split(key, 2 * (num_conv + 2))
    ki = iter(keys)

    w0, b0 = conv_init(next(ki), num_in_ch, num_feat)
    a0 = act_init(next(ki), num_feat)

    whs, bhs, ahs = [], [], []
    for _ in range(num_conv):
        w, b = conv_init(next(ki), num_feat, num_feat)
        whs.append(w)
        bhs.append(b)
        ahs.append(act_init(next(ki), num_feat))

    wl, bl = conv_init(next(ki), num_feat, Cy)

    return {
        "w0": w0, "b0": b0, "a0": a0,
        "wh": jnp.stack(whs), "bh": jnp.stack(bhs), "ah": jnp.stack(ahs),
        "wl": wl, "bl": bl,
    }


# ----------------------------------------------------------------------------
# Pure-JAX reference (for correctness check)
# ----------------------------------------------------------------------------
def _conv_ref(x_nhwc, w_hwio, b):
    y = jax.lax.conv_general_dilated(
        x_nhwc, w_hwio, window_strides=(1, 1), padding="SAME",
        dimension_numbers=("NHWC", "HWIO", "NHWC"))
    return y + b


def lite_srnet_forward_ref(x_nchw, params, upscale):
    x = jnp.transpose(x_nchw, (0, 2, 3, 1))
    act = lambda v, a: jnp.where(v > 0, v, a * v)

    h = act(_conv_ref(x, params["w0"], params["b0"]), params["a0"])
    for i in range(params["wh"].shape[0]):
        h = act(_conv_ref(h, params["wh"][i], params["bh"][i]),
                params["ah"][i])
    y = _conv_ref(h, params["wl"], params["bl"])

    N, H, W, Cy = y.shape
    r = upscale
    C = Cy // (r * r)
    y = y.reshape(N, H, W, C, r, r)
    y = jnp.transpose(y, (0, 1, 4, 2, 5, 3)).reshape(N, H * r, W * r, C)
    base = jnp.repeat(jnp.repeat(x, r, axis=1), r, axis=2)
    return jnp.transpose(y + base, (0, 3, 1, 2))


# ----------------------------------------------------------------------------
if __name__ == "__main__":
    num_in_ch = num_out_ch = 3
    num_feat = 32     # small (module default: 64)
    num_conv = 4      # small (module default: 16)
    upscale = 2       # small (module default: 4)
    N, H, W = 2, 16, 16

    key = jax.random.PRNGKey(0)
    key, xk, pk = jax.random.split(key, 3)
    x = jax.random.normal(xk, (N, num_in_ch, H, W), jnp.float32)  # NCHW input
    params = init_lite_srnet_params(
        pk, num_in_ch, num_out_ch, num_feat, num_conv, upscale,
        act_type="prelu")

    out = jax.block_until_ready(lite_srnet_forward(x, params, upscale))
    ref = jax.block_until_ready(lite_srnet_forward_ref(x, params, upscale))

    assert out.shape == (N, num_out_ch, H * upscale, W * upscale)
    assert jnp.allclose(out, ref, atol=2e-4, rtol=2e-4), "mismatch vs reference"

    print("KERNEL_OK")
</pallas_src>

<mosaic_0001>
module attributes {stable_mosaic.version = 11 : i64} {
  func.func @kernel(%arg0: i32, %arg1: memref<1x256x3xf32, #tpu.memory_space<vmem>>, %arg2: memref<5x288x32xf32, #tpu.memory_space<vmem>>, %arg3: memref<5x1x32xf32, #tpu.memory_space<vmem>>, %arg4: memref<5x1x32xf32, #tpu.memory_space<vmem>>, %arg5: memref<288x128xf32, #tpu.memory_space<vmem>>, %arg6: memref<1x128xf32, #tpu.memory_space<vmem>>, %arg7: memref<256x1xf32, #tpu.memory_space<vmem>>, %arg8: memref<256x1xf32, #tpu.memory_space<vmem>>, %arg9: memref<1x12x256xf32, #tpu.memory_space<vmem>>, %arg10: memref<297x32xf32, #tpu.memory_space<vmem>>, %arg11: memref<256x288xf32, #tpu.memory_space<vmem>>) attributes {dimension_semantics = [#tpu.dimension_semantics<parallel>], iteration_bounds = array<i64: 2>, scalar_prefetch = 0 : i64, scratch_operands = 2 : i64, tpu.core_type = #tpu.core_type<tc>, window_params = [{transform_indices = @transform_0, window_bounds = array<i64: 1, 256, 3>}, {pipeline_mode = #tpu.pipeline_mode<synchronous>, transform_indices = @transform_1, window_bounds = array<i64: 5, 288, 32>}, {pipeline_mode = #tpu.pipeline_mode<synchronous>, transform_indices = @transform_2, window_bounds = array<i64: 5, 1, 32>}, {pipeline_mode = #tpu.pipeline_mode<synchronous>, transform_indices = @transform_3, window_bounds = array<i64: 5, 1, 32>}, {pipeline_mode = #tpu.pipeline_mode<synchronous>, transform_indices = @transform_4, window_bounds = array<i64: 288, 128>}, {pipeline_mode = #tpu.pipeline_mode<synchronous>, transform_indices = @transform_5, window_bounds = array<i64: 1, 128>}, {pipeline_mode = #tpu.pipeline_mode<synchronous>, transform_indices = @transform_6, window_bounds = array<i64: 256, 1>}, {pipeline_mode = #tpu.pipeline_mode<synchronous>, transform_indices = @transform_7, window_bounds = array<i64: 256, 1>}, {transform_indices = @transform_8, window_bounds = array<i64: 1, 12, 256>}]} {
    %cst = arith.constant 0.000000e+00 : f32
    %0 = vector.broadcast %cst : f32 to vector<297x32xf32>
    %c0 = arith.constant 0 : index
    %c0_0 = arith.constant 0 : index
    %1 = vector.load %arg10[%c0, %c0_0] : memref<297x32xf32, #tpu.memory_space<vmem>>, vector<297x32xf32>
    tpu.vector_store %arg10[%c0, %c0_0], %0 {strides = array<i32>} : memref<297x32xf32, #tpu.memory_space<vmem>>, vector<297x32xf32>,
    %c0_1 = arith.constant 0 : index
    %c0_2 = arith.constant 0 : index
    %c0_3 = arith.constant 0 : index
    %2 = vector.load %arg1[%c0_1, %c0_2, %c0_3] : memref<1x256x3xf32, #tpu.memory_space<vmem>>, vector<1x256x3xf32>
    %3 = vector.shape_cast %2 : vector<1x256x3xf32> to vector<256x3xf32>
    %c24 = arith.constant 24 : index
    %c0_4 = arith.constant 0 : index
    %4 = vector.load %arg10[%c24, %c0_4] : memref<297x32xf32, #tpu.memory_space<vmem>>, vector<256x3xf32>
    tpu.vector_store %arg10[%c24, %c0_4], %3 {strides = array<i32>} : memref<297x32xf32, #tpu.memory_space<vmem>>, vector<256x3xf32>,
    %c0_5 = arith.constant 0 : index
    %c0_6 = arith.constant 0 : index
    %5 = vector.load %arg7[%c0_5, %c0_6] : memref<256x1xf32, #tpu.memory_space<vmem>>, vector<256x1xf32>
    %c0_7 = arith.constant 0 : index
    %c0_8 = arith.constant 0 : index
    %6 = vector.load %arg8[%c0_7, %c0_8] : memref<256x1xf32, #tpu.memory_space<vmem>>, vector<256x1xf32>
    %c0_i32 = arith.constant 0 : i32
    %c5_i32 = arith.constant 5 : i32
    %7 = arith.addi %c0_i32, %c5_i32 : i32
    %c1_i32 = arith.constant 1 : i32
    scf.for %arg12 = %c0_i32 to %7 step %c1_i32  : i32 {
      %c7_40 = arith.constant 7 : index
      %c0_41 = arith.constant 0 : index
      %49 = vector.load %arg10[%c7_40, %c0_41] : memref<297x32xf32, #tpu.memory_space<vmem>>, vector<256x32xf32>
      %50 = vector.broadcast %5 : vector<256x1xf32> to vector<256x32xf32>
      %51 = arith.mulf %49, %50 : vector<256x32xf32>
      %c0_42 = arith.constant 0 : index
      %c0_43 = arith.constant 0 : index
      %52 = vector.load %arg11[%c0_42, %c0_43] : memref<256x288xf32, #tpu.memory_space<vmem>>, vector<256x32xf32>
      tpu.vector_store %arg11[%c0_42, %c0_43], %51 {strides = array<i32>} : memref<256x288xf32, #tpu.memory_space<vmem>>, vector<256x32xf32>,
      %c8_44 = arith.constant 8 : index
      %c0_45 = arith.constant 0 : index
      %53 = vector.load %arg10[%c8_44, %c0_45] : memref<297x32xf32, #tpu.memory_space<vmem>>, vector<256x32xf32>
      %c0_46 = arith.constant 0 : index
      %c32_47 = arith.constant 32 : index
      %54 = vector.load %arg11[%c0_46, %c32_47] : memref<256x288xf32, #tpu.memory_space<vmem>>, vector<256x32xf32>
      tpu.vector_store %arg11[%c0_46, %c32_47], %53 {strides = array<i32>} : memref<256x288xf32, #tpu.memory_space<vmem>>, vector<256x32xf32>,
      %c9_48 = arith.constant 9 : index
      %c0_49 = arith.constant 0 : index
      %55 = vector.load %arg10[%c9_48, %c0_49] : memref<297x32xf32, #tpu.memory_space<vmem>>, vector<256x32xf32>
      %56 = vector.broadcast %6 : vector<256x1xf32> to vector<256x32xf32>
      %57 = arith.mulf %55, %56 : vector<256x32xf32>
      %c0_50 = arith.constant 0 : index
      %c64_51 = arith.constant 64 : index
      %58 = vector.load %arg11[%c0_50, %c64_51] : memref<256x288xf32, #tpu.memory_space<vmem>>, vector<256x32xf32>
      tpu.vector_store %arg11[%c0_50, %c64_51], %57 {strides = array<i32>} : memref<256x288xf32, #tpu.memory_space<vmem>>, vector<256x32xf32>,
      %c23_52 = arith.constant 23 : index
      %c0_53 = arith.constant 0 : index
      %59 = vector.load %arg10[%c23_52, %c0_53] : memref<297x32xf32, #tpu.memory_space<vmem>>, vector<256x32xf32>
      %60 = vector.broadcast %5 : vector<256x1xf32> to vector<256x32xf32>
      %61 = arith.mulf %59, %60 : vector<256x32xf32>
      %c0_54 = arith.constant 0 : index
      %c96_55 = arith.constant 96 : index
      %62 = vector.load %arg11[%c0_54, %c96_55] : memref<256x288xf32, #tpu.memory_space<vmem>>, vector<256x32xf32>
      tpu.vector_store %arg11[%c0_54, %c96_55], %61 {strides = array<i32>} : memref<256x288xf32, #tpu.memory_space<vmem>>, vector<256x32xf32>,
      %c24_56 = arith.constant 24 : index
      %c0_57 = arith.constant 0 : index
      %63 = vector.load %arg10[%c24_56, %c0_57] : memref<297x32xf32, #tpu.memory_space<vmem>>, vector<256x32xf32>
      %c0_58 = arith.constant 0 : index
      %c128_59 = arith.constant 128 : index
      %64 = vector.load %arg11[%c0_58, %c128_59] : memref<256x288xf32, #tpu.memory_space<vmem>>, vector<256x32xf32>
      tpu.vector_store %arg11[%c0_58, %c128_59], %63 {strides = array<i32>} : memref<256x288xf32, #tpu.memory_space<vmem>>, vector<256x32xf32>,
      %c25_60 = arith.constant 25 : index
      %c0_61 = arith.constant 0 : index
      %65 = vector.load %arg10[%c25_60, %c0_61] : memref<297x32xf32, #tpu.memory_space<vmem>>, vector<256x32xf32>
      %66 = vector.broadcast %6 : vector<256x1xf32> to vector<256x32xf32>
      %67 = arith.mulf %65, %66 : vector<256x32xf32>
      %c0_62 = arith.constant 0 : index
      %c160_63 = arith.constant 160 : index
      %68 = vector.load %arg11[%c0_62, %c160_63] : memref<256x288xf32, #tpu.memory_space<vmem>>, vector<256x32xf32>
      tpu.vector_store %arg11[%c0_62, %c160_63], %67 {strides = array<i32>} : memref<256x288xf32, #tpu.memory_space<vmem>>, vector<256x32xf32>,
      %c39_64 = arith.constant 39 : index
      %c0_65 = arith.constant 0 : index
      %69 = vector.load %arg10[%c39_64, %c0_65] : memref<297x32xf32, #tpu.memory_space<vmem>>, vector<256x32xf32>
      %70 = vector.broadcast %5 : vector<256x1xf32> to vector<256x32xf32>
      %71 = arith.mulf %69, %70 : vector<256x32xf32>
      %c0_66 = arith.constant 0 : index
      %c192_67 = arith.constant 192 : index
      %72 = vector.load %arg11[%c0_66, %c192_67] : memref<256x288xf32, #tpu.memory_space<vmem>>, vector<256x32xf32>
      tpu.vector_store %arg11[%c0_66, %c192_67], %71 {strides = array<i32>} : memref<256x288xf32, #tpu.memory_space<vmem>>, vector<256x32xf32>,
      %c40_68 = arith.constant 40 : index
      %c0_69 = arith.constant 0 : index
      %73 = vector.load %arg10[%c40_68, %c0_69] : memref<297x32xf32, #tpu.memory_space<vmem>>, vector<256x32xf32>
      %c0_70 = arith.constant 0 : index
      %c224_71 = arith.constant 224 : index
      %74 = vector.load %arg11[%c0_70, %c224_71] : memref<256x288xf32, #tpu.memory_space<vmem>>, vector<256x32xf32>
      tpu.vector_store %arg11[%c0_70, %c224_71], %73 {strides = array<i32>} : memref<256x288xf32, #tpu.memory_space<vmem>>, vector<256x32xf32>,
      %c41_72 = arith.constant 41 : index
      %c0_73 = arith.constant 0 : index
      %75 = vector.load %arg10[%c41_72, %c0_73] : memref<297x32xf32, #tpu.memory_space<vmem>>, vector<256x32xf32>
      %76 = vector.broadcast %6 : vector<256x1xf32> to vector<256x32xf32>
      %77 = arith.mulf %75, %76 : vector<256x32xf32>
      %c0_74 = arith.constant 0 : index
      %c256_75 = arith.constant 256 : index
      %78 = vector.load %arg11[%c0_74, %c256_75] : memref<256x288xf32, #tpu.memory_space<vmem>>, vector<256x32xf32>
      tpu.vector_store %arg11[%c0_74, %c256_75], %77 {strides = array<i32>} : memref<256x288xf32, #tpu.memory_space<vmem>>, vector<256x32xf32>,
      %c0_76 = arith.constant 0 : index
      %c0_77 = arith.constant 0 : index
      %79 = vector.load %arg11[%c0_76, %c0_77] : memref<256x288xf32, #tpu.memory_space<vmem>>, vector<256x288xf32>
      %80 = arith.index_cast %arg12 : i32 to index
      %c0_78 = arith.constant 0 : index
      %c0_79 = arith.constant 0 : index
      %81 = vector.load %arg2[%80, %c0_78, %c0_79] : memref<5x288x32xf32, #tpu.memory_space<vmem>>, vector<1x288x32xf32>
      %82 = vector.shape_cast %81 : vector<1x288x32xf32> to vector<288x32xf32>
      %cst_80 = arith.constant dense<0.000000e+00> : vector<256x32xf32>
      %83 = tpu.matmul %79, %82, %cst_80 {dimension_numbers = #tpu.dot_dimension_numbers<[1], [0], [0], [1], [0, 0, 1, 1], [], []>} : vector<256x288xf32>, vector<288x32xf32>, vector<256x32xf32> -> vector<256x32xf32>
      %84 = arith.index_cast %arg12 : i32 to index
      %c0_81 = arith.constant 0 : index
      %c0_82 = arith.constant 0 : index
      %85 = vector.load %arg3[%84, %c0_81, %c0_82] : memref<5x1x32xf32, #tpu.memory_space<vmem>>, vector<1x1x32xf32>
      %86 = vector.shape_cast %85 : vector<1x1x32xf32> to vector<1x32xf32>
      %87 = vector.broadcast %86 : vector<1x32xf32> to vector<256x32xf32>
      %88 = arith.addf %83, %87 : vector<256x32xf32>
      %cst_83 = arith.constant 0.000000e+00 : f32
      %89 = vector.broadcast %cst_83 : f32 to vector<256x32xf32>
      %90 = arith.cmpf ogt, %88, %89 : vector<256x32xf32>
      %91 = arith.index_cast %arg12 : i32 to index
      %c0_84 = arith.constant 0 : index
      %c0_85 = arith.constant 0 : index
      %92 = vector.load %arg4[%91, %c0_84, %c0_85] : memref<5x1x32xf32, #tpu.memory_space<vmem>>, vector<1x1x32xf32>
      %93 = vector.shape_cast %92 : vector<1x1x32xf32> to vector<1x32xf32>
      %94 = vector.broadcast %93 : vector<1x32xf32> to vector<256x32xf32>
      %95 = arith.mulf %94, %88 : vector<256x32xf32>
      %96 = arith.select %90, %88, %95 : vector<256x32xi1>, vector<256x32xf32>
      %c24_86 = arith.constant 24 : index
      %c0_87 = arith.constant 0 : index
      %97 = vector.load %arg10[%c24_86, %c0_87] : memref<297x32xf32, #tpu.memory_space<vmem>>, vector<256x32xf32>
      tpu.vector_store %arg10[%c24_86, %c0_87], %96 {strides = array<i32>} : memref<297x32xf32, #tpu.memory_space<vmem>>, vector<256x32xf32>,
    }
    %c5_i32_9 = arith.constant 5 : i32
    %c7 = arith.constant 7 : index
    %c0_10 = arith.constant 0 : index
    %8 = vector.load %arg10[%c7, %c0_10] : memref<297x32xf32, #tpu.memory_space<vmem>>, vector<256x32xf32>
    %9 = vector.broadcast %5 : vector<256x1xf32> to vector<256x32xf32>
    %10 = arith.mulf %8, %9 : vector<256x32xf32>
    %c0_11 = arith.constant 0 : index
    %c0_12 = arith.constant 0 : index
    %11 = vector.load %arg11[%c0_11, %c0_12] : memref<256x288xf32, #tpu.memory_space<vmem>>, vector<256x32xf32>
    tpu.vector_store %arg11[%c0_11, %c0_12], %10 {strides = array<i32>} : memref<256x288xf32, #tpu.memory_space<vmem>>, vector<256x32xf32>,
    %c8 = arith.constant 8 : index
    %c0_13 = arith.constant 0 : index
    %12 = vector.load %arg10[%c8, %c0_13] : memref<297x32xf32, #tpu.memory_space<vmem>>, vector<256x32xf32>
    %c0_14 = arith.constant 0 : index
    %c32 = arith.constant 32 : index
    %13 = vector.load %arg11[%c0_14, %c32] : memref<256x288xf32, #tpu.memory_space<vmem>>, vector<256x32xf32>
    tpu.vector_store %arg11[%c0_14, %c32], %12 {strides = array<i32>} : memref<256x288xf32, #tpu.memory_space<vmem>>, vector<256x32xf32>,
    %c9 = arith.constant 9 : index
    %c0_15 = arith.constant 0 : index
    %14 = vector.load %arg10[%c9, %c0_15] : memref<297x32xf32, #tpu.memory_space<vmem>>, vector<256x32xf32>
    %15 = vector.broadcast %6 : vector<256x1xf32> to vector<256x32xf32>
    %16 = arith.mulf %14, %15 : vector<256x32xf32>
    %c0_16 = arith.constant 0 : index
    %c64 = arith.constant 64 : index
    %17 = vector.load %arg11[%c0_16, %c64] : memref<256x288xf32, #tpu.memory_space<vmem>>, vector<256x32xf32>
    tpu.vector_store %arg11[%c0_16, %c64], %16 {strides = array<i32>} : memref<256x288xf32, #tpu.memory_space<vmem>>, vector<256x32xf32>,
    %c23 = arith.constant 23 : index
    %c0_17 = arith.constant 0 : index
    %18 = vector.load %arg10[%c23, %c0_17] : memref<297x32xf32, #tpu.memory_space<vmem>>, vector<256x32xf32>
    %19 = vector.broadcast %5 : vector<256x1xf32> to vector<256x32xf32>
    %20 = arith.mulf %18, %19 : vector<256x32xf32>
    %c0_18 = arith.constant 0 : index
    %c96 = arith.constant 96 : index
    %21 = vector.load %arg11[%c0_18, %c96] : memref<256x288xf32, #tpu.memory_space<vmem>>, vector<256x32xf32>
    tpu.vector_store %arg11[%c0_18, %c96], %20 {strides = array<i32>} : memref<256x288xf32, #tpu.memory_space<vmem>>, vector<256x32xf32>,
    %c24_19 = arith.constant 24 : index
    %c0_20 = arith.constant 0 : index
    %22 = vector.load %arg10[%c24_19, %c0_20] : memref<297x32xf32, #tpu.memory_space<vmem>>, vector<256x32xf32>
    %c0_21 = arith.constant 0 : index
    %c128 = arith.constant 128 : index
    %23 = vector.load %arg11[%c0_21, %c128] : memref<256x288xf32, #tpu.memory_space<vmem>>, vector<256x32xf32>
    tpu.vector_store %arg11[%c0_21, %c128], %22 {strides = array<i32>} : memref<256x288xf32, #tpu.memory_space<vmem>>, vector<256x32xf32>,
    %c25 = arith.constant 25 : index
    %c0_22 = arith.constant 0 : index
    %24 = vector.load %arg10[%c25, %c0_22] : memref<297x32xf32, #tpu.memory_space<vmem>>, vector<256x32xf32>
    %25 = vector.broadcast %6 : vector<256x1xf32> to vector<256x32xf32>
    %26 = arith.mulf %24, %25 : vector<256x32xf32>
    %c0_23 = arith.constant 0 : index
    %c160 = arith.constant 160 : index
    %27 = vector.load %arg11[%c0_23, %c160] : memref<256x288xf32, #tpu.memory_space<vmem>>, vector<256x32xf32>
    tpu.vector_store %arg11[%c0_23, %c160], %26 {strides = array<i32>} : memref<256x288xf32, #tpu.memory_space<vmem>>, vector<256x32xf32>,
    %c39 = arith.constant 39 : index
    %c0_24 = arith.constant 0 : index
    %28 = vector.load %arg10[%c39, %c0_24] : memref<297x32xf32, #tpu.memory_space<vmem>>, vector<256x32xf32>
    %29 = vector.broadcast %5 : vector<256x1xf32> to vector<256x32xf32>
    %30 = arith.mulf %28, %29 : vector<256x32xf32>
    %c0_25 = arith.constant 0 : index
    %c192 = arith.constant 192 : index
    %31 = vector.load %arg11[%c0_25, %c192] : memref<256x288xf32, #tpu.memory_space<vmem>>, vector<256x32xf32>
    tpu.vector_store %arg11[%c0_25, %c192], %30 {strides = array<i32>} : memref<256x288xf32, #tpu.memory_space<vmem>>, vector<256x32xf32>,
    %c40 = arith.constant 40 : index
    %c0_26 = arith.constant 0 : index
    %32 = vector.load %arg10[%c40, %c0_26] : memref<297x32xf32, #tpu.memory_space<vmem>>, vector<256x32xf32>
    %c0_27 = arith.constant 0 : index
    %c224 = arith.constant 224 : index
    %33 = vector.load %arg11[%c0_27, %c224] : memref<256x288xf32, #tpu.memory_space<vmem>>, vector<256x32xf32>
    tpu.vector_store %arg11[%c0_27, %c224], %32 {strides = array<i32>} : memref<256x288xf32, #tpu.memory_space<vmem>>, vector<256x32xf32>,
    %c41 = arith.constant 41 : index
    %c0_28 = arith.constant 0 : index
    %34 = vector.load %arg10[%c41, %c0_28] : memref<297x32xf32, #tpu.memory_space<vmem>>, vector<256x32xf32>
    %35 = vector.broadcast %6 : vector<256x1xf32> to vector<256x32xf32>
    %36 = arith.mulf %34, %35 : vector<256x32xf32>
    %c0_29 = arith.constant 0 : index
    %c256 = arith.constant 256 : index
    %37 = vector.load %arg11[%c0_29, %c256] : memref<256x288xf32, #tpu.memory_space<vmem>>, vector<256x32xf32>
    tpu.vector_store %arg11[%c0_29, %c256], %36 {strides = array<i32>} : memref<256x288xf32, #tpu.memory_space<vmem>>, vector<256x32xf32>,
    %c0_30 = arith.constant 0 : index
    %c0_31 = arith.constant 0 : index
    %38 = vector.load %arg11[%c0_30, %c0_31] : memref<256x288xf32, #tpu.memory_space<vmem>>, vector<256x288xf32>
    %c0_32 = arith.constant 0 : index
    %c0_33 = arith.constant 0 : index
    %39 = vector.load %arg5[%c0_32, %c0_33] : memref<288x128xf32, #tpu.memory_space<vmem>>, vector<288x128xf32>
    %cst_34 = arith.constant dense<0.000000e+00> : vector<256x128xf32>
    %40 = tpu.matmul %38, %39, %cst_34 {dimension_numbers = #tpu.dot_dimension_numbers<[1], [0], [0], [1], [0, 0, 1, 1], [], []>} : vector<256x288xf32>, vector<288x128xf32>, vector<256x128xf32> -> vector<256x128xf32>
    %c0_35 = arith.constant 0 : index
    %c0_36 = arith.constant 0 : index
    %41 = vector.load %arg6[%c0_35, %c0_36] : memref<1x128xf32, #tpu.memory_space<vmem>>, vector<1x128xf32>
    %42 = vector.broadcast %41 : vector<1x128xf32> to vector<256x128xf32>
    %43 = arith.addf %40, %42 : vector<256x128xf32>
    %44 = tpu.transpose %43, [1, 0] : vector<256x128xf32> -> vector<128x256xf32>
    %45 = vector.extract_strided_slice %44 {offsets = [0, 0], sizes = [12, 256], strides = [1, 1]} : vector<128x256xf32> to vector<12x256xf32>
    %c0_37 = arith.constant 0 : index
    %c0_38 = arith.constant 0 : index
    %c0_39 = arith.constant 0 : index
    %46 = vector.load %arg9[%c0_37, %c0_38, %c0_39] : memref<1x12x256xf32, #tpu.memory_space<vmem>>, vector<1x12x256xf32>
    %47 = vector.shape_cast %46 : vector<1x12x256xf32> to vector<12x256xf32>
    %48 = vector.shape_cast %45 : vector<12x256xf32> to vector<1x12x256xf32>
    tpu.vector_store %arg9[%c0_37, %c0_38, %c0_39], %48 {strides = array<i32>} : memref<1x12x256xf32, #tpu.memory_space<vmem>>, vector<1x12x256xf32>,
    return
  }
  func.func @transform_0(%arg0: i32) -> (i32, i32, i32) {
    %c0_i32 = arith.constant 0 : i32
    %c0_i32_0 = arith.constant 0 : i32
    %c0_i32_1 = arith.constant 0 : i32
    return %arg0, %c0_i32, %c0_i32_0 : i32, i32, i32
  }
  func.func @transform_1(%arg0: i32) -> (i32, i32, i32) {
    %c0_i32 = arith.constant 0 : i32
    %c0_i32_0 = arith.constant 0 : i32
    %c0_i32_1 = arith.constant 0 : i32
    %c0_i32_2 = arith.constant 0 : i32
    return %c0_i32, %c0_i32_0, %c0_i32_1 : i32, i32, i32
  }
  func.func @transform_2(%arg0: i32) -> (i32, i32, i32) {
    %c0_i32 = arith.constant 0 : i32
    %c0_i32_0 = arith.constant 0 : i32
    %c0_i32_1 = arith.constant 0 : i32
    %c0_i32_2 = arith.constant 0 : i32
    return %c0_i32, %c0_i32_0, %c0_i32_1 : i32, i32, i32
  }
  func.func @transform_3(%arg0: i32) -> (i32, i32, i32) {
    %c0_i32 = arith.constant 0 : i32
    %c0_i32_0 = arith.constant 0 : i32
    %c0_i32_1 = arith.constant 0 : i32
    %c0_i32_2 = arith.constant 0 : i32
    return %c0_i32, %c0_i32_0, %c0_i32_1 : i32, i32, i32
  }
  func.func @transform_4(%arg0: i32) -> (i32, i32) {
    %c0_i32 = arith.constant 0 : i32
    %c0_i32_0 = arith.constant 0 : i32
    %c0_i32_1 = arith.constant 0 : i32
    return %c0_i32, %c0_i32_0 : i32, i32
  }
  func.func @transform_5(%arg0: i32) -> (i32, i32) {
    %c0_i32 = arith.constant 0 : i32
    %c0_i32_0 = arith.constant 0 : i32
    %c0_i32_1 = arith.constant 0 : i32
    return %c0_i32, %c0_i32_0 : i32, i32
  }
  func.func @transform_6(%arg0: i32) -> (i32, i32) {
    %c0_i32 = arith.constant 0 : i32
    %c0_i32_0 = arith.constant 0 : i32
    %c0_i32_1 = arith.constant 0 : i32
    return %c0_i32, %c0_i32_0 : i32, i32
  }
  func.func @transform_7(%arg0: i32) -> (i32, i32) {
    %c0_i32 = arith.constant 0 : i32
    %c0_i32_0 = arith.constant 0 : i32
    %c0_i32_1 = arith.constant 0 : i32
    return %c0_i32, %c0_i32_0 : i32, i32
  }
  func.func @transform_8(%arg0: i32) -> (i32, i32, i32) {
    %c0_i32 = arith.constant 0 : i32
    %c0_i32_0 = arith.constant 0 : i32
    %c0_i32_1 = arith.constant 0 : i32
    return %arg0, %c0_i32, %c0_i32_0 : i32, i32, i32
  }
}

</mosaic_0001>

<llo_original>
// kernel: lite_srnet_forward.1
$region0: #{lite_srnet_forward.1}
  #allocation0 [shape = 'u32[]', space=smem, size = 0x4, offset = 0x4, fixed_abs, tag = 'smem constant byte address 0x4 - core index']
  #allocation1 [shape = 'u32[144,128]{1,0:T(1,128)}', space=vmem, size = 0x12000, scoped, tag = 'internal scratch']
  #allocation2 [shape = 'f32[297,32]{1,0:T(8,128)}', space=vmem, size = 0x26000, scoped, tag = 'scratch operand']
  #allocation3 [shape = 'f32[256,288]{1,0:T(8,128)}', space=vmem, size = 0x60000, scoped, tag = 'scratch operand']
  %s0 = inlined_call_operand.hbm [shape: f32[2,256,3], index: 0, kind: input, shape index: {}]
  %s1 = inlined_call_operand.hbm [shape: f32[5,288,32], index: 1, kind: input, shape index: {}]
  %s2 = inlined_call_operand.hbm [shape: f32[5,1,32], index: 2, kind: input, shape index: {}]
  %s3 = inlined_call_operand.hbm [shape: f32[5,1,32], index: 3, kind: input, shape index: {}]
  %s4 = inlined_call_operand.hbm [shape: f32[288,128], index: 4, kind: input, shape index: {}]
  %s5 = inlined_call_operand.hbm [shape: f32[1,128], index: 5, kind: input, shape index: {}]
  %s6 = inlined_call_operand.hbm [shape: f32[256,1], index: 6, kind: input, shape index: {}]
  %s7 = inlined_call_operand.hbm [shape: f32[256,1], index: 7, kind: input, shape index: {}]
  %s8 = inlined_call_operand.hbm [shape: f32[2,12,256], index: 8, kind: output, shape index: {}]
  %s9 = sld [smem:[#allocation0]]
  $region104: #{lite_srnet_forward.1} parent=0
    _
  %s11 = ssub.s32 1, %s9
  %s12 = scalar_select 0, %s11, %s9
  $region1: #{lite_srnet_forward.1} parent=0
    #allocation4 [shape = 'u8[262144]{0}', space=vmem, size = 0x40000, scoped, tag = 'input window, operand 0']
    #allocation5 [shape = 's32[2]{0}', space=sflag, size = 0x8, scoped, tag = 'scoped memory for lite_srnet_forward.1']
    #allocation6 [shape = 's32[2]{0}', space=sflag, size = 0x8, scoped, tag = 'scoped memory for lite_srnet_forward.1']
    #allocation7 [shape = 'u8[737280]{0}', space=vmem, size = 0xb4000, scoped, tag = 'input window, operand 1, single buffered']
    #allocation8 [shape = 's32[1]{0}', space=sflag, size = 0x4, scoped, tag = 'scoped memory for lite_srnet_forward.1']
    #allocation9 [shape = 'u8[2560]{0}', space=vmem, size = 0xc00, scoped, tag = 'input window, operand 2, single buffered']
    #allocation10 [shape = 'u8[2560]{0}', space=vmem, size = 0xc00, scoped, tag = 'input window, operand 3, single buffered']
    #allocation11 [shape = 's32[1]{0}', space=sflag, size = 0x4, scoped, tag = 'scoped memory for lite_srnet_forward.1']
    #allocation12 [shape = 'u8[147456]{0}', space=vmem, size = 0x24000, scoped, tag = 'input window, operand 4, single buffered']
    #allocation13 [shape = 'u8[512]{0}', space=vmem, size = 0x400, scoped, tag = 'input window, operand 5, single buffered']
    #allocation14 [shape = 's32[1]{0}', space=sflag, size = 0x4, scoped, tag = 'scoped memory for lite_srnet_forward.1']
    #allocation15 [shape = 'u8[131072]{0}', space=vmem, size = 0x20000, scoped, tag = 'input window, operand 6, single buffered']
    #allocation16 [shape = 'u8[131072]{0}', space=vmem, size = 0x20000, scoped, tag = 'input window, operand 7, single buffered']
    #allocation17 [shape = 's32[1]{0}', space=sflag, size = 0x4, scoped, tag = 'scoped memory for lite_srnet_forward.1']
    #allocation18 [shape = 'u8[32768]{0}', space=vmem, size = 0x8000, scoped, tag = 'output window, operand 0']
    %13 = vsyncpa [#allocation5], 0
    %s14 = scalar_lea.sflag [#allocation5], 1
    %15 = vsyncpa %s14, 0
    %16 = vsyncpa [#allocation8], 0
    %17 = vsyncpa [#allocation11], 0
    %18 = vsyncpa [#allocation14], 0
    %19 = vsyncpa [#allocation17], 0
    %20 = vsyncpa [#allocation6], 0
    %s21 = scalar_lea.sflag [#allocation6], 1
    %22 = vsyncpa %s21, 0
    loop: start=0, step=1, limit=4
    $region2: #{lite_srnet_forward.1} parent=1 // loop_pre_header
      _
    $region3: #{lite_srnet_forward.1} parent=1 // loop_header
      %s24 = sphi 0, %s28
      %p25 = scmp.ge.s32.totalorder %s24, 4
      %s34 = sphi 0, %s36
      %s37 = sphi 0, %s34
      %s38 = sphi 0, %s37
      %s54 = sphi 0, %s38
      %s58 = sphi 0, %s58
      %s60 = sphi 0, %s58
      %s61 = sphi 0, %s60
      %s75 = sphi 0, %s61
      %s79 = sphi 0, %s79
      %s81 = sphi 0, %s79
      %s82 = sphi 0, %s81
      %s96 = sphi 0, %s82
      %s100 = sphi 0, %s100
      %s102 = sphi 0, %s100
      %s103 = sphi 0, %s102
      %s117 = sphi 0, %s103
      %s121 = sphi 0, %s121
      %s123 = sphi 0, %s121
      %s124 = sphi 0, %s123
      %s138 = sphi 0, %s124
      %s142 = sphi 0, %s142
      %s144 = sphi 0, %s142
      %s145 = sphi 0, %s144
      %s159 = sphi 0, %s145
      %s163 = sphi 0, %s163
      %s165 = sphi 0, %s163
      %s166 = sphi 0, %s165
      %s180 = sphi 0, %s166
      %s184 = sphi 0, %s184
      %s186 = sphi 0, %s184
      %s187 = sphi 0, %s186
      %s201 = sphi 0, %s187
      %s207 = sphi 0, %s209
      %s210 = sphi 0, %s207
      %s211 = sphi 0, %s210
      %s227 = sphi 0, %s211
    $region4: #{lite_srnet_forward.1} parent=1 // loop_header_branch
      %27 = sbr.rel (%p25) target = $region8
    $region5: #{lite_srnet_forward.1} parent=1 // loop_body
      %s29 = ssub.s32 %s24, 1
      %s30 = ssub.s32 %s24, 2
      %s31 = sadd.s32 %s24, 1
      %s32 = ssub.s32 %s24, %s31
      %p33 = scmp.eq.s32.totalorder %s32, 0
      %s35 = sadd.s32 %s34, 1
      %s36 = scalar_select %p33, %s34, %s35
      %p39 = pneg %p33
      %p40 = scmp.eq.s32.totalorder %s24, 1
      %p41 = por %p39, %p40
      %p42 = scmp.ne.s32.totalorder %s34, %s37
      %p43 = scmp.eq.s32.totalorder %s24, 0
      %p44 = por %p42, %p43
      %p45 = scmp.ne.s32.totalorder %s34, %s37
      %p46 = scmp.eq.s32.totalorder %s29, 1
      %p47 = por %p45, %p46
      %p48 = scmp.ne.s32.totalorder %s37, %s38
      %p49 = scmp.eq.s32.totalorder %s29, 0
      %p50 = por %p48, %p49
      %p51 = scmp.ne.s32.totalorder %s37, %s38
      %p52 = scmp.eq.s32.totalorder %s30, 1
      %p53 = por %p51, %p52
      %p55 = scmp.ne.s32.totalorder %s38, %s54
      %p56 = scmp.eq.s32.totalorder %s30, 0
      %p57 = por %p55, %p56
      %s59 = sadd.s32 %s58, 1
      %p62 = scmp.eq.s32.totalorder %s24, 1
      %p63 = scmp.ne.s32.totalorder %s58, %s60
      %p64 = scmp.eq.s32.totalorder %s24, 0
      %p65 = por %p63, %p64
      %p66 = scmp.ne.s32.totalorder %s58, %s60
      %p67 = scmp.eq.s32.totalorder %s29, 1
      %p68 = por %p66, %p67
      %p69 = scmp.ne.s32.totalorder %s60, %s61
      %p70 = scmp.eq.s32.totalorder %s29, 0
      %p71 = por %p69, %p70
      %p72 = scmp.ne.s32.totalorder %s60, %s61
      %p73 = scmp.eq.s32.totalorder %s30, 1
      %p74 = por %p72, %p73
      %p76 = scmp.ne.s32.totalorder %s61, %s75
      %p77 = scmp.eq.s32.totalorder %s30, 0
      %p78 = por %p76, %p77
      %s80 = sadd.s32 %s79, 1
      %p83 = scmp.eq.s32.totalorder %s24, 1
      %p84 = scmp.ne.s32.totalorder %s79, %s81
      %p85 = scmp.eq.s32.totalorder %s24, 0
      %p86 = por %p84, %p85
      %p87 = scmp.ne.s32.totalorder %s79, %s81
      %p88 = scmp.eq.s32.totalorder %s29, 1
      %p89 = por %p87, %p88
      %p90 = scmp.ne.s32.totalorder %s81, %s82
      %p91 = scmp.eq.s32.totalorder %s29, 0
      %p92 = por %p90, %p91
      %p93 = scmp.ne.s32.totalorder %s81, %s82
      %p94 = scmp.eq.s32.totalorder %s30, 1
      %p95 = por %p93, %p94
      %p97 = scmp.ne.s32.totalorder %s82, %s96
      %p98 = scmp.eq.s32.totalorder %s30, 0
      %p99 = por %p97, %p98
      %s101 = sadd.s32 %s100, 1
      %p104 = scmp.eq.s32.totalorder %s24, 1
      %p105 = scmp.ne.s32.totalorder %s100, %s102
      %p106 = scmp.eq.s32.totalorder %s24, 0
      %p107 = por %p105, %p106
      %p108 = scmp.ne.s32.totalorder %s100, %s102
      %p109 = scmp.eq.s32.totalorder %s29, 1
      %p110 = por %p108, %p109
      %p111 = scmp.ne.s32.totalorder %s102, %s103
      %p112 = scmp.eq.s32.totalorder %s29, 0
      %p113 = por %p111, %p112
      %p114 = scmp.ne.s32.totalorder %s102, %s103
      %p115 = scmp.eq.s32.totalorder %s30, 1
      %p116 = por %p114, %p115
      %p118 = scmp.ne.s32.totalorder %s103, %s117
      %p119 = scmp.eq.s32.totalorder %s30, 0
      %p120 = por %p118, %p119
      %s122 = sadd.s32 %s121, 1
      %p125 = scmp.eq.s32.totalorder %s24, 1
      %p126 = scmp.ne.s32.totalorder %s121, %s123
      %p127 = scmp.eq.s32.totalorder %s24, 0
      %p128 = por %p126, %p127
      %p129 = scmp.ne.s32.totalorder %s121, %s123
      %p130 = scmp.eq.s32.totalorder %s29, 1
      %p131 = por %p129, %p130
      %p132 = scmp.ne.s32.totalorder %s123, %s124
      %p133 = scmp.eq.s32.totalorder %s29, 0
      %p134 = por %p132, %p133
      %p135 = scmp.ne.s32.totalorder %s123, %s124
      %p136 = scmp.eq.s32.totalorder %s30, 1
      %p137 = por %p135, %p136
      %p139 = scmp.ne.s32.totalorder %s124, %s138
      %p140 = scmp.eq.s32.totalorder %s30, 0
      %p141 = por %p139, %p140
      %s143 = sadd.s32 %s142, 1
      %p146 = scmp.eq.s32.totalorder %s24, 1
      %p147 = scmp.ne.s32.totalorder %s142, %s144
      %p148 = scmp.eq.s32.totalorder %s24, 0
      %p149 = por %p147, %p148
      %p150 = scmp.ne.s32.totalorder %s142, %s144
      %p151 = scmp.eq.s32.totalorder %s29, 1
      %p152 = por %p150, %p151
      %p153 = scmp.ne.s32.totalorder %s144, %s145
      %p154 = scmp.eq.s32.totalorder %s29, 0
      %p155 = por %p153, %p154
      %p156 = scmp.ne.s32.totalorder %s144, %s145
      %p157 = scmp.eq.s32.totalorder %s30, 1
      %p158 = por %p156, %p157
      %p160 = scmp.ne.s32.totalorder %s145, %s159
      %p161 = scmp.eq.s32.totalorder %s30, 0
      %p162 = por %p160, %p161
      %s164 = sadd.s32 %s163, 1
      %p167 = scmp.eq.s32.totalorder %s24, 1
      %p168 = scmp.ne.s32.totalorder %s163, %s165
      %p169 = scmp.eq.s32.totalorder %s24, 0
      %p170 = por %p168, %p169
      %p171 = scmp.ne.s32.totalorder %s163, %s165
      %p172 = scmp.eq.s32.totalorder %s29, 1
      %p173 = por %p171, %p172
      %p174 = scmp.ne.s32.totalorder %s165, %s166
      %p175 = scmp.eq.s32.totalorder %s29, 0
      %p176 = por %p174, %p175
      %p177 = scmp.ne.s32.totalorder %s165, %s166
      %p178 = scmp.eq.s32.totalorder %s30, 1
      %p179 = por %p177, %p178
      %p181 = scmp.ne.s32.totalorder %s166, %s180
      %p182 = scmp.eq.s32.totalorder %s30, 0
      %p183 = por %p181, %p182
      %s185 = sadd.s32 %s184, 1
      %p188 = scmp.eq.s32.totalorder %s24, 1
      %p189 = scmp.ne.s32.totalorder %s184, %s186
      %p190 = scmp.eq.s32.totalorder %s24, 0
      %p191 = por %p189, %p190
      %p192 = scmp.ne.s32.totalorder %s184, %s186
      %p193 = scmp.eq.s32.totalorder %s29, 1
      %p194 = por %p192, %p193
      %p195 = scmp.ne.s32.totalorder %s186, %s187
      %p196 = scmp.eq.s32.totalorder %s29, 0
      %p197 = por %p195, %p196
      %p198 = scmp.ne.s32.totalorder %s186, %s187
      %p199 = scmp.eq.s32.totalorder %s30, 1
      %p200 = por %p198, %p199
      %p202 = scmp.ne.s32.totalorder %s187, %s201
      %p203 = scmp.eq.s32.totalorder %s30, 0
      %p204 = por %p202, %p203
      %s205 = ssub.s32 %s24, %s31
      %p206 = scmp.eq.s32.totalorder %s205, 0
      %s208 = sadd.s32 %s207, 1
      %s209 = scalar_select %p206, %s207, %s208
      %p212 = pneg %p206
      %p213 = scmp.eq.s32.totalorder %s24, 1
      %p214 = por %p212, %p213
      %p215 = scmp.ne.s32.totalorder %s207, %s210
      %p216 = scmp.eq.s32.totalorder %s24, 0
      %p217 = por %p215, %p216
      %p218 = scmp.ne.s32.totalorder %s207, %s210
      %p219 = scmp.eq.s32.totalorder %s29, 1
      %p220 = por %p218, %p219
      %p221 = scmp.ne.s32.totalorder %s210, %s211
      %p222 = scmp.eq.s32.totalorder %s29, 0
      %p223 = por %p221, %p222
      %p224 = scmp.ne.s32.totalorder %s210, %s211
      %p225 = scmp.eq.s32.totalorder %s30, 1
      %p226 = por %p224, %p225
      %p228 = scmp.ne.s32.totalorder %s211, %s227
      %p229 = scmp.eq.s32.totalorder %s30, 0
      %p230 = por %p228, %p229
      %p231 = scmp.le.s32.totalorder 1, %s24
      %p232 = scmp.lt.s32.totalorder %s24, 3
      %p233 = pnand %p231, %p232
      %p234 = pneg %p233
      // Predicated region
      $region9: #{lite_srnet_forward.1} parent=5 // pred_check
        _
      $region10: #{lite_srnet_forward.1} parent=5 // pred_check_branch
        %236 = sbr.rel (%p233) target = $region12
      $region11: #{lite_srnet_forward.1} parent=5 // pred_region
        %s237 = ssub.s32 %s24, 1
        // Predicated region
        $region13: #{lite_srnet_forward.1} parent=11 // pred_check
          %p238 = pneg %p71
        $region14: #{lite_srnet_forward.1} parent=11 // pred_check_branch
          %240 = sbr.rel (%p238) target = $region16
        $region15: #{lite_srnet_forward.1} parent=11 // pred_region
          %s242 = ssub.s32 23040, 23040
          %243 = vsyncadd [#allocation8], %s242
          %s244 = sshll.u32 [#allocation7], 4
          %s245 = int_to_ptr.vmem [resolvable:$true] %s244
          %250 = dma.hbm_to_vmem [thread:$0]  %s1, 23040, %s245, [#allocation8], 128, 128, 8
        $region16: #{lite_srnet_forward.1} parent=11 // pred_fallthru
          _
        // Predicated region
        $region17: #{lite_srnet_forward.1} parent=11 // pred_check
          %p251 = pneg %p92
        $region18: #{lite_srnet_forward.1} parent=11 // pred_check_branch
          %253 = sbr.rel (%p251) target = $region20
        $region19: #{lite_srnet_forward.1} parent=11 // pred_region
          %s255 = ssub.s32 80, 80
          %256 = vsyncadd [#allocation8], %s255
          %s257 = sshll.u32 [#allocation9], 4
          %s258 = int_to_ptr.vmem [resolvable:$true] %s257
          %263 = dma.hbm_to_vmem [thread:$0]  %s2, 80, %s258, [#allocation8], 16, 16, 1
        $region20: #{lite_srnet_forward.1} parent=11 // pred_fallthru
          _
        // Predicated region
        $region21: #{lite_srnet_forward.1} parent=11 // pred_check
          %p264 = pneg %p113
        $region22: #{lite_srnet_forward.1} parent=11 // pred_check_branch
          %266 = sbr.rel (%p264) target = $region24
        $region23: #{lite_srnet_forward.1} parent=11 // pred_region
          %s268 = ssub.s32 80, 80
          %269 = vsyncadd [#allocation11], %s268
          %s270 = sshll.u32 [#allocation10], 4
          %s271 = int_to_ptr.vmem [resolvable:$true] %s270
          %276 = dma.hbm_to_vmem [thread:$0]  %s3, 80, %s271, [#allocation11], 16, 16, 1
        $region24: #{lite_srnet_forward.1} parent=11 // pred_fallthru
          _
        // Predicated region
        $region25: #{lite_srnet_forward.1} parent=11 // pred_check
          %p277 = pneg %p134
        $region26: #{lite_srnet_forward.1} parent=11 // pred_check_branch
          %279 = sbr.rel (%p277) target = $region28
        $region27: #{lite_srnet_forward.1} parent=11 // pred_region
          %s281 = ssub.s32 4608, 4608
          %282 = vsyncadd [#allocation11], %s281
          %s283 = sshll.u32 [#allocation12], 4
          %s284 = int_to_ptr.vmem [resolvable:$true] %s283
          %289 = dma.hbm_to_vmem [thread:$0]  %s4, 4608, %s284, [#allocation11], 128, 128, 8
        $region28: #{lite_srnet_forward.1} parent=11 // pred_fallthru
          _
        // Predicated region
        $region29: #{lite_srnet_forward.1} parent=11 // pred_check
          %p290 = pneg %p155
        $region30: #{lite_srnet_forward.1} parent=11 // pred_check_branch
          %292 = sbr.rel (%p290) target = $region32
        $region31: #{lite_srnet_forward.1} parent=11 // pred_region
          %s294 = ssub.s32 16, 16
          %295 = vsyncadd [#allocation14], %s294
          %s297 = sshll.u32 [#allocation13], 4
          %s298 = int_to_ptr.vmem [resolvable:$true] %s297
          %300 = dma.hbm_to_vmem [thread:$0]  %s5, 16, %s298, [#allocation14]
        $region32: #{lite_srnet_forward.1} parent=11 // pred_fallthru
          _
        // Predicated region
        $region33: #{lite_srnet_forward.1} parent=11 // pred_check
          %p301 = pneg %p176
        $region34: #{lite_srnet_forward.1} parent=11 // pred_check_branch
          %303 = sbr.rel (%p301) target = $region36
        $region35: #{lite_srnet_forward.1} parent=11 // pred_region
          %s305 = ssub.s32 4096, 4096
          %306 = vsyncadd [#allocation14], %s305
          %s307 = sshll.u32 [#allocation15], 4
          %s308 = int_to_ptr.vmem [resolvable:$true] %s307
          %313 = dma.hbm_to_vmem [thread:$0]  %s6, 4096, %s308, [#allocation14], 128, 128, 8
        $region36: #{lite_srnet_forward.1} parent=11 // pred_fallthru
          _
        // Predicated region
        $region37: #{lite_srnet_forward.1} parent=11 // pred_check
          %p314 = pneg %p197
        $region38: #{lite_srnet_forward.1} parent=11 // pred_check_branch
          %316 = sbr.rel (%p314) target = $region40
        $region39: #{lite_srnet_forward.1} parent=11 // pred_region
          %s318 = ssub.s32 4096, 4096
          %319 = vsyncadd [#allocation17], %s318
          %s320 = sshll.u32 [#allocation16], 4
          %s321 = int_to_ptr.vmem [resolvable:$true] %s320
          %326 = dma.hbm_to_vmem [thread:$0]  %s7, 4096, %s321, [#allocation17], 128, 128, 8
        $region40: #{lite_srnet_forward.1} parent=11 // pred_fallthru
          _
      $region12: #{lite_srnet_forward.1} parent=5 // pred_fallthru
        _
      %p327 = scmp.lt.s32.totalorder %s24, 2
      // Predicated region
      $region41: #{lite_srnet_forward.1} parent=5 // pred_check
        %p328 = pneg %p327
      $region42: #{lite_srnet_forward.1} parent=5 // pred_check_branch
        %330 = sbr.rel (%p328) target = $region44
      $region43: #{lite_srnet_forward.1} parent=5 // pred_region
        // Predicated region
        $region45: #{lite_srnet_forward.1} parent=43 // pred_check
          %p331 = pneg %p44
        $region46: #{lite_srnet_forward.1} parent=43 // pred_check_branch
          %333 = sbr.rel (%p331) target = $region48
        $region47: #{lite_srnet_forward.1} parent=43 // pred_region
          %s334 = sand.u32 %s34, 1
          %s335 = scalar_lea.sflag [#allocation5], %s334
          %s336 = sand.u32 %s34, 1
          %s337 = smul.addr %s336, 256
          %s338 = scalar_lea.vmem [#allocation4], %s337
          %s340 = ssub.s32 4096, 4096
          %341 = vsyncadd %s335, %s340
          %s342 = smul.addr %s24, 32
          %s343 = smul.addr %s342, 128
          %s344 = scalar_lea.hbm %s0, %s343
          %s345 = sshll.u32 %s338, 4
          %s346 = int_to_ptr.vmem [resolvable:$true] %s345
          %351 = dma.hbm_to_vmem [thread:$0]  %s344, 4096, %s346, %s335, 128, 128, 8
        $region48: #{lite_srnet_forward.1} parent=43 // pred_fallthru
          _
      $region44: #{lite_srnet_forward.1} parent=5 // pred_fallthru
        _
      %p352 = scmp.le.s32.totalorder 1, %s24
      %p353 = scmp.lt.s32.totalorder %s24, 3
      %p354 = pnand %p352, %p353
      %p355 = pneg %p354
      // Predicated region
      $region49: #{lite_srnet_forward.1} parent=5 // pred_check
        _
      $region50: #{lite_srnet_forward.1} parent=5 // pred_check_branch
        %357 = sbr.rel (%p354) target = $region52
      $region51: #{lite_srnet_forward.1} parent=5 // pred_region
        %s358 = ssub.s32 %s24, 1
        %s359 = sand.u32 %s37, 1
        %s360 = scalar_lea.sflag [#allocation5], %s359
        %s361 = sand.u32 %s37, 1
        %s362 = smul.addr %s361, 256
        %s363 = scalar_lea.vmem [#allocation4], %s362
        // Predicated region
        $region53: #{lite_srnet_forward.1} parent=51 // pred_check
          %p364 = pneg %p50
        $region54: #{lite_srnet_forward.1} parent=51 // pred_check_branch
          %366 = sbr.rel (%p364) target = $region56
        $region55: #{lite_srnet_forward.1} parent=51 // pred_region
          %367 = dma.done %s360, 4096
        $region56: #{lite_srnet_forward.1} parent=51 // pred_fallthru
          _
        // Predicated region
        $region57: #{lite_srnet_forward.1} parent=51 // pred_check
          %p368 = pneg %p71
        $region58: #{lite_srnet_forward.1} parent=51 // pred_check_branch
          %370 = sbr.rel (%p368) target = $region60
        $region59: #{lite_srnet_forward.1} parent=51 // pred_region
          %371 = dma.done [#allocation8], 23040
        $region60: #{lite_srnet_forward.1} parent=51 // pred_fallthru
          _
        // Predicated region
        $region61: #{lite_srnet_forward.1} parent=51 // pred_check
          %p372 = pneg %p92
        $region62: #{lite_srnet_forward.1} parent=51 // pred_check_branch
          %374 = sbr.rel (%p372) target = $region64
        $region63: #{lite_srnet_forward.1} parent=51 // pred_region
          %375 = dma.done [#allocation8], 80
        $region64: #{lite_srnet_forward.1} parent=51 // pred_fallthru
          _
        // Predicated region
        $region65: #{lite_srnet_forward.1} parent=51 // pred_check
          %p376 = pneg %p113
        $region66: #{lite_srnet_forward.1} parent=51 // pred_check_branch
          %378 = sbr.rel (%p376) target = $region68
        $region67: #{lite_srnet_forward.1} parent=51 // pred_region
          %379 = dma.done [#allocation11], 80
        $region68: #{lite_srnet_forward.1} parent=51 // pred_fallthru
          _
        // Predicated region
        $region69: #{lite_srnet_forward.1} parent=51 // pred_check
          %p380 = pneg %p134
        $region70: #{lite_srnet_forward.1} parent=51 // pred_check_branch
          %382 = sbr.rel (%p380) target = $region72
        $region71: #{lite_srnet_forward.1} parent=51 // pred_region
          %383 = dma.done [#allocation11], 4608
        $region72: #{lite_srnet_forward.1} parent=51 // pred_fallthru
          _
        // Predicated region
        $region73: #{lite_srnet_forward.1} parent=51 // pred_check
          %p384 = pneg %p155
        $region74: #{lite_srnet_forward.1} parent=51 // pred_check_branch
          %386 = sbr.rel (%p384) target = $region76
        $region75: #{lite_srnet_forward.1} parent=51 // pred_region
          %387 = dma.done [#allocation14], 16
        $region76: #{lite_srnet_forward.1} parent=51 // pred_fallthru
          _
        // Predicated region
        $region77: #{lite_srnet_forward.1} parent=51 // pred_check
          %p388 = pneg %p176
        $region78: #{lite_srnet_forward.1} parent=51 // pred_check_branch
          %390 = sbr.rel (%p388) target = $region80
        $region79: #{lite_srnet_forward.1} parent=51 // pred_region
          %391 = dma.done [#allocation14], 4096
        $region80: #{lite_srnet_forward.1} parent=51 // pred_fallthru
          _
        // Predicated region
        $region81: #{lite_srnet_forward.1} parent=51 // pred_check
          %p392 = pneg %p197
        $region82: #{lite_srnet_forward.1} parent=51 // pred_check_branch
          %394 = sbr.rel (%p392) target = $region84
        $region83: #{lite_srnet_forward.1} parent=51 // pred_region
          %395 = dma.done [#allocation17], 4096
        $region84: #{lite_srnet_forward.1} parent=51 // pred_fallthru
          _
        %s396 = sand.u32 %s37, 1
        %s397 = scalar_lea.sflag [#allocation5], %s396
        %s398 = sand.u32 %s37, 1
        %s399 = smul.addr %s398, 256
        %s400 = scalar_lea.vmem [#allocation4], %s399
        %p401 = pneg %p50
        %p402 = pneg %p47
        %p403 = pneg %p71
        %p404 = pneg %p68
        %p405 = pneg %p92
        %p406 = pneg %p89
        %p407 = pneg %p113
        %p408 = pneg %p110
        %p409 = pneg %p134
        %p410 = pneg %p131
        %p411 = pneg %p155
        %p412 = pneg %p152
        %p413 = pneg %p176
        %p414 = pneg %p173
        %p415 = pneg %p197
        %p416 = pneg %p194
        %p417 = pneg %p223
        %p418 = pneg %p220
        %s419 = sand.u32 %s210, 1
        %s420 = scalar_lea.sflag [#allocation6], %s419
        %s421 = sand.u32 %s210, 1
        %s422 = smul.addr %s421, 32
        %s423 = scalar_lea.vmem [#allocation18], %s422
        %vm424 = vcmask 261120
        %425 = vst.msk [vmem:[#allocation2] sm:$0xff] %vm424, 0.0
        %426 = vst.msk [vmem:[#allocation2 + $0x8] sm:$0xff] %vm424, 0.0
        %427 = vst.msk [vmem:[#allocation2 + $0x10] sm:$0xff] %vm424, 0.0
        %428 = vst.msk [vmem:[#allocation2 + $0x18] sm:$0xff] %vm424, 0.0
        %429 = vst.msk [vmem:[#allocation2 + $0x20] sm:$0xff] %vm424, 0.0
        %430 = vst.msk [vmem:[#allocation2 + $0x28] sm:$0xff] %vm424, 0.0
        %431 = vst.msk [vmem:[#allocation2 + $0x30] sm:$0xff] %vm424, 0.0
        %432 = vst.msk [vmem:[#allocation2 + $0x38] sm:$0xff] %vm424, 0.0
        %433 = vst.msk [vmem:[#allocation2 + $0x40] sm:$0xff] %vm424, 0.0
        %434 = vst.msk [vmem:[#allocation2 + $0x48] sm:$0xff] %vm424, 0.0
        %435 = vst.msk [vmem:[#allocation2 + $0x50] sm:$0xff] %vm424, 0.0
        %436 = vst.msk [vmem:[#allocation2 + $0x58] sm:$0xff] %vm424, 0.0
        %437 = vst.msk [vmem:[#allocation2 + $0x60] sm:$0xff] %vm424, 0.0
        %438 = vst.msk [vmem:[#allocation2 + $0x68] sm:$0xff] %vm424, 0.0
        %439 = vst.msk [vmem:[#allocation2 + $0x70] sm:$0xff] %vm424, 0.0
        %440 = vst.msk [vmem:[#allocation2 + $0x78] sm:$0xff] %vm424, 0.0
        %441 = vst.msk [vmem:[#allocation2 + $0x80] sm:$0xff] %vm424, 0.0
        %442 = vst.msk [vmem:[#allocation2 + $0x88] sm:$0xff] %vm424, 0.0
        %443 = vst.msk [vmem:[#allocation2 + $0x90] sm:$0xff] %vm424, 0.0
        %444 = vst.msk [vmem:[#allocation2 + $0x98] sm:$0xff] %vm424, 0.0
        %445 = vst.msk [vmem:[#allocation2 + $0xa0] sm:$0xff] %vm424, 0.0
        %446 = vst.msk [vmem:[#allocation2 + $0xa8] sm:$0xff] %vm424, 0.0
        %447 = vst.msk [vmem:[#allocation2 + $0xb0] sm:$0xff] %vm424, 0.0
        %448 = vst.msk [vmem:[#allocation2 + $0xb8] sm:$0xff] %vm424, 0.0
        %449 = vst.msk [vmem:[#allocation2 + $0xc0] sm:$0xff] %vm424, 0.0
        %450 = vst.msk [vmem:[#allocation2 + $0xc8] sm:$0xff] %vm424, 0.0
        %451 = vst.msk [vmem:[#allocation2 + $0xd0] sm:$0xff] %vm424, 0.0
        %452 = vst.msk [vmem:[#allocation2 + $0xd8] sm:$0xff] %vm424, 0.0
        %453 = vst.msk [vmem:[#allocation2 + $0xe0] sm:$0xff] %vm424, 0.0
        %454 = vst.msk [vmem:[#allocation2 + $0xe8] sm:$0xff] %vm424, 0.0
        %455 = vst.msk [vmem:[#allocation2 + $0xf0] sm:$0xff] %vm424, 0.0
        %456 = vst.msk [vmem:[#allocation2 + $0xf8] sm:$0xff] %vm424, 0.0
        %457 = vst.msk [vmem:[#allocation2 + $0x100] sm:$0xff] %vm424, 0.0
        %458 = vst.msk [vmem:[#allocation2 + $0x108] sm:$0xff] %vm424, 0.0
        %459 = vst.msk [vmem:[#allocation2 + $0x110] sm:$0xff] %vm424, 0.0
        %460 = vst.msk [vmem:[#allocation2 + $0x118] sm:$0xff] %vm424, 0.0
        %461 = vst.msk [vmem:[#allocation2 + $0x120] sm:$0xff] %vm424, 0.0
        %vm462 = vcmask 253952
        %463 = vst.msk [vmem:[#allocation2 + $0x128] sm:$0x1] %vm462, 0.0
        %v464 = vld [vmem:[%s363] sm:$0xff]
        %v465 = vld [vmem:[%s363 + $0x8] sm:$0xff]
        %v466 = vld [vmem:[%s363 + $0x10] sm:$0xff]
        %v467 = vld [vmem:[%s363 + $0x18] sm:$0xff]
        %v468 = vld [vmem:[%s363 + $0x20] sm:$0xff]
        %v469 = vld [vmem:[%s363 + $0x28] sm:$0xff]
        %v470 = vld [vmem:[%s363 + $0x30] sm:$0xff]
        %v471 = vld [vmem:[%s363 + $0x38] sm:$0xff]
        %v472 = vld [vmem:[%s363 + $0x40] sm:$0xff]
        %v473 = vld [vmem:[%s363 + $0x48] sm:$0xff]
        %v474 = vld [vmem:[%s363 + $0x50] sm:$0xff]
        %v475 = vld [vmem:[%s363 + $0x58] sm:$0xff]
        %v476 = vld [vmem:[%s363 + $0x60] sm:$0xff]
        %v477 = vld [vmem:[%s363 + $0x68] sm:$0xff]
        %v478 = vld [vmem:[%s363 + $0x70] sm:$0xff]
        %v479 = vld [vmem:[%s363 + $0x78] sm:$0xff]
        %v480 = vld [vmem:[%s363 + $0x80] sm:$0xff]
        %v481 = vld [vmem:[%s363 + $0x88] sm:$0xff]
        %v482 = vld [vmem:[%s363 + $0x90] sm:$0xff]
        %v483 = vld [vmem:[%s363 + $0x98] sm:$0xff]
        %v484 = vld [vmem:[%s363 + $0xa0] sm:$0xff]
        %v485 = vld [vmem:[%s363 + $0xa8] sm:$0xff]
        %v486 = vld [vmem:[%s363 + $0xb0] sm:$0xff]
        %v487 = vld [vmem:[%s363 + $0xb8] sm:$0xff]
        %v488 = vld [vmem:[%s363 + $0xc0] sm:$0xff]
        %v489 = vld [vmem:[%s363 + $0xc8] sm:$0xff]
        %v490 = vld [vmem:[%s363 + $0xd0] sm:$0xff]
        %v491 = vld [vmem:[%s363 + $0xd8] sm:$0xff]
        %v492 = vld [vmem:[%s363 + $0xe0] sm:$0xff]
        %v493 = vld [vmem:[%s363 + $0xe8] sm:$0xff]
        %v494 = vld [vmem:[%s363 + $0xf0] sm:$0xff]
        %v495 = vld [vmem:[%s363 + $0xf8] sm:$0xff]
        %vm496 = vcmask 23552
        %497 = vst.msk [vmem:[#allocation2 + $0x18] sm:$0xff] %vm496, %v464
        %498 = vst.msk [vmem:[#allocation2 + $0x20] sm:$0xff] %vm496, %v465
        %499 = vst.msk [vmem:[#allocation2 + $0x28] sm:$0xff] %vm496, %v466
        %500 = vst.msk [vmem:[#allocation2 + $0x30] sm:$0xff] %vm496, %v467
        %501 = vst.msk [vmem:[#allocation2 + $0x38] sm:$0xff] %vm496, %v468
        %502 = vst.msk [vmem:[#allocation2 + $0x40] sm:$0xff] %vm496, %v469
        %503 = vst.msk [vmem:[#allocation2 + $0x48] sm:$0xff] %vm496, %v470
        %504 = vst.msk [vmem:[#allocation2 + $0x50] sm:$0xff] %vm496, %v471
        %505 = vst.msk [vmem:[#allocation2 + $0x58] sm:$0xff] %vm496, %v472
        %506 = vst.msk [vmem:[#allocation2 + $0x60] sm:$0xff] %vm496, %v473
        %507 = vst.msk [vmem:[#allocation2 + $0x68] sm:$0xff] %vm496, %v474
        %508 = vst.msk [vmem:[#allocation2 + $0x70] sm:$0xff] %vm496, %v475
        %509 = vst.msk [vmem:[#allocation2 + $0x78] sm:$0xff] %vm496, %v476
        %510 = vst.msk [vmem:[#allocation2 + $0x80] sm:$0xff] %vm496, %v477
        %511 = vst.msk [vmem:[#allocation2 + $0x88] sm:$0xff] %vm496, %v478
        %512 = vst.msk [vmem:[#allocation2 + $0x90] sm:$0xff] %vm496, %v479
        %513 = vst.msk [vmem:[#allocation2 + $0x98] sm:$0xff] %vm496, %v480
        %514 = vst.msk [vmem:[#allocation2 + $0xa0] sm:$0xff] %vm496, %v481
        %515 = vst.msk [vmem:[#allocation2 + $0xa8] sm:$0xff] %vm496, %v482
        %516 = vst.msk [vmem:[#allocation2 + $0xb0] sm:$0xff] %vm496, %v483
        %517 = vst.msk [vmem:[#allocation2 + $0xb8] sm:$0xff] %vm496, %v484
        %518 = vst.msk [vmem:[#allocation2 + $0xc0] sm:$0xff] %vm496, %v485
        %519 = vst.msk [vmem:[#allocation2 + $0xc8] sm:$0xff] %vm496, %v486
        %520 = vst.msk [vmem:[#allocation2 + $0xd0] sm:$0xff] %vm496, %v487
        %521 = vst.msk [vmem:[#allocation2 + $0xd8] sm:$0xff] %vm496, %v488
        %522 = vst.msk [vmem:[#allocation2 + $0xe0] sm:$0xff] %vm496, %v489
        %523 = vst.msk [vmem:[#allocation2 + $0xe8] sm:$0xff] %vm496, %v490
        %524 = vst.msk [vmem:[#allocation2 + $0xf0] sm:$0xff] %vm496, %v491
        %525 = vst.msk [vmem:[#allocation2 + $0xf8] sm:$0xff] %vm496, %v492
        %526 = vst.msk [vmem:[#allocation2 + $0x100] sm:$0xff] %vm496, %v493
        %527 = vst.msk [vmem:[#allocation2 + $0x108] sm:$0xff] %vm496, %v494
        %528 = vst.msk [vmem:[#allocation2 + $0x110] sm:$0xff] %vm496, %v495
        %v529 = vld [vmem:[#allocation15] sm:$0xff]
        %v530 = vld [vmem:[#allocation15 + $0x8] sm:$0xff]
        %v531 = vld [vmem:[#allocation15 + $0x10] sm:$0xff]
        %v532 = vld [vmem:[#allocation15 + $0x18] sm:$0xff]
        %v533 = vld [vmem:[#allocation15 + $0x20] sm:$0xff]
        %v534 = vld [vmem:[#allocation15 + $0x28] sm:$0xff]
        %v535 = vld [vmem:[#allocation15 + $0x30] sm:$0xff]
        %v536 = vld [vmem:[#allocation15 + $0x38] sm:$0xff]
        %v537 = vld [vmem:[#allocation15 + $0x40] sm:$0xff]
        %v538 = vld [vmem:[#allocation15 + $0x48] sm:$0xff]
        %v539 = vld [vmem:[#allocation15 + $0x50] sm:$0xff]
        %v540 = vld [vmem:[#allocation15 + $0x58] sm:$0xff]
        %v541 = vld [vmem:[#allocation15 + $0x60] sm:$0xff]
        %v542 = vld [vmem:[#allocation15 + $0x68] sm:$0xff]
        %v543 = vld [vmem:[#allocation15 + $0x70] sm:$0xff]
        %v544 = vld [vmem:[#allocation15 + $0x78] sm:$0xff]
        %v545 = vld [vmem:[#allocation15 + $0x80] sm:$0xff]
        %v546 = vld [vmem:[#allocation15 + $0x88] sm:$0xff]
        %v547 = vld [vmem:[#allocation15 + $0x90] sm:$0xff]
        %v548 = vld [vmem:[#allocation15 + $0x98] sm:$0xff]
        %v549 = vld [vmem:[#allocation15 + $0xa0] sm:$0xff]
        %v550 = vld [vmem:[#allocation15 + $0xa8] sm:$0xff]
        %v551 = vld [vmem:[#allocation15 + $0xb0] sm:$0xff]
        %v552 = vld [vmem:[#allocation15 + $0xb8] sm:$0xff]
        %v553 = vld [vmem:[#allocation15 + $0xc0] sm:$0xff]
        %v554 = vld [vmem:[#allocation15 + $0xc8] sm:$0xff]
        %v555 = vld [vmem:[#allocation15 + $0xd0] sm:$0xff]
        %v556 = vld [vmem:[#allocation15 + $0xd8] sm:$0xff]
        %v557 = vld [vmem:[#allocation15 + $0xe0] sm:$0xff]
        %v558 = vld [vmem:[#allocation15 + $0xe8] sm:$0xff]
        %v559 = vld [vmem:[#allocation15 + $0xf0] sm:$0xff]
        %v560 = vld [vmem:[#allocation15 + $0xf8] sm:$0xff]
        %v561 = vld [vmem:[#allocation16] sm:$0xff]
        %v562 = vld [vmem:[#allocation16 + $0x8] sm:$0xff]
        %v563 = vld [vmem:[#allocation16 + $0x10] sm:$0xff]
        %v564 = vld [vmem:[#allocation16 + $0x18] sm:$0xff]
        %v565 = vld [vmem:[#allocation16 + $0x20] sm:$0xff]
        %v566 = vld [vmem:[#allocation16 + $0x28] sm:$0xff]
        %v567 = vld [vmem:[#allocation16 + $0x30] sm:$0xff]
        %v568 = vld [vmem:[#allocation16 + $0x38] sm:$0xff]
        %v569 = vld [vmem:[#allocation16 + $0x40] sm:$0xff]
        %v570 = vld [vmem:[#allocation16 + $0x48] sm:$0xff]
        %v571 = vld [vmem:[#allocation16 + $0x50] sm:$0xff]
        %v572 = vld [vmem:[#allocation16 + $0x58] sm:$0xff]
        %v573 = vld [vmem:[#allocation16 + $0x60] sm:$0xff]
        %v574 = vld [vmem:[#allocation16 + $0x68] sm:$0xff]
        %v575 = vld [vmem:[#allocation16 + $0x70] sm:$0xff]
        %v576 = vld [vmem:[#allocation16 + $0x78] sm:$0xff]
        %v577 = vld [vmem:[#allocation16 + $0x80] sm:$0xff]
        %v578 = vld [vmem:[#allocation16 + $0x88] sm:$0xff]
        %v579 = vld [vmem:[#allocation16 + $0x90] sm:$0xff]
        %v580 = vld [vmem:[#allocation16 + $0x98] sm:$0xff]
        %v581 = vld [vmem:[#allocation16 + $0xa0] sm:$0xff]
        %v582 = vld [vmem:[#allocation16 + $0xa8] sm:$0xff]
        %v583 = vld [vmem:[#allocation16 + $0xb0] sm:$0xff]
        %v584 = vld [vmem:[#allocation16 + $0xb8] sm:$0xff]
        %v585 = vld [vmem:[#allocation16 + $0xc0] sm:$0xff]
        %v586 = vld [vmem:[#allocation16 + $0xc8] sm:$0xff]
        %v587 = vld [vmem:[#allocation16 + $0xd0] sm:$0xff]
        %v588 = vld [vmem:[#allocation16 + $0xd8] sm:$0xff]
        %v589 = vld [vmem:[#allocation16 + $0xe0] sm:$0xff]
        %v590 = vld [vmem:[#allocation16 + $0xe8] sm:$0xff]
        %v591 = vld [vmem:[#allocation16 + $0xf0] sm:$0xff]
        %v592 = vld [vmem:[#allocation16 + $0xf8] sm:$0xff]
        loop: start=0, step=1, limit=5
        $region85: #{lite_srnet_forward.1} parent=51 // loop_pre_header
          _
        $region86: #{lite_srnet_forward.1} parent=51 // loop_header
          %s594 = sphi 0, %s598
          %p595 = scmp.ge.s32.totalorder %s594, 5
        $region87: #{lite_srnet_forward.1} parent=51 // loop_header_branch
          %597 = sbr.rel (%p595) target = $region91
        $region88: #{lite_srnet_forward.1} parent=51 // loop_body
          %v599 = vld [vmem:[#allocation2 + $0x7] sm:$0xff]
          %v600 = vld [vmem:[#allocation2 + $0xf] sm:$0xff]
          %v601 = vld [vmem:[#allocation2 + $0x17] sm:$0xff]
          %v602 = vld [vmem:[#allocation2 + $0x1f] sm:$0xff]
          %v603 = vld [vmem:[#allocation2 + $0x27] sm:$0xff]
          %v604 = vld [vmem:[#allocation2 + $0x2f] sm:$0xff]
          %v605 = vld [vmem:[#allocation2 + $0x37] sm:$0xff]
          %v606 = vld [vmem:[#allocation2 + $0x3f] sm:$0xff]
          %v607 = vld [vmem:[#allocation2 + $0x47] sm:$0xff]
          %v608 = vld [vmem:[#allocation2 + $0x4f] sm:$0xff]
          %v609 = vld [vmem:[#allocation2 + $0x57] sm:$0xff]
          %v610 = vld [vmem:[#allocation2 + $0x5f] sm:$0xff]
          %v611 = vld [vmem:[#allocation2 + $0x67] sm:$0xff]
          %v612 = vld [vmem:[#allocation2 + $0x6f] sm:$0xff]
          %v613 = vld [vmem:[#allocation2 + $0x77] sm:$0xff]
          %v614 = vld [vmem:[#allocation2 + $0x7f] sm:$0xff]
          %v615 = vld [vmem:[#allocation2 + $0x87] sm:$0xff]
          %v616 = vld [vmem:[#allocation2 + $0x8f] sm:$0xff]
          %v617 = vld [vmem:[#allocation2 + $0x97] sm:$0xff]
          %v618 = vld [vmem:[#allocation2 + $0x9f] sm:$0xff]
          %v619 = vld [vmem:[#allocation2 + $0xa7] sm:$0xff]
          %v620 = vld [vmem:[#allocation2 + $0xaf] sm:$0xff]
          %v621 = vld [vmem:[#allocation2 + $0xb7] sm:$0xff]
          %v622 = vld [vmem:[#allocation2 + $0xbf] sm:$0xff]
          %v623 = vld [vmem:[#allocation2 + $0xc7] sm:$0xff]
          %v624 = vld [vmem:[#allocation2 + $0xcf] sm:$0xff]
          %v625 = vld [vmem:[#allocation2 + $0xd7] sm:$0xff]
          %v626 = vld [vmem:[#allocation2 + $0xdf] sm:$0xff]
          %v627 = vld [vmem:[#allocation2 + $0xe7] sm:$0xff]
          %v628 = vld [vmem:[#allocation2 + $0xef] sm:$0xff]
          %v629 = vld [vmem:[#allocation2 + $0xf7] sm:$0xff]
          %v630 = vld [vmem:[#allocation2 + $0xff] sm:$0xff]
          %632 = vset.pattern.permute.xlu0 0
          %633 = vperm.xlu0 %632, %v529
          %v634 = vpop.permute.xlu0 %633
          %637 = vset.pattern.permute.xlu0 0
          %638 = vperm.xlu0 %637, %v530
          %v639 = vpop.permute.xlu0 %638
          %642 = vset.pattern.permute.xlu0 0
          %643 = vperm.xlu0 %642, %v531
          %v644 = vpop.permute.xlu0 %643
          %647 = vset.pattern.permute.xlu0 0
          %648 = vperm.xlu0 %647, %v532
          %v649 = vpop.permute.xlu0 %648
          %652 = vset.pattern.permute.xlu0 0
          %653 = vperm.xlu0 %652, %v533
          %v654 = vpop.permute.xlu0 %653
          %657 = vset.pattern.permute.xlu0 0
          %658 = vperm.xlu0 %657, %v534
          %v659 = vpop.permute.xlu0 %658
          %662 = vset.pattern.permute.xlu0 0
          %663 = vperm.xlu0 %662, %v535
          %v664 = vpop.permute.xlu0 %663
          %667 = vset.pattern.permute.xlu0 0
          %668 = vperm.xlu0 %667, %v536
          %v669 = vpop.permute.xlu0 %668
          %672 = vset.pattern.permute.xlu0 0
          %673 = vperm.xlu0 %672, %v537
          %v674 = vpop.permute.xlu0 %673
          %677 = vset.pattern.permute.xlu0 0
          %678 = vperm.xlu0 %677, %v538
          %v679 = vpop.permute.xlu0 %678
          %682 = vset.pattern.permute.xlu0 0
          %683 = vperm.xlu0 %682, %v539
          %v684 = vpop.permute.xlu0 %683
          %687 = vset.pattern.permute.xlu0 0
          %688 = vperm.xlu0 %687, %v540
          %v689 = vpop.permute.xlu0 %688
          %692 = vset.pattern.permute.xlu0 0
          %693 = vperm.xlu0 %692, %v541
          %v694 = vpop.permute.xlu0 %693
          %697 = vset.pattern.permute.xlu0 0
          %698 = vperm.xlu0 %697, %v542
          %v699 = vpop.permute.xlu0 %698
          %702 = vset.pattern.permute.xlu0 0
          %703 = vperm.xlu0 %702, %v543
          %v704 = vpop.permute.xlu0 %703
          %707 = vset.pattern.permute.xlu0 0
          %708 = vperm.xlu0 %707, %v544
          %v709 = vpop.permute.xlu0 %708
          %712 = vset.pattern.permute.xlu0 0
          %713 = vperm.xlu0 %712, %v545
          %v714 = vpop.permute.xlu0 %713
          %717 = vset.pattern.permute.xlu0 0
          %718 = vperm.xlu0 %717, %v546
          %v719 = vpop.permute.xlu0 %718
          %722 = vset.pattern.permute.xlu0 0
          %723 = vperm.xlu0 %722, %v547
          %v724 = vpop.permute.xlu0 %723
          %727 = vset.pattern.permute.xlu0 0
          %728 = vperm.xlu0 %727, %v548
          %v729 = vpop.permute.xlu0 %728
          %732 = vset.pattern.permute.xlu0 0
          %733 = vperm.xlu0 %732, %v549
          %v734 = vpop.permute.xlu0 %733
          %737 = vset.pattern.permute.xlu0 0
          %738 = vperm.xlu0 %737, %v550
          %v739 = vpop.permute.xlu0 %738
          %742 = vset.pattern.permute.xlu0 0
          %743 = vperm.xlu0 %742, %v551
          %v744 = vpop.permute.xlu0 %743
          %747 = vset.pattern.permute.xlu0 0
          %748 = vperm.xlu0 %747, %v552
          %v749 = vpop.permute.xlu0 %748
          %752 = vset.pattern.permute.xlu0 0
          %753 = vperm.xlu0 %752, %v553
          %v754 = vpop.permute.xlu0 %753
          %757 = vset.pattern.permute.xlu0 0
          %758 = vperm.xlu0 %757, %v554
          %v759 = vpop.permute.xlu0 %758
          %762 = vset.pattern.permute.xlu0 0
          %763 = vperm.xlu0 %762, %v555
          %v764 = vpop.permute.xlu0 %763
          %767 = vset.pattern.permute.xlu0 0
          %768 = vperm.xlu0 %767, %v556
          %v769 = vpop.permute.xlu0 %768
          %772 = vset.pattern.permute.xlu0 0
          %773 = vperm.xlu0 %772, %v557
          %v774 = vpop.permute.xlu0 %773
          %777 = vset.pattern.permute.xlu0 0
          %778 = vperm.xlu0 %777, %v558
          %v779 = vpop.permute.xlu0 %778
          %782 = vset.pattern.permute.xlu0 0
          %783 = vperm.xlu0 %782, %v559
          %v784 = vpop.permute.xlu0 %783
          %787 = vset.pattern.permute.xlu0 0
          %788 = vperm.xlu0 %787, %v560
          %v789 = vpop.permute.xlu0 %788
          %v791 = vmul.f32 %v599, %v634
          %v792 = vmul.f32 %v600, %v639
          %v793 = vmul.f32 %v601, %v644
          %v794 = vmul.f32 %v602, %v649
          %v795 = vmul.f32 %v603, %v654
          %v796 = vmul.f32 %v604, %v659
          %v797 = vmul.f32 %v605, %v664
          %v798 = vmul.f32 %v606, %v669
          %v799 = vmul.f32 %v607, %v674
          %v800 = vmul.f32 %v608, %v679
          %v801 = vmul.f32 %v609, %v684
          %v802 = vmul.f32 %v610, %v689
          %v803 = vmul.f32 %v611, %v694
          %v804 = vmul.f32 %v612, %v699
          %v805 = vmul.f32 %v613, %v704
          %v806 = vmul.f32 %v614, %v709
          %v807 = vmul.f32 %v615, %v714
          %v808 = vmul.f32 %v616, %v719
          %v809 = vmul.f32 %v617, %v724
          %v810 = vmul.f32 %v618, %v729
          %v811 = vmul.f32 %v619, %v734
          %v812 = vmul.f32 %v620, %v739
          %v813 = vmul.f32 %v621, %v744
          %v814 = vmul.f32 %v622, %v749
          %v815 = vmul.f32 %v623, %v754
          %v816 = vmul.f32 %v624, %v759
          %v817 = vmul.f32 %v625, %v764
          %v818 = vmul.f32 %v626, %v769
          %v819 = vmul.f32 %v627, %v774
          %v820 = vmul.f32 %v628, %v779
          %v821 = vmul.f32 %v629, %v784
          %v822 = vmul.f32 %v630, %v789
          %823 = vst.msk [vmem:[#allocation3] sm:$0xff] %vm424, %v791
          %824 = vst.msk [vmem:[#allocation3 + $0x18] sm:$0xff] %vm424, %v792
          %825 = vst.msk [vmem:[#allocation3 + $0x30] sm:$0xff] %vm424, %v793
          %826 = vst.msk [vmem:[#allocation3 + $0x48] sm:$0xff] %vm424, %v794
          %827 = vst.msk [vmem:[#allocation3 + $0x60] sm:$0xff] %vm424, %v795
          %828 = vst.msk [vmem:[#allocation3 + $0x78] sm:$0xff] %vm424, %v796
          %829 = vst.msk [vmem:[#allocation3 + $0x90] sm:$0xff] %vm424, %v797
          %830 = vst.msk [vmem:[#allocation3 + $0xa8] sm:$0xff] %vm424, %v798
          %831 = vst.msk [vmem:[#allocation3 + $0xc0] sm:$0xff] %vm424, %v799
          %832 = vst.msk [vmem:[#allocation3 + $0xd8] sm:$0xff] %vm424, %v800
          %833 = vst.msk [vmem:[#allocation3 + $0xf0] sm:$0xff] %vm424, %v801
          %834 = vst.msk [vmem:[#allocation3 + $0x108] sm:$0xff] %vm424, %v802
          %835 = vst.msk [vmem:[#allocation3 + $0x120] sm:$0xff] %vm424, %v803
          %836 = vst.msk [vmem:[#allocation3 + $0x138] sm:$0xff] %vm424, %v804
          %837 = vst.msk [vmem:[#allocation3 + $0x150] sm:$0xff] %vm424, %v805
          %838 = vst.msk [vmem:[#allocation3 + $0x168] sm:$0xff] %vm424, %v806
          %839 = vst.msk [vmem:[#allocation3 + $0x180] sm:$0xff] %vm424, %v807
          %840 = vst.msk [vmem:[#allocation3 + $0x198] sm:$0xff] %vm424, %v808
          %841 = vst.msk [vmem:[#allocation3 + $0x1b0] sm:$0xff] %vm424, %v809
          %842 = vst.msk [vmem:[#allocation3 + $0x1c8] sm:$0xff] %vm424, %v810
          %843 = vst.msk [vmem:[#allocation3 + $0x1e0] sm:$0xff] %vm424, %v811
          %844 = vst.msk [vmem:[#allocation3 + $0x1f8] sm:$0xff] %vm424, %v812
          %845 = vst.msk [vmem:[#allocation3 + $0x210] sm:$0xff] %vm424, %v813
          %846 = vst.msk [vmem:[#allocation3 + $0x228] sm:$0xff] %vm424, %v814
          %847 = vst.msk [vmem:[#allocation3 + $0x240] sm:$0xff] %vm424, %v815
          %848 = vst.msk [vmem:[#allocation3 + $0x258] sm:$0xff] %vm424, %v816
          %849 = vst.msk [vmem:[#allocation3 + $0x270] sm:$0xff] %vm424, %v817
          %850 = vst.msk [vmem:[#allocation3 + $0x288] sm:$0xff] %vm424, %v818
          %851 = vst.msk [vmem:[#allocation3 + $0x2a0] sm:$0xff] %vm424, %v819
          %852 = vst.msk [vmem:[#allocation3 + $0x2b8] sm:$0xff] %vm424, %v820
          %853 = vst.msk [vmem:[#allocation3 + $0x2d0] sm:$0xff] %vm424, %v821
          %854 = vst.msk [vmem:[#allocation3 + $0x2e8] sm:$0xff] %vm424, %v822
          %v855 = vld [vmem:[#allocation2 + $0x8] sm:$0xff]
          %v856 = vld [vmem:[#allocation2 + $0x10] sm:$0xff]
          %v857 = vld [vmem:[#allocation2 + $0x18] sm:$0xff]
          %v858 = vld [vmem:[#allocation2 + $0x20] sm:$0xff]
          %v859 = vld [vmem:[#allocation2 + $0x28] sm:$0xff]
          %v860 = vld [vmem:[#allocation2 + $0x30] sm:$0xff]
          %v861 = vld [vmem:[#allocation2 + $0x38] sm:$0xff]
          %v862 = vld [vmem:[#allocation2 + $0x40] sm:$0xff]
          %v863 = vld [vmem:[#allocation2 + $0x48] sm:$0xff]
          %v864 = vld [vmem:[#allocation2 + $0x50] sm:$0xff]
          %v865 = vld [vmem:[#allocation2 + $0x58] sm:$0xff]
          %v866 = vld [vmem:[#allocation2 + $0x60] sm:$0xff]
          %v867 = vld [vmem:[#allocation2 + $0x68] sm:$0xff]
          %v868 = vld [vmem:[#allocation2 + $0x70] sm:$0xff]
          %v869 = vld [vmem:[#allocation2 + $0x78] sm:$0xff]
          %v870 = vld [vmem:[#allocation2 + $0x80] sm:$0xff]
          %v871 = vld [vmem:[#allocation2 + $0x88] sm:$0xff]
          %v872 = vld [vmem:[#allocation2 + $0x90] sm:$0xff]
          %v873 = vld [vmem:[#allocation2 + $0x98] sm:$0xff]
          %v874 = vld [vmem:[#allocation2 + $0xa0] sm:$0xff]
          %v875 = vld [vmem:[#allocation2 + $0xa8] sm:$0xff]
          %v876 = vld [vmem:[#allocation2 + $0xb0] sm:$0xff]
          %v877 = vld [vmem:[#allocation2 + $0xb8] sm:$0xff]
          %v878 = vld [vmem:[#allocation2 + $0xc0] sm:$0xff]
          %v879 = vld [vmem:[#allocation2 + $0xc8] sm:$0xff]
          %v880 = vld [vmem:[#allocation2 + $0xd0] sm:$0xff]
          %v881 = vld [vmem:[#allocation2 + $0xd8] sm:$0xff]
          %v882 = vld [vmem:[#allocation2 + $0xe0] sm:$0xff]
          %v883 = vld [vmem:[#allocation2 + $0xe8] sm:$0xff]
          %v884 = vld [vmem:[#allocation2 + $0xf0] sm:$0xff]
          %v885 = vld [vmem:[#allocation2 + $0xf8] sm:$0xff]
          %v886 = vld [vmem:[#allocation2 + $0x100] sm:$0xff]
          %919 = vrot.lane.b32.xlu0 %v855, 32
          %v920 = vpop.permute.xlu0 %919
          %921 = vrot.lane.b32.xlu0 %v856, 32
          %v922 = vpop.permute.xlu0 %921
          %923 = vrot.lane.b32.xlu0 %v857, 32
          %v924 = vpop.permute.xlu0 %923
          %925 = vrot.lane.b32.xlu0 %v858, 32
          %v926 = vpop.permute.xlu0 %925
          %927 = vrot.lane.b32.xlu0 %v859, 32
          %v928 = vpop.permute.xlu0 %927
          %929 = vrot.lane.b32.xlu0 %v860, 32
          %v930 = vpop.permute.xlu0 %929
          %931 = vrot.lane.b32.xlu0 %v861, 32
          %v932 = vpop.permute.xlu0 %931
          %933 = vrot.lane.b32.xlu0 %v862, 32
          %v934 = vpop.permute.xlu0 %933
          %935 = vrot.lane.b32.xlu0 %v863, 32
          %v936 = vpop.permute.xlu0 %935
          %937 = vrot.lane.b32.xlu0 %v864, 32
          %v938 = vpop.permute.xlu0 %937
          %939 = vrot.lane.b32.xlu0 %v865, 32
          %v940 = vpop.permute.xlu0 %939
          %941 = vrot.lane.b32.xlu0 %v866, 32
          %v942 = vpop.permute.xlu0 %941
          %943 = vrot.lane.b32.xlu0 %v867, 32
          %v944 = vpop.permute.xlu0 %943
          %945 = vrot.lane.b32.xlu0 %v868, 32
          %v946 = vpop.permute.xlu0 %945
          %947 = vrot.lane.b32.xlu0 %v869, 32
          %v948 = vpop.permute.xlu0 %947
          %949 = vrot.lane.b32.xlu0 %v870, 32
          %v950 = vpop.permute.xlu0 %949
          %951 = vrot.lane.b32.xlu0 %v871, 32
          %v952 = vpop.permute.xlu0 %951
          %953 = vrot.lane.b32.xlu0 %v872, 32
          %v954 = vpop.permute.xlu0 %953
          %955 = vrot.lane.b32.xlu0 %v873, 32
          %v956 = vpop.permute.xlu0 %955
          %957 = vrot.lane.b32.xlu0 %v874, 32
          %v958 = vpop.permute.xlu0 %957
          %959 = vrot.lane.b32.xlu0 %v875, 32
          %v960 = vpop.permute.xlu0 %959
          %961 = vrot.lane.b32.xlu0 %v876, 32
          %v962 = vpop.permute.xlu0 %961
          %963 = vrot.lane.b32.xlu0 %v877, 32
          %v964 = vpop.permute.xlu0 %963
          %965 = vrot.lane.b32.xlu0 %v878, 32
          %v966 = vpop.permute.xlu0 %965
          %967 = vrot.lane.b32.xlu0 %v879, 32
          %v968 = vpop.permute.xlu0 %967
          %969 = vrot.lane.b32.xlu0 %v880, 32
          %v970 = vpop.permute.xlu0 %969
          %971 = vrot.lane.b32.xlu0 %v881, 32
          %v972 = vpop.permute.xlu0 %971
          %973 = vrot.lane.b32.xlu0 %v882, 32
          %v974 = vpop.permute.xlu0 %973
          %975 = vrot.lane.b32.xlu0 %v883, 32
          %v976 = vpop.permute.xlu0 %975
          %977 = vrot.lane.b32.xlu0 %v884, 32
          %v978 = vpop.permute.xlu0 %977
          %979 = vrot.lane.b32.xlu0 %v885, 32
          %v980 = vpop.permute.xlu0 %979
          %981 = vrot.lane.b32.xlu0 %v886, 32
          %v982 = vpop.permute.xlu0 %981
          %vm1015 = vcmask 523520
          %1016 = vst.msk [vmem:[#allocation3] sm:$0xff] %vm1015, %v920
          %1017 = vst.msk [vmem:[#allocation3 + $0x18] sm:$0xff] %vm1015, %v922
          %1018 = vst.msk [vmem:[#allocation3 + $0x30] sm:$0xff] %vm1015, %v924
          %1019 = vst.msk [vmem:[#allocation3 + $0x48] sm:$0xff] %vm1015, %v926
          %1020 = vst.msk [vmem:[#allocation3 + $0x60] sm:$0xff] %vm1015, %v928
          %1021 = vst.msk [vmem:[#allocation3 + $0x78] sm:$0xff] %vm1015, %v930
          %1022 = vst.msk [vmem:[#allocation3 + $0x90] sm:$0xff] %vm1015, %v932
          %1023 = vst.msk [vmem:[#allocation3 + $0xa8] sm:$0xff] %vm1015, %v934
          %1024 = vst.msk [vmem:[#allocation3 + $0xc0] sm:$0xff] %vm1015, %v936
          %1025 = vst.msk [vmem:[#allocation3 + $0xd8] sm:$0xff] %vm1015, %v938
          %1026 = vst.msk [vmem:[#allocation3 + $0xf0] sm:$0xff] %vm1015, %v940
          %1027 = vst.msk [vmem:[#allocation3 + $0x108] sm:$0xff] %vm1015, %v942
          %1028 = vst.msk [vmem:[#allocation3 + $0x120] sm:$0xff] %vm1015, %v944
          %1029 = vst.msk [vmem:[#allocation3 + $0x138] sm:$0xff] %vm1015, %v946
          %1030 = vst.msk [vmem:[#allocation3 + $0x150] sm:$0xff] %vm1015, %v948
          %1031 = vst.msk [vmem:[#allocation3 + $0x168] sm:$0xff] %vm1015, %v950
          %1032 = vst.msk [vmem:[#allocation3 + $0x180] sm:$0xff] %vm1015, %v952
          %1033 = vst.msk [vmem:[#allocation3 + $0x198] sm:$0xff] %vm1015, %v954
          %1034 = vst.msk [vmem:[#allocation3 + $0x1b0] sm:$0xff] %vm1015, %v956
          %1035 = vst.msk [vmem:[#allocation3 + $0x1c8] sm:$0xff] %vm1015, %v958
          %1036 = vst.msk [vmem:[#allocation3 + $0x1e0] sm:$0xff] %vm1015, %v960
          %1037 = vst.msk [vmem:[#allocation3 + $0x1f8] sm:$0xff] %vm1015, %v962
          %1038 = vst.msk [vmem:[#allocation3 + $0x210] sm:$0xff] %vm1015, %v964
          %1039 = vst.msk [vmem:[#allocation3 + $0x228] sm:$0xff] %vm1015, %v966
          %1040 = vst.msk [vmem:[#allocation3 + $0x240] sm:$0xff] %vm1015, %v968
          %1041 = vst.msk [vmem:[#allocation3 + $0x258] sm:$0xff] %vm1015, %v970
          %1042 = vst.msk [vmem:[#allocation3 + $0x270] sm:$0xff] %vm1015, %v972
          %1043 = vst.msk [vmem:[#allocation3 + $0x288] sm:$0xff] %vm1015, %v974
          %1044 = vst.msk [vmem:[#allocation3 + $0x2a0] sm:$0xff] %vm1015, %v976
          %1045 = vst.msk [vmem:[#allocation3 + $0x2b8] sm:$0xff] %vm1015, %v978
          %1046 = vst.msk [vmem:[#allocation3 + $0x2d0] sm:$0xff] %vm1015, %v980
          %1047 = vst.msk [vmem:[#allocation3 + $0x2e8] sm:$0xff] %vm1015, %v982
          %v1048 = vld [vmem:[#allocation2 + $0x9] sm:$0xff]
          %v1049 = vld [vmem:[#allocation2 + $0x11] sm:$0xff]
          %v1050 = vld [vmem:[#allocation2 + $0x19] sm:$0xff]
          %v1051 = vld [vmem:[#allocation2 + $0x21] sm:$0xff]
          %v1052 = vld [vmem:[#allocation2 + $0x29] sm:$0xff]
          %v1053 = vld [vmem:[#allocation2 + $0x31] sm:$0xff]
          %v1054 = vld [vmem:[#allocation2 + $0x39] sm:$0xff]
          %v1055 = vld [vmem:[#allocation2 + $0x41] sm:$0xff]
          %v1056 = vld [vmem:[#allocation2 + $0x49] sm:$0xff]
          %v1057 = vld [vmem:[#allocation2 + $0x51] sm:$0xff]
          %v1058 = vld [vmem:[#allocation2 + $0x59] sm:$0xff]
          %v1059 = vld [vmem:[#allocation2 + $0x61] sm:$0xff]
          %v1060 = vld [vmem:[#allocation2 + $0x69] sm:$0xff]
          %v1061 = vld [vmem:[#allocation2 + $0x71] sm:$0xff]
          %v1062 = vld [vmem:[#allocation2 + $0x79] sm:$0xff]
          %v1063 = vld [vmem:[#allocation2 + $0x81] sm:$0xff]
          %v1064 = vld [vmem:[#allocation2 + $0x89] sm:$0xff]
          %v1065 = vld [vmem:[#allocation2 + $0x91] sm:$0xff]
          %v1066 = vld [vmem:[#allocation2 + $0x99] sm:$0xff]
          %v1067 = vld [vmem:[#allocation2 + $0xa1] sm:$0xff]
          %v1068 = vld [vmem:[#allocation2 + $0xa9] sm:$0xff]
          %v1069 = vld [vmem:[#allocation2 + $0xb1] sm:$0xff]
          %v1070 = vld [vmem:[#allocation2 + $0xb9] sm:$0xff]
          %v1071 = vld [vmem:[#allocation2 + $0xc1] sm:$0xff]
          %v1072 = vld [vmem:[#allocation2 + $0xc9] sm:$0xff]
          %v1073 = vld [vmem:[#allocation2 + $0xd1] sm:$0xff]
          %v1074 = vld [vmem:[#allocation2 + $0xd9] sm:$0xff]
          %v1075 = vld [vmem:[#allocation2 + $0xe1] sm:$0xff]
          %v1076 = vld [vmem:[#allocation2 + $0xe9] sm:$0xff]
          %v1077 = vld [vmem:[#allocation2 + $0xf1] sm:$0xff]
          %v1078 = vld [vmem:[#allocation2 + $0xf9] sm:$0xff]
          %v1079 = vld [vmem:[#allocation2 + $0x101] sm:$0xff]
          %1081 = vset.pattern.permute.xlu0 0
          %1082 = vperm.xlu0 %1081, %v561
          %v1083 = vpop.permute.xlu0 %1082
          %1086 = vset.pattern.permute.xlu0 0
          %1087 = vperm.xlu0 %1086, %v562
          %v1088 = vpop.permute.xlu0 %1087
          %1091 = vset.pattern.permute.xlu0 0
          %1092 = vperm.xlu0 %1091, %v563
          %v1093 = vpop.permute.xlu0 %1092
          %1096 = vset.pattern.permute.xlu0 0
          %1097 = vperm.xlu0 %1096, %v564
          %v1098 = vpop.permute.xlu0 %1097
          %1101 = vset.pattern.permute.xlu0 0
          %1102 = vperm.xlu0 %1101, %v565
          %v1103 = vpop.permute.xlu0 %1102
          %1106 = vset.pattern.permute.xlu0 0
          %1107 = vperm.xlu0 %1106, %v566
          %v1108 = vpop.permute.xlu0 %1107
          %1111 = vset.pattern.permute.xlu0 0
          %1112 = vperm.xlu0 %1111, %v567
          %v1113 = vpop.permute.xlu0 %1112
          %1116 = vset.pattern.permute.xlu0 0
          %1117 = vperm.xlu0 %1116, %v568
          %v1118 = vpop.permute.xlu0 %1117
          %1121 = vset.pattern.permute.xlu0 0
          %1122 = vperm.xlu0 %1121, %v569
          %v1123 = vpop.permute.xlu0 %1122
          %1126 = vset.pattern.permute.xlu0 0
          %1127 = vperm.xlu0 %1126, %v570
          %v1128 = vpop.permute.xlu0 %1127
          %1131 = vset.pattern.permute.xlu0 0
          %1132 = vperm.xlu0 %1131, %v571
          %v1133 = vpop.permute.xlu0 %1132
          %1136 = vset.pattern.permute.xlu0 0
          %1137 = vperm.xlu0 %1136, %v572
          %v1138 = vpop.permute.xlu0 %1137
          %1141 = vset.pattern.permute.xlu0 0
          %1142 = vperm.xlu0 %1141, %v573
          %v1143 = vpop.permute.xlu0 %1142
          %1146 = vset.pattern.permute.xlu0 0
          %1147 = vperm.xlu0 %1146, %v574
          %v1148 = vpop.permute.xlu0 %1147
          %1151 = vset.pattern.permute.xlu0 0
          %1152 = vperm.xlu0 %1151, %v575
          %v1153 = vpop.permute.xlu0 %1152
          %1156 = vset.pattern.permute.xlu0 0
          %1157 = vperm.xlu0 %1156, %v576
          %v1158 = vpop.permute.xlu0 %1157
          %1161 = vset.pattern.permute.xlu0 0
          %1162 = vperm.xlu0 %1161, %v577
          %v1163 = vpop.permute.xlu0 %1162
          %1166 = vset.pattern.permute.xlu0 0
          %1167 = vperm.xlu0 %1166, %v578
          %v1168 = vpop.permute.xlu0 %1167
          %1171 = vset.pattern.permute.xlu0 0
          %1172 = vperm.xlu0 %1171, %v579
          %v1173 = vpop.permute.xlu0 %1172
          %1176 = vset.pattern.permute.xlu0 0
          %1177 = vperm.xlu0 %1176, %v580
          %v1178 = vpop.permute.xlu0 %1177
          %1181 = vset.pattern.permute.xlu0 0
          %1182 = vperm.xlu0 %1181, %v581
          %v1183 = vpop.permute.xlu0 %1182
          %1186 = vset.pattern.permute.xlu0 0
          %1187 = vperm.xlu0 %1186, %v582
          %v1188 = vpop.permute.xlu0 %1187
          %1191 = vset.pattern.permute.xlu0 0
          %1192 = vperm.xlu0 %1191, %v583
          %v1193 = vpop.permute.xlu0 %1192
          %1196 = vset.pattern.permute.xlu0 0
          %1197 = vperm.xlu0 %1196, %v584
          %v1198 = vpop.permute.xlu0 %1197
          %1201 = vset.pattern.permute.xlu0 0
          %1202 = vperm.xlu0 %1201, %v585
          %v1203 = vpop.permute.xlu0 %1202
          %1206 = vset.pattern.permute.xlu0 0
          %1207 = vperm.xlu0 %1206, %v586
          %v1208 = vpop.permute.xlu0 %1207
          %1211 = vset.pattern.permute.xlu0 0
          %1212 = vperm.xlu0 %1211, %v587
          %v1213 = vpop.permute.xlu0 %1212
          %1216 = vset.pattern.permute.xlu0 0
          %1217 = vperm.xlu0 %1216, %v588
          %v1218 = vpop.permute.xlu0 %1217
          %1221 = vset.pattern.permute.xlu0 0
          %1222 = vperm.xlu0 %1221, %v589
          %v1223 = vpop.permute.xlu0 %1222
          %1226 = vset.pattern.permute.xlu0 0
          %1227 = vperm.xlu0 %1226, %v590
          %v1228 = vpop.permute.xlu0 %1227
          %1231 = vset.pattern.permute.xlu0 0
          %1232 = vperm.xlu0 %1231, %v591
          %v1233 = vpop.permute.xlu0 %1232
          %1236 = vset.pattern.permute.xlu0 0
          %1237 = vperm.xlu0 %1236, %v592
          %v1238 = vpop.permute.xlu0 %1237
          %v1240 = vmul.f32 %v1048, %v1083
          %v1241 = vmul.f32 %v1049, %v1088
          %v1242 = vmul.f32 %v1050, %v1093
          %v1243 = vmul.f32 %v1051, %v1098
          %v1244 = vmul.f32 %v1052, %v1103
          %v1245 = vmul.f32 %v1053, %v1108
          %v1246 = vmul.f32 %v1054, %v1113
          %v1247 = vmul.f32 %v1055, %v1118
          %v1248 = vmul.f32 %v1056, %v1123
          %v1249 = vmul.f32 %v1057, %v1128
          %v1250 = vmul.f32 %v1058, %v1133
          %v1251 = vmul.f32 %v1059, %v1138
          %v1252 = vmul.f32 %v1060, %v1143
          %v1253 = vmul.f32 %v1061, %v1148
          %v1254 = vmul.f32 %v1062, %v1153
          %v1255 = vmul.f32 %v1063, %v1158
          %v1256 = vmul.f32 %v1064, %v1163
          %v1257 = vmul.f32 %v1065, %v1168
          %v1258 = vmul.f32 %v1066, %v1173
          %v1259 = vmul.f32 %v1067, %v1178
          %v1260 = vmul.f32 %v1068, %v1183
          %v1261 = vmul.f32 %v1069, %v1188
          %v1262 = vmul.f32 %v1070, %v1193
          %v1263 = vmul.f32 %v1071, %v1198
          %v1264 = vmul.f32 %v1072, %v1203
          %v1265 = vmul.f32 %v1073, %v1208
          %v1266 = vmul.f32 %v1074, %v1213
          %v1267 = vmul.f32 %v1075, %v1218
          %v1268 = vmul.f32 %v1076, %v1223
          %v1269 = vmul.f32 %v1077, %v1228
          %v1270 = vmul.f32 %v1078, %v1233
          %v1271 = vmul.f32 %v1079, %v1238
          %1304 = vrot.lane.b32.xlu0 %v1240, 64
          %v1305 = vpop.permute.xlu0 %1304
          %1306 = vrot.lane.b32.xlu0 %v1241, 64
          %v1307 = vpop.permute.xlu0 %1306
          %1308 = vrot.lane.b32.xlu0 %v1242, 64
          %v1309 = vpop.permute.xlu0 %1308
          %1310 = vrot.lane.b32.xlu0 %v1243, 64
          %v1311 = vpop.permute.xlu0 %1310
          %1312 = vrot.lane.b32.xlu0 %v1244, 64
          %v1313 = vpop.permute.xlu0 %1312
          %1314 = vrot.lane.b32.xlu0 %v1245, 64
          %v1315 = vpop.permute.xlu0 %1314
          %1316 = vrot.lane.b32.xlu0 %v1246, 64
          %v1317 = vpop.permute.xlu0 %1316
          %1318 = vrot.lane.b32.xlu0 %v1247, 64
          %v1319 = vpop.permute.xlu0 %1318
          %1320 = vrot.lane.b32.xlu0 %v1248, 64
          %v1321 = vpop.permute.xlu0 %1320
          %1322 = vrot.lane.b32.xlu0 %v1249, 64
          %v1323 = vpop.permute.xlu0 %1322
          %1324 = vrot.lane.b32.xlu0 %v1250, 64
          %v1325 = vpop.permute.xlu0 %1324
          %1326 = vrot.lane.b32.xlu0 %v1251, 64
          %v1327 = vpop.permute.xlu0 %1326
          %1328 = vrot.lane.b32.xlu0 %v1252, 64
          %v1329 = vpop.permute.xlu0 %1328
          %1330 = vrot.lane.b32.xlu0 %v1253, 64
          %v1331 = vpop.permute.xlu0 %1330
          %1332 = vrot.lane.b32.xlu0 %v1254, 64
          %v1333 = vpop.permute.xlu0 %1332
          %1334 = vrot.lane.b32.xlu0 %v1255, 64
          %v1335 = vpop.permute.xlu0 %1334
          %1336 = vrot.lane.b32.xlu0 %v1256, 64
          %v1337 = vpop.permute.xlu0 %1336
          %1338 = vrot.lane.b32.xlu0 %v1257, 64
          %v1339 = vpop.permute.xlu0 %1338
          %1340 = vrot.lane.b32.xlu0 %v1258, 64
          %v1341 = vpop.permute.xlu0 %1340
          %1342 = vrot.lane.b32.xlu0 %v1259, 64
          %v1343 = vpop.permute.xlu0 %1342
          %1344 = vrot.lane.b32.xlu0 %v1260, 64
          %v1345 = vpop.permute.xlu0 %1344
          %1346 = vrot.lane.b32.xlu0 %v1261, 64
          %v1347 = vpop.permute.xlu0 %1346
          %1348 = vrot.lane.b32.xlu0 %v1262, 64
          %v1349 = vpop.permute.xlu0 %1348
          %1350 = vrot.lane.b32.xlu0 %v1263, 64
          %v1351 = vpop.permute.xlu0 %1350
          %1352 = vrot.lane.b32.xlu0 %v1264, 64
          %v1353 = vpop.permute.xlu0 %1352
          %1354 = vrot.lane.b32.xlu0 %v1265, 64
          %v1355 = vpop.permute.xlu0 %1354
          %1356 = vrot.lane.b32.xlu0 %v1266, 64
          %v1357 = vpop.permute.xlu0 %1356
          %1358 = vrot.lane.b32.xlu0 %v1267, 64
          %v1359 = vpop.permute.xlu0 %1358
          %1360 = vrot.lane.b32.xlu0 %v1268, 64
          %v1361 = vpop.permute.xlu0 %1360
          %1362 = vrot.lane.b32.xlu0 %v1269, 64
          %v1363 = vpop.permute.xlu0 %1362
          %1364 = vrot.lane.b32.xlu0 %v1270, 64
          %v1365 = vpop.permute.xlu0 %1364
          %1366 = vrot.lane.b32.xlu0 %v1271, 64
          %v1367 = vpop.permute.xlu0 %1366
          %vm1400 = vcmask 785920
          %1401 = vst.msk [vmem:[#allocation3] sm:$0xff] %vm1400, %v1305
          %1402 = vst.msk [vmem:[#allocation3 + $0x18] sm:$0xff] %vm1400, %v1307
          %1403 = vst.msk [vmem:[#allocation3 + $0x30] sm:$0xff] %vm1400, %v1309
          %1404 = vst.msk [vmem:[#allocation3 + $0x48] sm:$0xff] %vm1400, %v1311
          %1405 = vst.msk [vmem:[#allocation3 + $0x60] sm:$0xff] %vm1400, %v1313
          %1406 = vst.msk [vmem:[#allocation3 + $0x78] sm:$0xff] %vm1400, %v1315
          %1407 = vst.msk [vmem:[#allocation3 + $0x90] sm:$0xff] %vm1400, %v1317
          %1408 = vst.msk [vmem:[#allocation3 + $0xa8] sm:$0xff] %vm1400, %v1319
          %1409 = vst.msk [vmem:[#allocation3 + $0xc0] sm:$0xff] %vm1400, %v1321
          %1410 = vst.msk [vmem:[#allocation3 + $0xd8] sm:$0xff] %vm1400, %v1323
          %1411 = vst.msk [vmem:[#allocation3 + $0xf0] sm:$0xff] %vm1400, %v1325
          %1412 = vst.msk [vmem:[#allocation3 + $0x108] sm:$0xff] %vm1400, %v1327
          %1413 = vst.msk [vmem:[#allocation3 + $0x120] sm:$0xff] %vm1400, %v1329
          %1414 = vst.msk [vmem:[#allocation3 + $0x138] sm:$0xff] %vm1400, %v1331
          %1415 = vst.msk [vmem:[#allocation3 + $0x150] sm:$0xff] %vm1400, %v1333
          %1416 = vst.msk [vmem:[#allocation3 + $0x168] sm:$0xff] %vm1400, %v1335
          %1417 = vst.msk [vmem:[#allocation3 + $0x180] sm:$0xff] %vm1400, %v1337
          %1418 = vst.msk [vmem:[#allocation3 + $0x198] sm:$0xff] %vm1400, %v1339
          %1419 = vst.msk [vmem:[#allocation3 + $0x1b0] sm:$0xff] %vm1400, %v1341
          %1420 = vst.msk [vmem:[#allocation3 + $0x1c8] sm:$0xff] %vm1400, %v1343
          %1421 = vst.msk [vmem:[#allocation3 + $0x1e0] sm:$0xff] %vm1400, %v1345
          %1422 = vst.msk [vmem:[#allocation3 + $0x1f8] sm:$0xff] %vm1400, %v1347
          %1423 = vst.msk [vmem:[#allocation3 + $0x210] sm:$0xff] %vm1400, %v1349
          %1424 = vst.msk [vmem:[#allocation3 + $0x228] sm:$0xff] %vm1400, %v1351
          %1425 = vst.msk [vmem:[#allocation3 + $0x240] sm:$0xff] %vm1400, %v1353
          %1426 = vst.msk [vmem:[#allocation3 + $0x258] sm:$0xff] %vm1400, %v1355
          %1427 = vst.msk [vmem:[#allocation3 + $0x270] sm:$0xff] %vm1400, %v1357
          %1428 = vst.msk [vmem:[#allocation3 + $0x288] sm:$0xff] %vm1400, %v1359
          %1429 = vst.msk [vmem:[#allocation3 + $0x2a0] sm:$0xff] %vm1400, %v1361
          %1430 = vst.msk [vmem:[#allocation3 + $0x2b8] sm:$0xff] %vm1400, %v1363
          %1431 = vst.msk [vmem:[#allocation3 + $0x2d0] sm:$0xff] %vm1400, %v1365
          %1432 = vst.msk [vmem:[#allocation3 + $0x2e8] sm:$0xff] %vm1400, %v1367
          %v1433 = vld [vmem:[#allocation2 + $0x17] sm:$0xff]
          %v1434 = vld [vmem:[#allocation2 + $0x1f] sm:$0xff]
          %v1435 = vld [vmem:[#allocation2 + $0x27] sm:$0xff]
          %v1436 = vld [vmem:[#allocation2 + $0x2f] sm:$0xff]
          %v1437 = vld [vmem:[#allocation2 + $0x37] sm:$0xff]
          %v1438 = vld [vmem:[#allocation2 + $0x3f] sm:$0xff]
          %v1439 = vld [vmem:[#allocation2 + $0x47] sm:$0xff]
          %v1440 = vld [vmem:[#allocation2 + $0x4f] sm:$0xff]
          %v1441 = vld [vmem:[#allocation2 + $0x57] sm:$0xff]
          %v1442 = vld [vmem:[#allocation2 + $0x5f] sm:$0xff]
          %v1443 = vld [vmem:[#allocation2 + $0x67] sm:$0xff]
          %v1444 = vld [vmem:[#allocation2 + $0x6f] sm:$0xff]
          %v1445 = vld [vmem:[#allocation2 + $0x77] sm:$0xff]
          %v1446 = vld [vmem:[#allocation2 + $0x7f] sm:$0xff]
          %v1447 = vld [vmem:[#allocation2 + $0x87] sm:$0xff]
          %v1448 = vld [vmem:[#allocation2 + $0x8f] sm:$0xff]
          %v1449 = vld [vmem:[#allocation2 + $0x97] sm:$0xff]
          %v1450 = vld [vmem:[#allocation2 + $0x9f] sm:$0xff]
          %v1451 = vld [vmem:[#allocation2 + $0xa7] sm:$0xff]
          %v1452 = vld [vmem:[#allocation2 + $0xaf] sm:$0xff]
          %v1453 = vld [vmem:[#allocation2 + $0xb7] sm:$0xff]
          %v1454 = vld [vmem:[#allocation2 + $0xbf] sm:$0xff]
          %v1455 = vld [vmem:[#allocation2 + $0xc7] sm:$0xff]
          %v1456 = vld [vmem:[#allocation2 + $0xcf] sm:$0xff]
          %v1457 = vld [vmem:[#allocation2 + $0xd7] sm:$0xff]
          %v1458 = vld [vmem:[#allocation2 + $0xdf] sm:$0xff]
          %v1459 = vld [vmem:[#allocation2 + $0xe7] sm:$0xff]
          %v1460 = vld [vmem:[#allocation2 + $0xef] sm:$0xff]
          %v1461 = vld [vmem:[#allocation2 + $0xf7] sm:$0xff]
          %v1462 = vld [vmem:[#allocation2 + $0xff] sm:$0xff]
          %v1463 = vld [vmem:[#allocation2 + $0x107] sm:$0xff]
          %v1464 = vld [vmem:[#allocation2 + $0x10f] sm:$0xff]
          %v1465 = vmul.f32 %v1433, %v634
          %v1466 = vmul.f32 %v1434, %v639
          %v1467 = vmul.f32 %v1435, %v644
          %v1468 = vmul.f32 %v1436, %v649
          %v1469 = vmul.f32 %v1437, %v654
          %v1470 = vmul.f32 %v1438, %v659
          %v1471 = vmul.f32 %v1439, %v664
          %v1472 = vmul.f32 %v1440, %v669
          %v1473 = vmul.f32 %v1441, %v674
          %v1474 = vmul.f32 %v1442, %v679
          %v1475 = vmul.f32 %v1443, %v684
          %v1476 = vmul.f32 %v1444, %v689
          %v1477 = vmul.f32 %v1445, %v694
          %v1478 = vmul.f32 %v1446, %v699
          %v1479 = vmul.f32 %v1447, %v704
          %v1480 = vmul.f32 %v1448, %v709
          %v1481 = vmul.f32 %v1449, %v714
          %v1482 = vmul.f32 %v1450, %v719
          %v1483 = vmul.f32 %v1451, %v724
          %v1484 = vmul.f32 %v1452, %v729
          %v1485 = vmul.f32 %v1453, %v734
          %v1486 = vmul.f32 %v1454, %v739
          %v1487 = vmul.f32 %v1455, %v744
          %v1488 = vmul.f32 %v1456, %v749
          %v1489 = vmul.f32 %v1457, %v754
          %v1490 = vmul.f32 %v1458, %v759
          %v1491 = vmul.f32 %v1459, %v764
          %v1492 = vmul.f32 %v1460, %v769
          %v1493 = vmul.f32 %v1461, %v774
          %v1494 = vmul.f32 %v1462, %v779
          %v1495 = vmul.f32 %v1463, %v784
          %v1496 = vmul.f32 %v1464, %v789
          %1529 = vrot.lane.b32.xlu0 %v1465, 96
          %v1530 = vpop.permute.xlu0 %1529
          %1531 = vrot.lane.b32.xlu0 %v1466, 96
          %v1532 = vpop.permute.xlu0 %1531
          %1533 = vrot.lane.b32.xlu0 %v1467, 96
          %v1534 = vpop.permute.xlu0 %1533
          %1535 = vrot.lane.b32.xlu0 %v1468, 96
          %v1536 = vpop.permute.xlu0 %1535
          %1537 = vrot.lane.b32.xlu0 %v1469, 96
          %v1538 = vpop.permute.xlu0 %1537
          %1539 = vrot.lane.b32.xlu0 %v1470, 96
          %v1540 = vpop.permute.xlu0 %1539
          %1541 = vrot.lane.b32.xlu0 %v1471, 96
          %v1542 = vpop.permute.xlu0 %1541
          %1543 = vrot.lane.b32.xlu0 %v1472, 96
          %v1544 = vpop.permute.xlu0 %1543
          %1545 = vrot.lane.b32.xlu0 %v1473, 96
          %v1546 = vpop.permute.xlu0 %1545
          %1547 = vrot.lane.b32.xlu0 %v1474, 96
          %v1548 = vpop.permute.xlu0 %1547
          %1549 = vrot.lane.b32.xlu0 %v1475, 96
          %v1550 = vpop.permute.xlu0 %1549
          %1551 = vrot.lane.b32.xlu0 %v1476, 96
          %v1552 = vpop.permute.xlu0 %1551
          %1553 = vrot.lane.b32.xlu0 %v1477, 96
          %v1554 = vpop.permute.xlu0 %1553
          %1555 = vrot.lane.b32.xlu0 %v1478, 96
          %v1556 = vpop.permute.xlu0 %1555
          %1557 = vrot.lane.b32.xlu0 %v1479, 96
          %v1558 = vpop.permute.xlu0 %1557
          %1559 = vrot.lane.b32.xlu0 %v1480, 96
          %v1560 = vpop.permute.xlu0 %1559
          %1561 = vrot.lane.b32.xlu0 %v1481, 96
          %v1562 = vpop.permute.xlu0 %1561
          %1563 = vrot.lane.b32.xlu0 %v1482, 96
          %v1564 = vpop.permute.xlu0 %1563
          %1565 = vrot.lane.b32.xlu0 %v1483, 96
          %v1566 = vpop.permute.xlu0 %1565
          %1567 = vrot.lane.b32.xlu0 %v1484, 96
          %v1568 = vpop.permute.xlu0 %1567
          %1569 = vrot.lane.b32.xlu0 %v1485, 96
          %v1570 = vpop.permute.xlu0 %1569
          %1571 = vrot.lane.b32.xlu0 %v1486, 96
          %v1572 = vpop.permute.xlu0 %1571
          %1573 = vrot.lane.b32.xlu0 %v1487, 96
          %v1574 = vpop.permute.xlu0 %1573
          %1575 = vrot.lane.b32.xlu0 %v1488, 96
          %v1576 = vpop.permute.xlu0 %1575
          %1577 = vrot.lane.b32.xlu0 %v1489, 96
          %v1578 = vpop.permute.xlu0 %1577
          %1579 = vrot.lane.b32.xlu0 %v1490, 96
          %v1580 = vpop.permute.xlu0 %1579
          %1581 = vrot.lane.b32.xlu0 %v1491, 96
          %v1582 = vpop.permute.xlu0 %1581
          %1583 = vrot.lane.b32.xlu0 %v1492, 96
          %v1584 = vpop.permute.xlu0 %1583
          %1585 = vrot.lane.b32.xlu0 %v1493, 96
          %v1586 = vpop.permute.xlu0 %1585
          %1587 = vrot.lane.b32.xlu0 %v1494, 96
          %v1588 = vpop.permute.xlu0 %1587
          %1589 = vrot.lane.b32.xlu0 %v1495, 96
          %v1590 = vpop.permute.xlu0 %1589
          %1591 = vrot.lane.b32.xlu0 %v1496, 96
          %v1592 = vpop.permute.xlu0 %1591
          %vm1625 = vcmask 1048320
          %1626 = vst.msk [vmem:[#allocation3] sm:$0xff] %vm1625, %v1530
          %1627 = vst.msk [vmem:[#allocation3 + $0x18] sm:$0xff] %vm1625, %v1532
          %1628 = vst.msk [vmem:[#allocation3 + $0x30] sm:$0xff] %vm1625, %v1534
          %1629 = vst.msk [vmem:[#allocation3 + $0x48] sm:$0xff] %vm1625, %v1536
          %1630 = vst.msk [vmem:[#allocation3 + $0x60] sm:$0xff] %vm1625, %v1538
          %1631 = vst.msk [vmem:[#allocation3 + $0x78] sm:$0xff] %vm1625, %v1540
          %1632 = vst.msk [vmem:[#allocation3 + $0x90] sm:$0xff] %vm1625, %v1542
          %1633 = vst.msk [vmem:[#allocation3 + $0xa8] sm:$0xff] %vm1625, %v1544
          %1634 = vst.msk [vmem:[#allocation3 + $0xc0] sm:$0xff] %vm1625, %v1546
          %1635 = vst.msk [vmem:[#allocation3 + $0xd8] sm:$0xff] %vm1625, %v1548
          %1636 = vst.msk [vmem:[#allocation3 + $0xf0] sm:$0xff] %vm1625, %v1550
          %1637 = vst.msk [vmem:[#allocation3 + $0x108] sm:$0xff] %vm1625, %v1552
          %1638 = vst.msk [vmem:[#allocation3 + $0x120] sm:$0xff] %vm1625, %v1554
          %1639 = vst.msk [vmem:[#allocation3 + $0x138] sm:$0xff] %vm1625, %v1556
          %1640 = vst.msk [vmem:[#allocation3 + $0x150] sm:$0xff] %vm1625, %v1558
          %1641 = vst.msk [vmem:[#allocation3 + $0x168] sm:$0xff] %vm1625, %v1560
          %1642 = vst.msk [vmem:[#allocation3 + $0x180] sm:$0xff] %vm1625, %v1562
          %1643 = vst.msk [vmem:[#allocation3 + $0x198] sm:$0xff] %vm1625, %v1564
          %1644 = vst.msk [vmem:[#allocation3 + $0x1b0] sm:$0xff] %vm1625, %v1566
          %1645 = vst.msk [vmem:[#allocation3 + $0x1c8] sm:$0xff] %vm1625, %v1568
          %1646 = vst.msk [vmem:[#allocation3 + $0x1e0] sm:$0xff] %vm1625, %v1570
          %1647 = vst.msk [vmem:[#allocation3 + $0x1f8] sm:$0xff] %vm1625, %v1572
          %1648 = vst.msk [vmem:[#allocation3 + $0x210] sm:$0xff] %vm1625, %v1574
          %1649 = vst.msk [vmem:[#allocation3 + $0x228] sm:$0xff] %vm1625, %v1576
          %1650 = vst.msk [vmem:[#allocation3 + $0x240] sm:$0xff] %vm1625, %v1578
          %1651 = vst.msk [vmem:[#allocation3 + $0x258] sm:$0xff] %vm1625, %v1580
          %1652 = vst.msk [vmem:[#allocation3 + $0x270] sm:$0xff] %vm1625, %v1582
          %1653 = vst.msk [vmem:[#allocation3 + $0x288] sm:$0xff] %vm1625, %v1584
          %1654 = vst.msk [vmem:[#allocation3 + $0x2a0] sm:$0xff] %vm1625, %v1586
          %1655 = vst.msk [vmem:[#allocation3 + $0x2b8] sm:$0xff] %vm1625, %v1588
          %1656 = vst.msk [vmem:[#allocation3 + $0x2d0] sm:$0xff] %vm1625, %v1590
          %1657 = vst.msk [vmem:[#allocation3 + $0x2e8] sm:$0xff] %vm1625, %v1592
          %v1658 = vld [vmem:[#allocation2 + $0x18] sm:$0xff]
          %v1659 = vld [vmem:[#allocation2 + $0x20] sm:$0xff]
          %v1660 = vld [vmem:[#allocation2 + $0x28] sm:$0xff]
          %v1661 = vld [vmem:[#allocation2 + $0x30] sm:$0xff]
          %v1662 = vld [vmem:[#allocation2 + $0x38] sm:$0xff]
          %v1663 = vld [vmem:[#allocation2 + $0x40] sm:$0xff]
          %v1664 = vld [vmem:[#allocation2 + $0x48] sm:$0xff]
          %v1665 = vld [vmem:[#allocation2 + $0x50] sm:$0xff]
          %v1666 = vld [vmem:[#allocation2 + $0x58] sm:$0xff]
          %v1667 = vld [vmem:[#allocation2 + $0x60] sm:$0xff]
          %v1668 = vld [vmem:[#allocation2 + $0x68] sm:$0xff]
          %v1669 = vld [vmem:[#allocation2 + $0x70] sm:$0xff]
          %v1670 = vld [vmem:[#allocation2 + $0x78] sm:$0xff]
          %v1671 = vld [vmem:[#allocation2 + $0x80] sm:$0xff]
          %v1672 = vld [vmem:[#allocation2 + $0x88] sm:$0xff]
          %v1673 = vld [vmem:[#allocation2 + $0x90] sm:$0xff]
          %v1674 = vld [vmem:[#allocation2 + $0x98] sm:$0xff]
          %v1675 = vld [vmem:[#allocation2 + $0xa0] sm:$0xff]
          %v1676 = vld [vmem:[#allocation2 + $0xa8] sm:$0xff]
          %v1677 = vld [vmem:[#allocation2 + $0xb0] sm:$0xff]
          %v1678 = vld [vmem:[#allocation2 + $0xb8] sm:$0xff]
          %v1679 = vld [vmem:[#allocation2 + $0xc0] sm:$0xff]
          %v1680 = vld [vmem:[#allocation2 + $0xc8] sm:$0xff]
          %v1681 = vld [vmem:[#allocation2 + $0xd0] sm:$0xff]
          %v1682 = vld [vmem:[#allocation2 + $0xd8] sm:$0xff]
          %v1683 = vld [vmem:[#allocation2 + $0xe0] sm:$0xff]
          %v1684 = vld [vmem:[#allocation2 + $0xe8] sm:$0xff]
          %v1685 = vld [vmem:[#allocation2 + $0xf0] sm:$0xff]
          %v1686 = vld [vmem:[#allocation2 + $0xf8] sm:$0xff]
          %v1687 = vld [vmem:[#allocation2 + $0x100] sm:$0xff]
          %v1688 = vld [vmem:[#allocation2 + $0x108] sm:$0xff]
          %v1689 = vld [vmem:[#allocation2 + $0x110] sm:$0xff]
          %1690 = vst.msk [vmem:[#allocation3 + $0x8] sm:$0xff] %vm424, %v1658
          %1691 = vst.msk [vmem:[#allocation3 + $0x20] sm:$0xff] %vm424, %v1659
          %1692 = vst.msk [vmem:[#allocation3 + $0x38] sm:$0xff] %vm424, %v1660
          %1693 = vst.msk [vmem:[#allocation3 + $0x50] sm:$0xff] %vm424, %v1661
          %1694 = vst.msk [vmem:[#allocation3 + $0x68] sm:$0xff] %vm424, %v1662
          %1695 = vst.msk [vmem:[#allocation3 + $0x80] sm:$0xff] %vm424, %v1663
          %1696 = vst.msk [vmem:[#allocation3 + $0x98] sm:$0xff] %vm424, %v1664
          %1697 = vst.msk [vmem:[#allocation3 + $0xb0] sm:$0xff] %vm424, %v1665
          %1698 = vst.msk [vmem:[#allocation3 + $0xc8] sm:$0xff] %vm424, %v1666
          %1699 = vst.msk [vmem:[#allocation3 + $0xe0] sm:$0xff] %vm424, %v1667
          %1700 = vst.msk [vmem:[#allocation3 + $0xf8] sm:$0xff] %vm424, %v1668
          %1701 = vst.msk [vmem:[#allocation3 + $0x110] sm:$0xff] %vm424, %v1669
          %1702 = vst.msk [vmem:[#allocation3 + $0x128] sm:$0xff] %vm424, %v1670
          %1703 = vst.msk [vmem:[#allocation3 + $0x140] sm:$0xff] %vm424, %v1671
          %1704 = vst.msk [vmem:[#allocation3 + $0x158] sm:$0xff] %vm424, %v1672
          %1705 = vst.msk [vmem:[#allocation3 + $0x170] sm:$0xff] %vm424, %v1673
          %1706 = vst.msk [vmem:[#allocation3 + $0x188] sm:$0xff] %vm424, %v1674
          %1707 = vst.msk [vmem:[#allocation3 + $0x1a0] sm:$0xff] %vm424, %v1675
          %1708 = vst.msk [vmem:[#allocation3 + $0x1b8] sm:$0xff] %vm424, %v1676
          %1709 = vst.msk [vmem:[#allocation3 + $0x1d0] sm:$0xff] %vm424, %v1677
          %1710 = vst.msk [vmem:[#allocation3 + $0x1e8] sm:$0xff] %vm424, %v1678
          %1711 = vst.msk [vmem:[#allocation3 + $0x200] sm:$0xff] %vm424, %v1679
          %1712 = vst.msk [vmem:[#allocation3 + $0x218] sm:$0xff] %vm424, %v1680
          %1713 = vst.msk [vmem:[#allocation3 + $0x230] sm:$0xff] %vm424, %v1681
          %1714 = vst.msk [vmem:[#allocation3 + $0x248] sm:$0xff] %vm424, %v1682
          %1715 = vst.msk [vmem:[#allocation3 + $0x260] sm:$0xff] %vm424, %v1683
          %1716 = vst.msk [vmem:[#allocation3 + $0x278] sm:$0xff] %vm424, %v1684
          %1717 = vst.msk [vmem:[#allocation3 + $0x290] sm:$0xff] %vm424, %v1685
          %1718 = vst.msk [vmem:[#allocation3 + $0x2a8] sm:$0xff] %vm424, %v1686
          %1719 = vst.msk [vmem:[#allocation3 + $0x2c0] sm:$0xff] %vm424, %v1687
          %1720 = vst.msk [vmem:[#allocation3 + $0x2d8] sm:$0xff] %vm424, %v1688
          %1721 = vst.msk [vmem:[#allocation3 + $0x2f0] sm:$0xff] %vm424, %v1689
          %v1722 = vld [vmem:[#allocation2 + $0x19] sm:$0xff]
          %v1723 = vld [vmem:[#allocation2 + $0x21] sm:$0xff]
          %v1724 = vld [vmem:[#allocation2 + $0x29] sm:$0xff]
          %v1725 = vld [vmem:[#allocation2 + $0x31] sm:$0xff]
          %v1726 = vld [vmem:[#allocation2 + $0x39] sm:$0xff]
          %v1727 = vld [vmem:[#allocation2 + $0x41] sm:$0xff]
          %v1728 = vld [vmem:[#allocation2 + $0x49] sm:$0xff]
          %v1729 = vld [vmem:[#allocation2 + $0x51] sm:$0xff]
          %v1730 = vld [vmem:[#allocation2 + $0x59] sm:$0xff]
          %v1731 = vld [vmem:[#allocation2 + $0x61] sm:$0xff]
          %v1732 = vld [vmem:[#allocation2 + $0x69] sm:$0xff]
          %v1733 = vld [vmem:[#allocation2 + $0x71] sm:$0xff]
          %v1734 = vld [vmem:[#allocation2 + $0x79] sm:$0xff]
          %v1735 = vld [vmem:[#allocation2 + $0x81] sm:$0xff]
          %v1736 = vld [vmem:[#allocation2 + $0x89] sm:$0xff]
          %v1737 = vld [vmem:[#allocation2 + $0x91] sm:$0xff]
          %v1738 = vld [vmem:[#allocation2 + $0x99] sm:$0xff]
          %v1739 = vld [vmem:[#allocation2 + $0xa1] sm:$0xff]
          %v1740 = vld [vmem:[#allocation2 + $0xa9] sm:$0xff]
          %v1741 = vld [vmem:[#allocation2 + $0xb1] sm:$0xff]
          %v1742 = vld [vmem:[#allocation2 + $0xb9] sm:$0xff]
          %v1743 = vld [vmem:[#allocation2 + $0xc1] sm:$0xff]
          %v1744 = vld [vmem:[#allocation2 + $0xc9] sm:$0xff]
          %v1745 = vld [vmem:[#allocation2 + $0xd1] sm:$0xff]
          %v1746 = vld [vmem:[#allocation2 + $0xd9] sm:$0xff]
          %v1747 = vld [vmem:[#allocation2 + $0xe1] sm:$0xff]
          %v1748 = vld [vmem:[#allocation2 + $0xe9] sm:$0xff]
          %v1749 = vld [vmem:[#allocation2 + $0xf1] sm:$0xff]
          %v1750 = vld [vmem:[#allocation2 + $0xf9] sm:$0xff]
          %v1751 = vld [vmem:[#allocation2 + $0x101] sm:$0xff]
          %v1752 = vld [vmem:[#allocation2 + $0x109] sm:$0xff]
          %v1753 = vld [vmem:[#allocation2 + $0x111] sm:$0xff]
          %v1754 = vmul.f32 %v1722, %v1083
          %v1755 = vmul.f32 %v1723, %v1088
          %v1756 = vmul.f32 %v1724, %v1093
          %v1757 = vmul.f32 %v1725, %v1098
          %v1758 = vmul.f32 %v1726, %v1103
          %v1759 = vmul.f32 %v1727, %v1108
          %v1760 = vmul.f32 %v1728, %v1113
          %v1761 = vmul.f32 %v1729, %v1118
          %v1762 = vmul.f32 %v1730, %v1123
          %v1763 = vmul.f32 %v1731, %v1128
          %v1764 = vmul.f32 %v1732, %v1133
          %v1765 = vmul.f32 %v1733, %v1138
          %v1766 = vmul.f32 %v1734, %v1143
          %v1767 = vmul.f32 %v1735, %v1148
          %v1768 = vmul.f32 %v1736, %v1153
          %v1769 = vmul.f32 %v1737, %v1158
          %v1770 = vmul.f32 %v1738, %v1163
          %v1771 = vmul.f32 %v1739, %v1168
          %v1772 = vmul.f32 %v1740, %v1173
          %v1773 = vmul.f32 %v1741, %v1178
          %v1774 = vmul.f32 %v1742, %v1183
          %v1775 = vmul.f32 %v1743, %v1188
          %v1776 = vmul.f32 %v1744, %v1193
          %v1777 = vmul.f32 %v1745, %v1198
          %v1778 = vmul.f32 %v1746, %v1203
          %v1779 = vmul.f32 %v1747, %v1208
          %v1780 = vmul.f32 %v1748, %v1213
          %v1781 = vmul.f32 %v1749, %v1218
          %v1782 = vmul.f32 %v1750, %v1223
          %v1783 = vmul.f32 %v1751, %v1228
          %v1784 = vmul.f32 %v1752, %v1233
          %v1785 = vmul.f32 %v1753, %v1238
          %1818 = vrot.lane.b32.xlu0 %v1754, 32
          %v1819 = vpop.permute.xlu0 %1818
          %1820 = vrot.lane.b32.xlu0 %v1755, 32
          %v1821 = vpop.permute.xlu0 %1820
          %1822 = vrot.lane.b32.xlu0 %v1756, 32
          %v1823 = vpop.permute.xlu0 %1822
          %1824 = vrot.lane.b32.xlu0 %v1757, 32
          %v1825 = vpop.permute.xlu0 %1824
          %1826 = vrot.lane.b32.xlu0 %v1758, 32
          %v1827 = vpop.permute.xlu0 %1826
          %1828 = vrot.lane.b32.xlu0 %v1759, 32
          %v1829 = vpop.permute.xlu0 %1828
          %1830 = vrot.lane.b32.xlu0 %v1760, 32
          %v1831 = vpop.permute.xlu0 %1830
          %1832 = vrot.lane.b32.xlu0 %v1761, 32
          %v1833 = vpop.permute.xlu0 %1832
          %1834 = vrot.lane.b32.xlu0 %v1762, 32
          %v1835 = vpop.permute.xlu0 %1834
          %1836 = vrot.lane.b32.xlu0 %v1763, 32
          %v1837 = vpop.permute.xlu0 %1836
          %1838 = vrot.lane.b32.xlu0 %v1764, 32
          %v1839 = vpop.permute.xlu0 %1838
          %1840 = vrot.lane.b32.xlu0 %v1765, 32
          %v1841 = vpop.permute.xlu0 %1840
          %1842 = vrot.lane.b32.xlu0 %v1766, 32
          %v1843 = vpop.permute.xlu0 %1842
          %1844 = vrot.lane.b32.xlu0 %v1767, 32
          %v1845 = vpop.permute.xlu0 %1844
          %1846 = vrot.lane.b32.xlu0 %v1768, 32
          %v1847 = vpop.permute.xlu0 %1846
          %1848 = vrot.lane.b32.xlu0 %v1769, 32
          %v1849 = vpop.permute.xlu0 %1848
          %1850 = vrot.lane.b32.xlu0 %v1770, 32
          %v1851 = vpop.permute.xlu0 %1850
          %1852 = vrot.lane.b32.xlu0 %v1771, 32
          %v1853 = vpop.permute.xlu0 %1852
          %1854 = vrot.lane.b32.xlu0 %v1772, 32
          %v1855 = vpop.permute.xlu0 %1854
          %1856 = vrot.lane.b32.xlu0 %v1773, 32
          %v1857 = vpop.permute.xlu0 %1856
          %1858 = vrot.lane.b32.xlu0 %v1774, 32
          %v1859 = vpop.permute.xlu0 %1858
          %1860 = vrot.lane.b32.xlu0 %v1775, 32
          %v1861 = vpop.permute.xlu0 %1860
          %1862 = vrot.lane.b32.xlu0 %v1776, 32
          %v1863 = vpop.permute.xlu0 %1862
          %1864 = vrot.lane.b32.xlu0 %v1777, 32
          %v1865 = vpop.permute.xlu0 %1864
          %1866 = vrot.lane.b32.xlu0 %v1778, 32
          %v1867 = vpop.permute.xlu0 %1866
          %1868 = vrot.lane.b32.xlu0 %v1779, 32
          %v1869 = vpop.permute.xlu0 %1868
          %1870 = vrot.lane.b32.xlu0 %v1780, 32
          %v1871 = vpop.permute.xlu0 %1870
          %1872 = vrot.lane.b32.xlu0 %v1781, 32
          %v1873 = vpop.permute.xlu0 %1872
          %1874 = vrot.lane.b32.xlu0 %v1782, 32
          %v1875 = vpop.permute.xlu0 %1874
          %1876 = vrot.lane.b32.xlu0 %v1783, 32
          %v1877 = vpop.permute.xlu0 %1876
          %1878 = vrot.lane.b32.xlu0 %v1784, 32
          %v1879 = vpop.permute.xlu0 %1878
          %1880 = vrot.lane.b32.xlu0 %v1785, 32
          %v1881 = vpop.permute.xlu0 %1880
          %1914 = vst.msk [vmem:[#allocation3 + $0x8] sm:$0xff] %vm1015, %v1819
          %1915 = vst.msk [vmem:[#allocation3 + $0x20] sm:$0xff] %vm1015, %v1821
          %1916 = vst.msk [vmem:[#allocation3 + $0x38] sm:$0xff] %vm1015, %v1823
          %1917 = vst.msk [vmem:[#allocation3 + $0x50] sm:$0xff] %vm1015, %v1825
          %1918 = vst.msk [vmem:[#allocation3 + $0x68] sm:$0xff] %vm1015, %v1827
          %1919 = vst.msk [vmem:[#allocation3 + $0x80] sm:$0xff] %vm1015, %v1829
          %1920 = vst.msk [vmem:[#allocation3 + $0x98] sm:$0xff] %vm1015, %v1831
          %1921 = vst.msk [vmem:[#allocation3 + $0xb0] sm:$0xff] %vm1015, %v1833
          %1922 = vst.msk [vmem:[#allocation3 + $0xc8] sm:$0xff] %vm1015, %v1835
          %1923 = vst.msk [vmem:[#allocation3 + $0xe0] sm:$0xff] %vm1015, %v1837
          %1924 = vst.msk [vmem:[#allocation3 + $0xf8] sm:$0xff] %vm1015, %v1839
          %1925 = vst.msk [vmem:[#allocation3 + $0x110] sm:$0xff] %vm1015, %v1841
          %1926 = vst.msk [vmem:[#allocation3 + $0x128] sm:$0xff] %vm1015, %v1843
          %1927 = vst.msk [vmem:[#allocation3 + $0x140] sm:$0xff] %vm1015, %v1845
          %1928 = vst.msk [vmem:[#allocation3 + $0x158] sm:$0xff] %vm1015, %v1847
          %1929 = vst.msk [vmem:[#allocation3 + $0x170] sm:$0xff] %vm1015, %v1849
          %1930 = vst.msk [vmem:[#allocation3 + $0x188] sm:$0xff] %vm1015, %v1851
          %1931 = vst.msk [vmem:[#allocation3 + $0x1a0] sm:$0xff] %vm1015, %v1853
          %1932 = vst.msk [vmem:[#allocation3 + $0x1b8] sm:$0xff] %vm1015, %v1855
          %1933 = vst.msk [vmem:[#allocation3 + $0x1d0] sm:$0xff] %vm1015, %v1857
          %1934 = vst.msk [vmem:[#allocation3 + $0x1e8] sm:$0xff] %vm1015, %v1859
          %1935 = vst.msk [vmem:[#allocation3 + $0x200] sm:$0xff] %vm1015, %v1861
          %1936 = vst.msk [vmem:[#allocation3 + $0x218] sm:$0xff] %vm1015, %v1863
          %1937 = vst.msk [vmem:[#allocation3 + $0x230] sm:$0xff] %vm1015, %v1865
          %1938 = vst.msk [vmem:[#allocation3 + $0x248] sm:$0xff] %vm1015, %v1867
          %1939 = vst.msk [vmem:[#allocation3 + $0x260] sm:$0xff] %vm1015, %v1869
          %1940 = vst.msk [vmem:[#allocation3 + $0x278] sm:$0xff] %vm1015, %v1871
          %1941 = vst.msk [vmem:[#allocation3 + $0x290] sm:$0xff] %vm1015, %v1873
          %1942 = vst.msk [vmem:[#allocation3 + $0x2a8] sm:$0xff] %vm1015, %v1875
          %1943 = vst.msk [vmem:[#allocation3 + $0x2c0] sm:$0xff] %vm1015, %v1877
          %1944 = vst.msk [vmem:[#allocation3 + $0x2d8] sm:$0xff] %vm1015, %v1879
          %1945 = vst.msk [vmem:[#allocation3 + $0x2f0] sm:$0xff] %vm1015, %v1881
          %v1946 = vld [vmem:[#allocation2 + $0x27] sm:$0xff]
          %v1947 = vld [vmem:[#allocation2 + $0x2f] sm:$0xff]
          %v1948 = vld [vmem:[#allocation2 + $0x37] sm:$0xff]
          %v1949 = vld [vmem:[#allocation2 + $0x3f] sm:$0xff]
          %v1950 = vld [vmem:[#allocation2 + $0x47] sm:$0xff]
          %v1951 = vld [vmem:[#allocation2 + $0x4f] sm:$0xff]
          %v1952 = vld [vmem:[#allocation2 + $0x57] sm:$0xff]
          %v1953 = vld [vmem:[#allocation2 + $0x5f] sm:$0xff]
          %v1954 = vld [vmem:[#allocation2 + $0x67] sm:$0xff]
          %v1955 = vld [vmem:[#allocation2 + $0x6f] sm:$0xff]
          %v1956 = vld [vmem:[#allocation2 + $0x77] sm:$0xff]
          %v1957 = vld [vmem:[#allocation2 + $0x7f] sm:$0xff]
          %v1958 = vld [vmem:[#allocation2 + $0x87] sm:$0xff]
          %v1959 = vld [vmem:[#allocation2 + $0x8f] sm:$0xff]
          %v1960 = vld [vmem:[#allocation2 + $0x97] sm:$0xff]
          %v1961 = vld [vmem:[#allocation2 + $0x9f] sm:$0xff]
          %v1962 = vld [vmem:[#allocation2 + $0xa7] sm:$0xff]
          %v1963 = vld [vmem:[#allocation2 + $0xaf] sm:$0xff]
          %v1964 = vld [vmem:[#allocation2 + $0xb7] sm:$0xff]
          %v1965 = vld [vmem:[#allocation2 + $0xbf] sm:$0xff]
          %v1966 = vld [vmem:[#allocation2 + $0xc7] sm:$0xff]
          %v1967 = vld [vmem:[#allocation2 + $0xcf] sm:$0xff]
          %v1968 = vld [vmem:[#allocation2 + $0xd7] sm:$0xff]
          %v1969 = vld [vmem:[#allocation2 + $0xdf] sm:$0xff]
          %v1970 = vld [vmem:[#allocation2 + $0xe7] sm:$0xff]
          %v1971 = vld [vmem:[#allocation2 + $0xef] sm:$0xff]
          %v1972 = vld [vmem:[#allocation2 + $0xf7] sm:$0xff]
          %v1973 = vld [vmem:[#allocation2 + $0xff] sm:$0xff]
          %v1974 = vld [vmem:[#allocation2 + $0x107] sm:$0xff]
          %v1975 = vld [vmem:[#allocation2 + $0x10f] sm:$0xff]
          %v1976 = vld [vmem:[#allocation2 + $0x117] sm:$0xff]
          %v1977 = vld [vmem:[#allocation2 + $0x11f] sm:$0xff]
          %v1978 = vmul.f32 %v1946, %v634
          %v1979 = vmul.f32 %v1947, %v639
          %v1980 = vmul.f32 %v1948, %v644
          %v1981 = vmul.f32 %v1949, %v649
          %v1982 = vmul.f32 %v1950, %v654
          %v1983 = vmul.f32 %v1951, %v659
          %v1984 = vmul.f32 %v1952, %v664
          %v1985 = vmul.f32 %v1953, %v669
          %v1986 = vmul.f32 %v1954, %v674
          %v1987 = vmul.f32 %v1955, %v679
          %v1988 = vmul.f32 %v1956, %v684
          %v1989 = vmul.f32 %v1957, %v689
          %v1990 = vmul.f32 %v1958, %v694
          %v1991 = vmul.f32 %v1959, %v699
          %v1992 = vmul.f32 %v1960, %v704
          %v1993 = vmul.f32 %v1961, %v709
          %v1994 = vmul.f32 %v1962, %v714
          %v1995 = vmul.f32 %v1963, %v719
          %v1996 = vmul.f32 %v1964, %v724
          %v1997 = vmul.f32 %v1965, %v729
          %v1998 = vmul.f32 %v1966, %v734
          %v1999 = vmul.f32 %v1967, %v739
          %v2000 = vmul.f32 %v1968, %v744
          %v2001 = vmul.f32 %v1969, %v749
          %v2002 = vmul.f32 %v1970, %v754
          %v2003 = vmul.f32 %v1971, %v759
          %v2004 = vmul.f32 %v1972, %v764
          %v2005 = vmul.f32 %v1973, %v769
          %v2006 = vmul.f32 %v1974, %v774
          %v2007 = vmul.f32 %v1975, %v779
          %v2008 = vmul.f32 %v1976, %v784
          %v2009 = vmul.f32 %v1977, %v789
          %2042 = vrot.lane.b32.xlu0 %v1978, 64
          %v2043 = vpop.permute.xlu0 %2042
          %2044 = vrot.lane.b32.xlu0 %v1979, 64
          %v2045 = vpop.permute.xlu0 %2044
          %2046 = vrot.lane.b32.xlu0 %v1980, 64
          %v2047 = vpop.permute.xlu0 %2046
          %2048 = vrot.lane.b32.xlu0 %v1981, 64
          %v2049 = vpop.permute.xlu0 %2048
          %2050 = vrot.lane.b32.xlu0 %v1982, 64
          %v2051 = vpop.permute.xlu0 %2050
          %2052 = vrot.lane.b32.xlu0 %v1983, 64
          %v2053 = vpop.permute.xlu0 %2052
          %2054 = vrot.lane.b32.xlu0 %v1984, 64
          %v2055 = vpop.permute.xlu0 %2054
          %2056 = vrot.lane.b32.xlu0 %v1985, 64
          %v2057 = vpop.permute.xlu0 %2056
          %2058 = vrot.lane.b32.xlu0 %v1986, 64
          %v2059 = vpop.permute.xlu0 %2058
          %2060 = vrot.lane.b32.xlu0 %v1987, 64
          %v2061 = vpop.permute.xlu0 %2060
          %2062 = vrot.lane.b32.xlu0 %v1988, 64
          %v2063 = vpop.permute.xlu0 %2062
          %2064 = vrot.lane.b32.xlu0 %v1989, 64
          %v2065 = vpop.permute.xlu0 %2064
          %2066 = vrot.lane.b32.xlu0 %v1990, 64
          %v2067 = vpop.permute.xlu0 %2066
          %2068 = vrot.lane.b32.xlu0 %v1991, 64
          %v2069 = vpop.permute.xlu0 %2068
          %2070 = vrot.lane.b32.xlu0 %v1992, 64
          %v2071 = vpop.permute.xlu0 %2070
          %2072 = vrot.lane.b32.xlu0 %v1993, 64
          %v2073 = vpop.permute.xlu0 %2072
          %2074 = vrot.lane.b32.xlu0 %v1994, 64
          %v2075 = vpop.permute.xlu0 %2074
          %2076 = vrot.lane.b32.xlu0 %v1995, 64
          %v2077 = vpop.permute.xlu0 %2076
          %2078 = vrot.lane.b32.xlu0 %v1996, 64
          %v2079 = vpop.permute.xlu0 %2078
          %2080 = vrot.lane.b32.xlu0 %v1997, 64
          %v2081 = vpop.permute.xlu0 %2080
          %2082 = vrot.lane.b32.xlu0 %v1998, 64
          %v2083 = vpop.permute.xlu0 %2082
          %2084 = vrot.lane.b32.xlu0 %v1999, 64
          %v2085 = vpop.permute.xlu0 %2084
          %2086 = vrot.lane.b32.xlu0 %v2000, 64
          %v2087 = vpop.permute.xlu0 %2086
          %2088 = vrot.lane.b32.xlu0 %v2001, 64
          %v2089 = vpop.permute.xlu0 %2088
          %2090 = vrot.lane.b32.xlu0 %v2002, 64
          %v2091 = vpop.permute.xlu0 %2090
          %2092 = vrot.lane.b32.xlu0 %v2003, 64
          %v2093 = vpop.permute.xlu0 %2092
          %2094 = vrot.lane.b32.xlu0 %v2004, 64
          %v2095 = vpop.permute.xlu0 %2094
          %2096 = vrot.lane.b32.xlu0 %v2005, 64
          %v2097 = vpop.permute.xlu0 %2096
          %2098 = vrot.lane.b32.xlu0 %v2006, 64
          %v2099 = vpop.permute.xlu0 %2098
          %2100 = vrot.lane.b32.xlu0 %v2007, 64
          %v2101 = vpop.permute.xlu0 %2100
          %2102 = vrot.lane.b32.xlu0 %v2008, 64
          %v2103 = vpop.permute.xlu0 %2102
          %2104 = vrot.lane.b32.xlu0 %v2009, 64
          %v2105 = vpop.permute.xlu0 %2104
          %2138 = vst.msk [vmem:[#allocation3 + $0x8] sm:$0xff] %vm1400, %v2043
          %2139 = vst.msk [vmem:[#allocation3 + $0x20] sm:$0xff] %vm1400, %v2045
          %2140 = vst.msk [vmem:[#allocation3 + $0x38] sm:$0xff] %vm1400, %v2047
          %2141 = vst.msk [vmem:[#allocation3 + $0x50] sm:$0xff] %vm1400, %v2049
          %2142 = vst.msk [vmem:[#allocation3 + $0x68] sm:$0xff] %vm1400, %v2051
          %2143 = vst.msk [vmem:[#allocation3 + $0x80] sm:$0xff] %vm1400, %v2053
          %2144 = vst.msk [vmem:[#allocation3 + $0x98] sm:$0xff] %vm1400, %v2055
          %2145 = vst.msk [vmem:[#allocation3 + $0xb0] sm:$0xff] %vm1400, %v2057
          %2146 = vst.msk [vmem:[#allocation3 + $0xc8] sm:$0xff] %vm1400, %v2059
          %2147 = vst.msk [vmem:[#allocation3 + $0xe0] sm:$0xff] %vm1400, %v2061
          %2148 = vst.msk [vmem:[#allocation3 + $0xf8] sm:$0xff] %vm1400, %v2063
          %2149 = vst.msk [vmem:[#allocation3 + $0x110] sm:$0xff] %vm1400, %v2065
          %2150 = vst.msk [vmem:[#allocation3 + $0x128] sm:$0xff] %vm1400, %v2067
          %2151 = vst.msk [vmem:[#allocation3 + $0x140] sm:$0xff] %vm1400, %v2069
          %2152 = vst.msk [vmem:[#allocation3 + $0x158] sm:$0xff] %vm1400, %v2071
          %2153 = vst.msk [vmem:[#allocation3 + $0x170] sm:$0xff] %vm1400, %v2073
          %2154 = vst.msk [vmem:[#allocation3 + $0x188] sm:$0xff] %vm1400, %v2075
          %2155 = vst.msk [vmem:[#allocation3 + $0x1a0] sm:$0xff] %vm1400, %v2077
          %2156 = vst.msk [vmem:[#allocation3 + $0x1b8] sm:$0xff] %vm1400, %v2079
          %2157 = vst.msk [vmem:[#allocation3 + $0x1d0] sm:$0xff] %vm1400, %v2081
          %2158 = vst.msk [vmem:[#allocation3 + $0x1e8] sm:$0xff] %vm1400, %v2083
          %2159 = vst.msk [vmem:[#allocation3 + $0x200] sm:$0xff] %vm1400, %v2085
          %2160 = vst.msk [vmem:[#allocation3 + $0x218] sm:$0xff] %vm1400, %v2087
          %2161 = vst.msk [vmem:[#allocation3 + $0x230] sm:$0xff] %vm1400, %v2089
          %2162 = vst.msk [vmem:[#allocation3 + $0x248] sm:$0xff] %vm1400, %v2091
          %2163 = vst.msk [vmem:[#allocation3 + $0x260] sm:$0xff] %vm1400, %v2093
          %2164 = vst.msk [vmem:[#allocation3 + $0x278] sm:$0xff] %vm1400, %v2095
          %2165 = vst.msk [vmem:[#allocation3 + $0x290] sm:$0xff] %vm1400, %v2097
          %2166 = vst.msk [vmem:[#allocation3 + $0x2a8] sm:$0xff] %vm1400, %v2099
          %2167 = vst.msk [vmem:[#allocation3 + $0x2c0] sm:$0xff] %vm1400, %v2101
          %2168 = vst.msk [vmem:[#allocation3 + $0x2d8] sm:$0xff] %vm1400, %v2103
          %2169 = vst.msk [vmem:[#allocation3 + $0x2f0] sm:$0xff] %vm1400, %v2105
          %v2170 = vld [vmem:[#allocation2 + $0x28] sm:$0xff]
          %v2171 = vld [vmem:[#allocation2 + $0x30] sm:$0xff]
          %v2172 = vld [vmem:[#allocation2 + $0x38] sm:$0xff]
          %v2173 = vld [vmem:[#allocation2 + $0x40] sm:$0xff]
          %v2174 = vld [vmem:[#allocation2 + $0x48] sm:$0xff]
          %v2175 = vld [vmem:[#allocation2 + $0x50] sm:$0xff]
          %v2176 = vld [vmem:[#allocation2 + $0x58] sm:$0xff]
          %v2177 = vld [vmem:[#allocation2 + $0x60] sm:$0xff]
          %v2178 = vld [vmem:[#allocation2 + $0x68] sm:$0xff]
          %v2179 = vld [vmem:[#allocation2 + $0x70] sm:$0xff]
          %v2180 = vld [vmem:[#allocation2 + $0x78] sm:$0xff]
          %v2181 = vld [vmem:[#allocation2 + $0x80] sm:$0xff]
          %v2182 = vld [vmem:[#allocation2 + $0x88] sm:$0xff]
          %v2183 = vld [vmem:[#allocation2 + $0x90] sm:$0xff]
          %v2184 = vld [vmem:[#allocation2 + $0x98] sm:$0xff]
          %v2185 = vld [vmem:[#allocation2 + $0xa0] sm:$0xff]
          %v2186 = vld [vmem:[#allocation2 + $0xa8] sm:$0xff]
          %v2187 = vld [vmem:[#allocation2 + $0xb0] sm:$0xff]
          %v2188 = vld [vmem:[#allocation2 + $0xb8] sm:$0xff]
          %v2189 = vld [vmem:[#allocation2 + $0xc0] sm:$0xff]
          %v2190 = vld [vmem:[#allocation2 + $0xc8] sm:$0xff]
          %v2191 = vld [vmem:[#allocation2 + $0xd0] sm:$0xff]
          %v2192 = vld [vmem:[#allocation2 + $0xd8] sm:$0xff]
          %v2193 = vld [vmem:[#allocation2 + $0xe0] sm:$0xff]
          %v2194 = vld [vmem:[#allocation2 + $0xe8] sm:$0xff]
          %v2195 = vld [vmem:[#allocation2 + $0xf0] sm:$0xff]
          %v2196 = vld [vmem:[#allocation2 + $0xf8] sm:$0xff]
          %v2197 = vld [vmem:[#allocation2 + $0x100] sm:$0xff]
          %v2198 = vld [vmem:[#allocation2 + $0x108] sm:$0xff]
          %v2199 = vld [vmem:[#allocation2 + $0x110] sm:$0xff]
          %v2200 = vld [vmem:[#allocation2 + $0x118] sm:$0xff]
          %v2201 = vld [vmem:[#allocation2 + $0x120] sm:$0xff]
          %2234 = vrot.lane.b32.xlu0 %v2170, 96
          %v2235 = vpop.permute.xlu0 %2234
          %2236 = vrot.lane.b32.xlu0 %v2171, 96
          %v2237 = vpop.permute.xlu0 %2236
          %2238 = vrot.lane.b32.xlu0 %v2172, 96
          %v2239 = vpop.permute.xlu0 %2238
          %2240 = vrot.lane.b32.xlu0 %v2173, 96
          %v2241 = vpop.permute.xlu0 %2240
          %2242 = vrot.lane.b32.xlu0 %v2174, 96
          %v2243 = vpop.permute.xlu0 %2242
          %2244 = vrot.lane.b32.xlu0 %v2175, 96
          %v2245 = vpop.permute.xlu0 %2244
          %2246 = vrot.lane.b32.xlu0 %v2176, 96
          %v2247 = vpop.permute.xlu0 %2246
          %2248 = vrot.lane.b32.xlu0 %v2177, 96
          %v2249 = vpop.permute.xlu0 %2248
          %2250 = vrot.lane.b32.xlu0 %v2178, 96
          %v2251 = vpop.permute.xlu0 %2250
          %2252 = vrot.lane.b32.xlu0 %v2179, 96
          %v2253 = vpop.permute.xlu0 %2252
          %2254 = vrot.lane.b32.xlu0 %v2180, 96
          %v2255 = vpop.permute.xlu0 %2254
          %2256 = vrot.lane.b32.xlu0 %v2181, 96
          %v2257 = vpop.permute.xlu0 %2256
          %2258 = vrot.lane.b32.xlu0 %v2182, 96
          %v2259 = vpop.permute.xlu0 %2258
          %2260 = vrot.lane.b32.xlu0 %v2183, 96
          %v2261 = vpop.permute.xlu0 %2260
          %2262 = vrot.lane.b32.xlu0 %v2184, 96
          %v2263 = vpop.permute.xlu0 %2262
          %2264 = vrot.lane.b32.xlu0 %v2185, 96
          %v2265 = vpop.permute.xlu0 %2264
          %2266 = vrot.lane.b32.xlu0 %v2186, 96
          %v2267 = vpop.permute.xlu0 %2266
          %2268 = vrot.lane.b32.xlu0 %v2187, 96
          %v2269 = vpop.permute.xlu0 %2268
          %2270 = vrot.lane.b32.xlu0 %v2188, 96
          %v2271 = vpop.permute.xlu0 %2270
          %2272 = vrot.lane.b32.xlu0 %v2189, 96
          %v2273 = vpop.permute.xlu0 %2272
          %2274 = vrot.lane.b32.xlu0 %v2190, 96
          %v2275 = vpop.permute.xlu0 %2274
          %2276 = vrot.lane.b32.xlu0 %v2191, 96
          %v2277 = vpop.permute.xlu0 %2276
          %2278 = vrot.lane.b32.xlu0 %v2192, 96
          %v2279 = vpop.permute.xlu0 %2278
          %2280 = vrot.lane.b32.xlu0 %v2193, 96
          %v2281 = vpop.permute.xlu0 %2280
          %2282 = vrot.lane.b32.xlu0 %v2194, 96
          %v2283 = vpop.permute.xlu0 %2282
          %2284 = vrot.lane.b32.xlu0 %v2195, 96
          %v2285 = vpop.permute.xlu0 %2284
          %2286 = vrot.lane.b32.xlu0 %v2196, 96
          %v2287 = vpop.permute.xlu0 %2286
          %2288 = vrot.lane.b32.xlu0 %v2197, 96
          %v2289 = vpop.permute.xlu0 %2288
          %2290 = vrot.lane.b32.xlu0 %v2198, 96
          %v2291 = vpop.permute.xlu0 %2290
          %2292 = vrot.lane.b32.xlu0 %v2199, 96
          %v2293 = vpop.permute.xlu0 %2292
          %2294 = vrot.lane.b32.xlu0 %v2200, 96
          %v2295 = vpop.permute.xlu0 %2294
          %2296 = vrot.lane.b32.xlu0 %v2201, 96
          %v2297 = vpop.permute.xlu0 %2296
          %2330 = vst.msk [vmem:[#allocation3 + $0x8] sm:$0xff] %vm1625, %v2235
          %2331 = vst.msk [vmem:[#allocation3 + $0x20] sm:$0xff] %vm1625, %v2237
          %2332 = vst.msk [vmem:[#allocation3 + $0x38] sm:$0xff] %vm1625, %v2239
          %2333 = vst.msk [vmem:[#allocation3 + $0x50] sm:$0xff] %vm1625, %v2241
          %2334 = vst.msk [vmem:[#allocation3 + $0x68] sm:$0xff] %vm1625, %v2243
          %2335 = vst.msk [vmem:[#allocation3 + $0x80] sm:$0xff] %vm1625, %v2245
          %2336 = vst.msk [vmem:[#allocation3 + $0x98] sm:$0xff] %vm1625, %v2247
          %2337 = vst.msk [vmem:[#allocation3 + $0xb0] sm:$0xff] %vm1625, %v2249
          %2338 = vst.msk [vmem:[#allocation3 + $0xc8] sm:$0xff] %vm1625, %v2251
          %2339 = vst.msk [vmem:[#allocation3 + $0xe0] sm:$0xff] %vm1625, %v2253
          %2340 = vst.msk [vmem:[#allocation3 + $0xf8] sm:$0xff] %vm1625, %v2255
          %2341 = vst.msk [vmem:[#allocation3 + $0x110] sm:$0xff] %vm1625, %v2257
          %2342 = vst.msk [vmem:[#allocation3 + $0x128] sm:$0xff] %vm1625, %v2259
          %2343 = vst.msk [vmem:[#allocation3 + $0x140] sm:$0xff] %vm1625, %v2261
          %2344 = vst.msk [vmem:[#allocation3 + $0x158] sm:$0xff] %vm1625, %v2263
          %2345 = vst.msk [vmem:[#allocation3 + $0x170] sm:$0xff] %vm1625, %v2265
          %2346 = vst.msk [vmem:[#allocation3 + $0x188] sm:$0xff] %vm1625, %v2267
          %2347 = vst.msk [vmem:[#allocation3 + $0x1a0] sm:$0xff] %vm1625, %v2269
          %2348 = vst.msk [vmem:[#allocation3 + $0x1b8] sm:$0xff] %vm1625, %v2271
          %2349 = vst.msk [vmem:[#allocation3 + $0x1d0] sm:$0xff] %vm1625, %v2273
          %2350 = vst.msk [vmem:[#allocation3 + $0x1e8] sm:$0xff] %vm1625, %v2275
          %2351 = vst.msk [vmem:[#allocation3 + $0x200] sm:$0xff] %vm1625, %v2277
          %2352 = vst.msk [vmem:[#allocation3 + $0x218] sm:$0xff] %vm1625, %v2279
          %2353 = vst.msk [vmem:[#allocation3 + $0x230] sm:$0xff] %vm1625, %v2281
          %2354 = vst.msk [vmem:[#allocation3 + $0x248] sm:$0xff] %vm1625, %v2283
          %2355 = vst.msk [vmem:[#allocation3 + $0x260] sm:$0xff] %vm1625, %v2285
          %2356 = vst.msk [vmem:[#allocation3 + $0x278] sm:$0xff] %vm1625, %v2287
          %2357 = vst.msk [vmem:[#allocation3 + $0x290] sm:$0xff] %vm1625, %v2289
          %2358 = vst.msk [vmem:[#allocation3 + $0x2a8] sm:$0xff] %vm1625, %v2291
          %2359 = vst.msk [vmem:[#allocation3 + $0x2c0] sm:$0xff] %vm1625, %v2293
          %2360 = vst.msk [vmem:[#allocation3 + $0x2d8] sm:$0xff] %vm1625, %v2295
          %2361 = vst.msk [vmem:[#allocation3 + $0x2f0] sm:$0xff] %vm1625, %v2297
          %v2362 = vld [vmem:[#allocation2 + $0x29] sm:$0xff]
          %v2363 = vld [vmem:[#allocation2 + $0x31] sm:$0xff]
          %v2364 = vld [vmem:[#allocation2 + $0x39] sm:$0xff]
          %v2365 = vld [vmem:[#allocation2 + $0x41] sm:$0xff]
          %v2366 = vld [vmem:[#allocation2 + $0x49] sm:$0xff]
          %v2367 = vld [vmem:[#allocation2 + $0x51] sm:$0xff]
          %v2368 = vld [vmem:[#allocation2 + $0x59] sm:$0xff]
          %v2369 = vld [vmem:[#allocation2 + $0x61] sm:$0xff]
          %v2370 = vld [vmem:[#allocation2 + $0x69] sm:$0xff]
          %v2371 = vld [vmem:[#allocation2 + $0x71] sm:$0xff]
          %v2372 = vld [vmem:[#allocation2 + $0x79] sm:$0xff]
          %v2373 = vld [vmem:[#allocation2 + $0x81] sm:$0xff]
          %v2374 = vld [vmem:[#allocation2 + $0x89] sm:$0xff]
          %v2375 = vld [vmem:[#allocation2 + $0x91] sm:$0xff]
          %v2376 = vld [vmem:[#allocation2 + $0x99] sm:$0xff]
          %v2377 = vld [vmem:[#allocation2 + $0xa1] sm:$0xff]
          %v2378 = vld [vmem:[#allocation2 + $0xa9] sm:$0xff]
          %v2379 = vld [vmem:[#allocation2 + $0xb1] sm:$0xff]
          %v2380 = vld [vmem:[#allocation2 + $0xb9] sm:$0xff]
          %v2381 = vld [vmem:[#allocation2 + $0xc1] sm:$0xff]
          %v2382 = vld [vmem:[#allocation2 + $0xc9] sm:$0xff]
          %v2383 = vld [vmem:[#allocation2 + $0xd1] sm:$0xff]
          %v2384 = vld [vmem:[#allocation2 + $0xd9] sm:$0xff]
          %v2385 = vld [vmem:[#allocation2 + $0xe1] sm:$0xff]
          %v2386 = vld [vmem:[#allocation2 + $0xe9] sm:$0xff]
          %v2387 = vld [vmem:[#allocation2 + $0xf1] sm:$0xff]
          %v2388 = vld [vmem:[#allocation2 + $0xf9] sm:$0xff]
          %v2389 = vld [vmem:[#allocation2 + $0x101] sm:$0xff]
          %v2390 = vld [vmem:[#allocation2 + $0x109] sm:$0xff]
          %v2391 = vld [vmem:[#allocation2 + $0x111] sm:$0xff]
          %v2392 = vld [vmem:[#allocation2 + $0x119] sm:$0xff]
          %v2393 = vld [vmem:[#allocation2 + $0x121] sm:$0xff]
          %v2394 = vmul.f32 %v2362, %v1083
          %v2395 = vmul.f32 %v2363, %v1088
          %v2396 = vmul.f32 %v2364, %v1093
          %v2397 = vmul.f32 %v2365, %v1098
          %v2398 = vmul.f32 %v2366, %v1103
          %v2399 = vmul.f32 %v2367, %v1108
          %v2400 = vmul.f32 %v2368, %v1113
          %v2401 = vmul.f32 %v2369, %v1118
          %v2402 = vmul.f32 %v2370, %v1123
          %v2403 = vmul.f32 %v2371, %v1128
          %v2404 = vmul.f32 %v2372, %v1133
          %v2405 = vmul.f32 %v2373, %v1138
          %v2406 = vmul.f32 %v2374, %v1143
          %v2407 = vmul.f32 %v2375, %v1148
          %v2408 = vmul.f32 %v2376, %v1153
          %v2409 = vmul.f32 %v2377, %v1158
          %v2410 = vmul.f32 %v2378, %v1163
          %v2411 = vmul.f32 %v2379, %v1168
          %v2412 = vmul.f32 %v2380, %v1173
          %v2413 = vmul.f32 %v2381, %v1178
          %v2414 = vmul.f32 %v2382, %v1183
          %v2415 = vmul.f32 %v2383, %v1188
          %v2416 = vmul.f32 %v2384, %v1193
          %v2417 = vmul.f32 %v2385, %v1198
          %v2418 = vmul.f32 %v2386, %v1203
          %v2419 = vmul.f32 %v2387, %v1208
          %v2420 = vmul.f32 %v2388, %v1213
          %v2421 = vmul.f32 %v2389, %v1218
          %v2422 = vmul.f32 %v2390, %v1223
          %v2423 = vmul.f32 %v2391, %v1228
          %v2424 = vmul.f32 %v2392, %v1233
          %v2425 = vmul.f32 %v2393, %v1238
          %2426 = vst.msk [vmem:[#allocation3 + $0x10] sm:$0xff] %vm424, %v2394
          %2427 = vst.msk [vmem:[#allocation3 + $0x28] sm:$0xff] %vm424, %v2395
          %2428 = vst.msk [vmem:[#allocation3 + $0x40] sm:$0xff] %vm424, %v2396
          %2429 = vst.msk [vmem:[#allocation3 + $0x58] sm:$0xff] %vm424, %v2397
          %2430 = vst.msk [vmem:[#allocation3 + $0x70] sm:$0xff] %vm424, %v2398
          %2431 = vst.msk [vmem:[#allocation3 + $0x88] sm:$0xff] %vm424, %v2399
          %2432 = vst.msk [vmem:[#allocation3 + $0xa0] sm:$0xff] %vm424, %v2400
          %2433 = vst.msk [vmem:[#allocation3 + $0xb8] sm:$0xff] %vm424, %v2401
          %2434 = vst.msk [vmem:[#allocation3 + $0xd0] sm:$0xff] %vm424, %v2402
          %2435 = vst.msk [vmem:[#allocation3 + $0xe8] sm:$0xff] %vm424, %v2403
          %2436 = vst.msk [vmem:[#allocation3 + $0x100] sm:$0xff] %vm424, %v2404
          %2437 = vst.msk [vmem:[#allocation3 + $0x118] sm:$0xff] %vm424, %v2405
          %2438 = vst.msk [vmem:[#allocation3 + $0x130] sm:$0xff] %vm424, %v2406
          %2439 = vst.msk [vmem:[#allocation3 + $0x148] sm:$0xff] %vm424, %v2407
          %2440 = vst.msk [vmem:[#allocation3 + $0x160] sm:$0xff] %vm424, %v2408
          %2441 = vst.msk [vmem:[#allocation3 + $0x178] sm:$0xff] %vm424, %v2409
          %2442 = vst.msk [vmem:[#allocation3 + $0x190] sm:$0xff] %vm424, %v2410
          %2443 = vst.msk [vmem:[#allocation3 + $0x1a8] sm:$0xff] %vm424, %v2411
          %2444 = vst.msk [vmem:[#allocation3 + $0x1c0] sm:$0xff] %vm424, %v2412
          %2445 = vst.msk [vmem:[#allocation3 + $0x1d8] sm:$0xff] %vm424, %v2413
          %2446 = vst.msk [vmem:[#allocation3 + $0x1f0] sm:$0xff] %vm424, %v2414
          %2447 = vst.msk [vmem:[#allocation3 + $0x208] sm:$0xff] %vm424, %v2415
          %2448 = vst.msk [vmem:[#allocation3 + $0x220] sm:$0xff] %vm424, %v2416
          %2449 = vst.msk [vmem:[#allocation3 + $0x238] sm:$0xff] %vm424, %v2417
          %2450 = vst.msk [vmem:[#allocation3 + $0x250] sm:$0xff] %vm424, %v2418
          %2451 = vst.msk [vmem:[#allocation3 + $0x268] sm:$0xff] %vm424, %v2419
          %2452 = vst.msk [vmem:[#allocation3 + $0x280] sm:$0xff] %vm424, %v2420
          %2453 = vst.msk [vmem:[#allocation3 + $0x298] sm:$0xff] %vm424, %v2421
          %2454 = vst.msk [vmem:[#allocation3 + $0x2b0] sm:$0xff] %vm424, %v2422
          %2455 = vst.msk [vmem:[#allocation3 + $0x2c8] sm:$0xff] %vm424, %v2423
          %2456 = vst.msk [vmem:[#allocation3 + $0x2e0] sm:$0xff] %vm424, %v2424
          %2457 = vst.msk [vmem:[#allocation3 + $0x2f8] sm:$0xff] %vm424, %v2425
          %v2458 = vld [vmem:[#allocation3] sm:$0xff]
          %v2459 = vld [vmem:[#allocation3 + $0x8] sm:$0xff]
          %v2460 = vld [vmem:[#allocation3 + $0x10] sm:$0xff]
          %v2461 = vld [vmem:[#allocation3 + $0x18] sm:$0xff]
          %v2462 = vld [vmem:[#allocation3 + $0x20] sm:$0xff]
          %v2463 = vld [vmem:[#allocation3 + $0x28] sm:$0xff]
          %v2464 = vld [vmem:[#allocation3 + $0x30] sm:$0xff]
          %v2465 = vld [vmem:[#allocation3 + $0x38] sm:$0xff]
          %v2466 = vld [vmem:[#allocation3 + $0x40] sm:$0xff]
          %v2467 = vld [vmem:[#allocation3 + $0x48] sm:$0xff]
          %v2468 = vld [vmem:[#allocation3 + $0x50] sm:$0xff]
          %v2469 = vld [vmem:[#allocation3 + $0x58] sm:$0xff]
          %v2470 = vld [vmem:[#allocation3 + $0x60] sm:$0xff]
          %v2471 = vld [vmem:[#allocation3 + $0x68] sm:$0xff]
          %v2472 = vld [vmem:[#allocation3 + $0x70] sm:$0xff]
          %v2473 = vld [vmem:[#allocation3 + $0x78] sm:$0xff]
          %v2474 = vld [vmem:[#allocation3 + $0x80] sm:$0xff]
          %v2475 = vld [vmem:[#allocation3 + $0x88] sm:$0xff]
          %v2476 = vld [vmem:[#allocation3 + $0x90] sm:$0xff]
          %v2477 = vld [vmem:[#allocation3 + $0x98] sm:$0xff]
          %v2478 = vld [vmem:[#allocation3 + $0xa0] sm:$0xff]
          %v2479 = vld [vmem:[#allocation3 + $0xa8] sm:$0xff]
          %v2480 = vld [vmem:[#allocation3 + $0xb0] sm:$0xff]
          %v2481 = vld [vmem:[#allocation3 + $0xb8] sm:$0xff]
          %v2482 = vld [vmem:[#allocation3 + $0xc0] sm:$0xff]
          %v2483 = vld [vmem:[#allocation3 + $0xc8] sm:$0xff]
          %v2484 = vld [vmem:[#allocation3 + $0xd0] sm:$0xff]
          %v2485 = vld [vmem:[#allocation3 + $0xd8] sm:$0xff]
          %v2486 = vld [vmem:[#allocation3 + $0xe0] sm:$0xff]
          %v2487 = vld [vmem:[#allocation3 + $0xe8] sm:$0xff]
          %v2488 = vld [vmem:[#allocation3 + $0xf0] sm:$0xff]
          %v2489 = vld [vmem:[#allocation3 + $0xf8] sm:$0xff]
          %v2490 = vld [vmem:[#allocation3 + $0x100] sm:$0xff]
          %v2491 = vld [vmem:[#allocation3 + $0x108] sm:$0xff]
          %v2492 = vld [vmem:[#allocation3 + $0x110] sm:$0xff]
          %v2493 = vld [vmem:[#allocation3 + $0x118] sm:$0xff]
          %v2494 = vld [vmem:[#allocation3 + $0x120] sm:$0xff]
          %v2495 = vld [vmem:[#allocation3 + $0x128] sm:$0xff]
          %v2496 = vld [vmem:[#allocation3 + $0x130] sm:$0xff]
          %v2497 = vld [vmem:[#allocation3 + $0x138] sm:$0xff]
          %v2498 = vld [vmem:[#allocation3 + $0x140] sm:$0xff]
          %v2499 = vld [vmem:[#allocation3 + $0x148] sm:$0xff]
          %v2500 = vld [vmem:[#allocation3 + $0x150] sm:$0xff]
          %v2501 = vld [vmem:[#allocation3 + $0x158] sm:$0xff]
          %v2502 = vld [vmem:[#allocation3 + $0x160] sm:$0xff]
          %v2503 = vld [vmem:[#allocation3 + $0x168] sm:$0xff]
          %v2504 = vld [vmem:[#allocation3 + $0x170] sm:$0xff]
          %v2505 = vld [vmem:[#allocation3 + $0x178] sm:$0xff]
          %v2506 = vld [vmem:[#allocation3 + $0x180] sm:$0xff]
          %v2507 = vld [vmem:[#allocation3 + $0x188] sm:$0xff]
          %v2508 = vld [vmem:[#allocation3 + $0x190] sm:$0xff]
          %v2509 = vld [vmem:[#allocation3 + $0x198] sm:$0xff]
          %v2510 = vld [vmem:[#allocation3 + $0x1a0] sm:$0xff]
          %v2511 = vld [vmem:[#allocation3 + $0x1a8] sm:$0xff]
          %v2512 = vld [vmem:[#allocation3 + $0x1b0] sm:$0xff]
          %v2513 = vld [vmem:[#allocation3 + $0x1b8] sm:$0xff]
          %v2514 = vld [vmem:[#allocation3 + $0x1c0] sm:$0xff]
          %v2515 = vld [vmem:[#allocation3 + $0x1c8] sm:$0xff]
          %v2516 = vld [vmem:[#allocation3 + $0x1d0] sm:$0xff]
          %v2517 = vld [vmem:[#allocation3 + $0x1d8] sm:$0xff]
          %v2518 = vld [vmem:[#allocation3 + $0x1e0] sm:$0xff]
          %v2519 = vld [vmem:[#allocation3 + $0x1e8] sm:$0xff]
          %v2520 = vld [vmem:[#allocation3 + $0x1f0] sm:$0xff]
          %v2521 = vld [vmem:[#allocation3 + $0x1f8] sm:$0xff]
          %v2522 = vld [vmem:[#allocation3 + $0x200] sm:$0xff]
          %v2523 = vld [vmem:[#allocation3 + $0x208] sm:$0xff]
          %v2524 = vld [vmem:[#allocation3 + $0x210] sm:$0xff]
          %v2525 = vld [vmem:[#allocation3 + $0x218] sm:$0xff]
          %v2526 = vld [vmem:[#allocation3 + $0x220] sm:$0xff]
          %v2527 = vld [vmem:[#allocation3 + $0x228] sm:$0xff]
          %v2528 = vld [vmem:[#allocation3 + $0x230] sm:$0xff]
          %v2529 = vld [vmem:[#allocation3 + $0x238] sm:$0xff]
          %v2530 = vld [vmem:[#allocation3 + $0x240] sm:$0xff]
          %v2531 = vld [vmem:[#allocation3 + $0x248] sm:$0xff]
          %v2532 = vld [vmem:[#allocation3 + $0x250] sm:$0xff]
          %v2533 = vld [vmem:[#allocation3 + $0x258] sm:$0xff]
          %v2534 = vld [vmem:[#allocation3 + $0x260] sm:$0xff]
          %v2535 = vld [vmem:[#allocation3 + $0x268] sm:$0xff]
          %v2536 = vld [vmem:[#allocation3 + $0x270] sm:$0xff]
          %v2537 = vld [vmem:[#allocation3 + $0x278] sm:$0xff]
          %v2538 = vld [vmem:[#allocation3 + $0x280] sm:$0xff]
          %v2539 = vld [vmem:[#allocation3 + $0x288] sm:$0xff]
          %v2540 = vld [vmem:[#allocation3 + $0x290] sm:$0xff]
          %v2541 = vld [vmem:[#allocation3 + $0x298] sm:$0xff]
          %v2542 = vld [vmem:[#allocation3 + $0x2a0] sm:$0xff]
          %v2543 = vld [vmem:[#allocation3 + $0x2a8] sm:$0xff]
          %v2544 = vld [vmem:[#allocation3 + $0x2b0] sm:$0xff]
          %v2545 = vld [vmem:[#allocation3 + $0x2b8] sm:$0xff]
          %v2546 = vld [vmem:[#allocation3 + $0x2c0] sm:$0xff]
          %v2547 = vld [vmem:[#allocation3 + $0x2c8] sm:$0xff]
          %v2548 = vld [vmem:[#allocation3 + $0x2d0] sm:$0xff]
          %v2549 = vld [vmem:[#allocation3 + $0x2d8] sm:$0xff]
          %v2550 = vld [vmem:[#allocation3 + $0x2e0] sm:$0xff]
          %v2551 = vld [vmem:[#allocation3 + $0x2e8] sm:$0xff]
          %v2552 = vld [vmem:[#allocation3 + $0x2f0] sm:$0xff]
          %v2553 = vld [vmem:[#allocation3 + $0x2f8] sm:$0xff]
          %s2554 = smul.u32 %s594, 288
          %s2555 = scalar_lea.vmem [#allocation7], %s2554
          %v2556 = vld [vmem:[%s2555] sm:$0xff]
          %v2557 = vld [vmem:[%s2555 + $0x8] sm:$0xff]
          %v2558 = vld [vmem:[%s2555 + $0x10] sm:$0xff]
          %v2559 = vld [vmem:[%s2555 + $0x18] sm:$0xff]
          %v2560 = vld [vmem:[%s2555 + $0x20] sm:$0xff]
          %v2561 = vld [vmem:[%s2555 + $0x28] sm:$0xff]
          %v2562 = vld [vmem:[%s2555 + $0x30] sm:$0xff]
          %v2563 = vld [vmem:[%s2555 + $0x38] sm:$0xff]
          %v2564 = vld [vmem:[%s2555 + $0x40] sm:$0xff]
          %v2565 = vld [vmem:[%s2555 + $0x48] sm:$0xff]
          %v2566 = vld [vmem:[%s2555 + $0x50] sm:$0xff]
          %v2567 = vld [vmem:[%s2555 + $0x58] sm:$0xff]
          %v2568 = vld [vmem:[%s2555 + $0x60] sm:$0xff]
          %v2569 = vld [vmem:[%s2555 + $0x68] sm:$0xff]
          %v2570 = vld [vmem:[%s2555 + $0x70] sm:$0xff]
          %v2571 = vld [vmem:[%s2555 + $0x78] sm:$0xff]
          %v2572 = vld [vmem:[%s2555 + $0x80] sm:$0xff]
          %v2573 = vld [vmem:[%s2555 + $0x88] sm:$0xff]
          %v2574 = vld [vmem:[%s2555 + $0x90] sm:$0xff]
          %v2575 = vld [vmem:[%s2555 + $0x98] sm:$0xff]
          %v2576 = vld [vmem:[%s2555 + $0xa0] sm:$0xff]
          %v2577 = vld [vmem:[%s2555 + $0xa8] sm:$0xff]
          %v2578 = vld [vmem:[%s2555 + $0xb0] sm:$0xff]
          %v2579 = vld [vmem:[%s2555 + $0xb8] sm:$0xff]
          %v2580 = vld [vmem:[%s2555 + $0xc0] sm:$0xff]
          %v2581 = vld [vmem:[%s2555 + $0xc8] sm:$0xff]
          %v2582 = vld [vmem:[%s2555 + $0xd0] sm:$0xff]
          %v2583 = vld [vmem:[%s2555 + $0xd8] sm:$0xff]
          %v2584 = vld [vmem:[%s2555 + $0xe0] sm:$0xff]
          %v2585 = vld [vmem:[%s2555 + $0xe8] sm:$0xff]
          %v2586 = vld [vmem:[%s2555 + $0xf0] sm:$0xff]
          %v2587 = vld [vmem:[%s2555 + $0xf8] sm:$0xff]
          %v2588 = vld [vmem:[%s2555 + $0x100] sm:$0xff]
          %v2589 = vld [vmem:[%s2555 + $0x108] sm:$0xff]
          %v2590 = vld [vmem:[%s2555 + $0x110] sm:$0xff]
          %v2591 = vld [vmem:[%s2555 + $0x118] sm:$0xff]
          %s2592 = scalar_lea.vmem [#allocation9], %s594
          %v2593 = vld [vmem:[%s2592] sm:$0x1]
          %v2595 = vlaneseq
          %v2596 = vshrl.u32 %v2595, 7
          %v2597 = vsub.s32 0, %v2596
          %v2598 = vrot.slane %v2593, %v2597
          %v2601 = vsel %vm424, %v2460, 0
          %v2604 = vsel %vm424, %v2463, 0
          %v2607 = vsel %vm424, %v2466, 0
          %v2610 = vsel %vm424, %v2469, 0
          %v2613 = vsel %vm424, %v2472, 0
          %v2616 = vsel %vm424, %v2475, 0
          %v2619 = vsel %vm424, %v2478, 0
          %v2622 = vsel %vm424, %v2481, 0
          %v2625 = vsel %vm424, %v2484, 0
          %v2628 = vsel %vm424, %v2487, 0
          %v2631 = vsel %vm424, %v2490, 0
          %v2634 = vsel %vm424, %v2493, 0
          %v2637 = vsel %vm424, %v2496, 0
          %v2640 = vsel %vm424, %v2499, 0
          %v2643 = vsel %vm424, %v2502, 0
          %v2646 = vsel %vm424, %v2505, 0
          %v2649 = vsel %vm424, %v2508, 0
          %v2652 = vsel %vm424, %v2511, 0
          %v2655 = vsel %vm424, %v2514, 0
          %v2658 = vsel %vm424, %v2517, 0
          %v2661 = vsel %vm424, %v2520, 0
          %v2664 = vsel %vm424, %v2523, 0
          %v2667 = vsel %vm424, %v2526, 0
          %v2670 = vsel %vm424, %v2529, 0
          %v2673 = vsel %vm424, %v2532, 0
          %v2676 = vsel %vm424, %v2535, 0
          %v2679 = vsel %vm424, %v2538, 0
          %v2682 = vsel %vm424, %v2541, 0
          %v2685 = vsel %vm424, %v2544, 0
          %v2688 = vsel %vm424, %v2547, 0
          %v2691 = vsel %vm424, %v2550, 0
          %v2694 = vsel %vm424, %v2553, 0
          %2696 = vmatprep.subr.mxu0 0.0
          %2697 = vmatpush1.msra.mxu0 %v2556
          %2698 = vmatprep.subr.mxu0 0.0
          %2699 = vmatpush1.msra.mxu0 %v2557
          %2700 = vmatprep.subr.mxu0 0.0
          %2701 = vmatpush1.msra.mxu0 %v2558
          %2702 = vmatprep.subr.mxu0 0.0
          %2703 = vmatpush1.msra.mxu0 %v2559
          %2704 = vmatprep.subr.mxu0 0.0
          %2705 = vmatpush1.msra.mxu0 %v2560
          %2706 = vmatprep.subr.mxu0 0.0
          %2707 = vmatpush1.msra.mxu0 %v2561
          %2708 = vmatprep.subr.mxu0 0.0
          %2709 = vmatpush1.msra.mxu0 %v2562
          %2710 = vmatprep.subr.mxu0 0.0
          %2711 = vmatpush1.msra.mxu0 %v2563
          %2712 = vmatprep.subr.mxu0 0.0
          %2713 = vmatpush1.msra.mxu0 %v2564
          %2714 = vmatprep.subr.mxu0 0.0
          %2715 = vmatpush1.msra.mxu0 %v2565
          %2716 = vmatprep.subr.mxu0 0.0
          %2717 = vmatpush1.msra.mxu0 %v2566
          %2718 = vmatprep.subr.mxu0 0.0
          %2719 = vmatpush1.msra.mxu0 %v2567
          %2720 = vmatprep.subr.mxu0 0.0
          %2721 = vmatpush1.msra.mxu0 %v2568
          %2722 = vmatprep.subr.mxu0 0.0
          %2723 = vmatpush1.msra.mxu0 %v2569
          %2724 = vmatprep.subr.mxu0 0.0
          %2725 = vmatpush1.msra.mxu0 %v2570
          %2726 = vmatprep.subr.mxu0 0.0
          %2727 = vmatpush1.msra.mxu0 %v2571
          %2728 = vmatprep.subr.mxu0 0.0
          %2729 = vmatpush1.msra.mxu0 %v2572
          %2730 = vmatprep.subr.mxu0 0.0
          %2731 = vmatpush1.msra.mxu0 %v2573
          %2732 = vmatprep.subr.mxu0 0.0
          %2733 = vmatpush1.msra.mxu0 %v2574
          %2734 = vmatprep.subr.mxu0 0.0
          %2735 = vmatpush1.msra.mxu0 %v2575
          %2736 = vmatprep.subr.mxu0 0.0
          %2737 = vmatpush1.msra.mxu0 %v2576
          %2738 = vmatprep.subr.mxu0 0.0
          %2739 = vmatpush1.msra.mxu0 %v2577
          %2740 = vmatprep.subr.mxu0 0.0
          %2741 = vmatpush1.msra.mxu0 %v2578
          %2742 = vmatprep.subr.mxu0 0.0
          %2743 = vmatpush1.msra.mxu0 %v2579
          %2744 = vmatprep.subr.mxu0 0.0
          %2745 = vmatpush1.msra.mxu0 %v2580
          %2746 = vmatprep.subr.mxu0 0.0
          %2747 = vmatpush1.msra.mxu0 %v2581
          %2748 = vmatprep.subr.mxu0 0.0
          %2749 = vmatpush1.msra.mxu0 %v2582
          %2750 = vmatprep.subr.mxu0 0.0
          %2751 = vmatpush1.msra.mxu0 %v2583
          %2752 = vmatprep.subr.mxu0 0.0
          %2753 = vmatpush1.msra.mxu0 %v2584
          %2754 = vmatprep.subr.mxu0 0.0
          %2755 = vmatpush1.msra.mxu0 %v2585
          %2756 = vmatprep.subr.mxu0 0.0
          %2757 = vmatpush1.msra.mxu0 %v2586
          %2758 = vmatprep.subr.mxu0 0.0
          %2759 = vmatpush1.msra.mxu0 %v2587
          %2760 = vmatprep.mubr.f32.mxu0 %v2459
          %2761 = vmatmul.mubr.f32.gmra.mrb[0].mxu0 %v2458
          %v2762 = vpop.f32.mrb[0].mxu0
          %v2763 = vadd.f32 %v2598, %v2762
          %v2764 = vpop.f32.mrb[0].mxu0
          %2765 = vmatprep.mubr.f32.mxu0 %v2462
          %2766 = vmatmul.mubr.f32.gmra.mrb[0].mxu0 %v2461
          %v2767 = vpop.f32.mrb[0].mxu0
          %v2768 = vadd.f32 %v2598, %v2767
          %v2769 = vpop.f32.mrb[0].mxu0
          %2770 = vmatprep.mubr.f32.mxu0 %v2465
          %2771 = vmatmul.mubr.f32.gmra.mrb[0].mxu0 %v2464
          %v2772 = vpop.f32.mrb[0].mxu0
          %v2773 = vadd.f32 %v2598, %v2772
          %v2774 = vpop.f32.mrb[0].mxu0
          %2775 = vmatprep.mubr.f32.mxu0 %v2468
          %2776 = vmatmul.mubr.f32.gmra.mrb[0].mxu0 %v2467
          %v2777 = vpop.f32.mrb[0].mxu0
          %v2778 = vadd.f32 %v2598, %v2777
          %v2779 = vpop.f32.mrb[0].mxu0
          %2780 = vmatprep.mubr.f32.mxu0 %v2471
          %2781 = vmatmul.mubr.f32.gmra.mrb[0].mxu0 %v2470
          %v2782 = vpop.f32.mrb[0].mxu0
          %v2783 = vadd.f32 %v2598, %v2782
          %v2784 = vpop.f32.mrb[0].mxu0
          %2785 = vmatprep.mubr.f32.mxu0 %v2474
          %2786 = vmatmul.mubr.f32.gmra.mrb[0].mxu0 %v2473
          %v2787 = vpop.f32.mrb[0].mxu0
          %v2788 = vadd.f32 %v2598, %v2787
          %v2789 = vpop.f32.mrb[0].mxu0
          %2790 = vmatprep.mubr.f32.mxu0 %v2477
          %2791 = vmatmul.mubr.f32.gmra.mrb[0].mxu0 %v2476
          %v2792 = vpop.f32.mrb[0].mxu0
          %v2793 = vadd.f32 %v2598, %v2792
          %v2794 = vpop.f32.mrb[0].mxu0
          %2795 = vmatprep.mubr.f32.mxu0 %v2480
          %2796 = vmatmul.mubr.f32.gmra.mrb[0].mxu0 %v2479
          %v2797 = vpop.f32.mrb[0].mxu0
          %v2798 = vadd.f32 %v2598, %v2797
          %v2799 = vpop.f32.mrb[0].mxu0
          %2800 = vmatprep.mubr.f32.mxu0 %v2483
          %2801 = vmatmul.mubr.f32.gmra.mrb[0].mxu0 %v2482
          %v2802 = vpop.f32.mrb[0].mxu0
          %v2803 = vadd.f32 %v2598, %v2802
          %v2804 = vpop.f32.mrb[0].mxu0
          %2805 = vmatprep.mubr.f32.mxu0 %v2486
          %2806 = vmatmul.mubr.f32.gmra.mrb[0].mxu0 %v2485
          %v2807 = vpop.f32.mrb[0].mxu0
          %v2808 = vadd.f32 %v2598, %v2807
          %v2809 = vpop.f32.mrb[0].mxu0
          %2810 = vmatprep.mubr.f32.mxu0 %v2489
          %2811 = vmatmul.mubr.f32.gmra.mrb[0].mxu0 %v2488
          %v2812 = vpop.f32.mrb[0].mxu0
          %v2813 = vadd.f32 %v2598, %v2812
          %v2814 = vpop.f32.mrb[0].mxu0
          %2815 = vmatprep.mubr.f32.mxu0 %v2492
          %2816 = vmatmul.mubr.f32.gmra.mrb[0].mxu0 %v2491
          %v2817 = vpop.f32.mrb[0].mxu0
          %v2818 = vadd.f32 %v2598, %v2817
          %v2819 = vpop.f32.mrb[0].mxu0
          %2820 = vmatprep.mubr.f32.mxu0 %v2495
          %2821 = vmatmul.mubr.f32.gmra.mrb[0].mxu0 %v2494
          %v2822 = vpop.f32.mrb[0].mxu0
          %v2823 = vadd.f32 %v2598, %v2822
          %v2824 = vpop.f32.mrb[0].mxu0
          %2825 = vmatprep.mubr.f32.mxu0 %v2498
          %2826 = vmatmul.mubr.f32.gmra.mrb[0].mxu0 %v2497
          %v2827 = vpop.f32.mrb[0].mxu0
          %v2828 = vadd.f32 %v2598, %v2827
          %v2829 = vpop.f32.mrb[0].mxu0
          %2830 = vmatprep.mubr.f32.mxu0 %v2501
          %2831 = vmatmul.mubr.f32.gmra.mrb[0].mxu0 %v2500
          %v2832 = vpop.f32.mrb[0].mxu0
          %v2833 = vadd.f32 %v2598, %v2832
          %v2834 = vpop.f32.mrb[0].mxu0
          %2835 = vmatprep.mubr.f32.mxu0 %v2504
          %2836 = vmatmul.mubr.f32.gmra.mrb[0].mxu0 %v2503
          %v2837 = vpop.f32.mrb[0].mxu0
          %v2838 = vadd.f32 %v2598, %v2837
          %v2839 = vpop.f32.mrb[0].mxu0
          %2840 = vmatprep.mubr.f32.mxu0 %v2507
          %2841 = vmatmul.mubr.f32.gmra.mrb[0].mxu0 %v2506
          %v2842 = vpop.f32.mrb[0].mxu0
          %v2843 = vadd.f32 %v2598, %v2842
          %v2844 = vpop.f32.mrb[0].mxu0
          %2845 = vmatprep.mubr.f32.mxu0 %v2510
          %2846 = vmatmul.mubr.f32.gmra.mrb[0].mxu0 %v2509
          %v2847 = vpop.f32.mrb[0].mxu0
          %v2848 = vadd.f32 %v2598, %v2847
          %v2849 = vpop.f32.mrb[0].mxu0
          %2850 = vmatprep.mubr.f32.mxu0 %v2513
          %2851 = vmatmul.mubr.f32.gmra.mrb[0].mxu0 %v2512
          %v2852 = vpop.f32.mrb[0].mxu0
          %v2853 = vadd.f32 %v2598, %v2852
          %v2854 = vpop.f32.mrb[0].mxu0
          %2855 = vmatprep.mubr.f32.mxu0 %v2516
          %2856 = vmatmul.mubr.f32.gmra.mrb[0].mxu0 %v2515
          %v2857 = vpop.f32.mrb[0].mxu0
          %v2858 = vadd.f32 %v2598, %v2857
          %v2859 = vpop.f32.mrb[0].mxu0
          %2860 = vmatprep.mubr.f32.mxu0 %v2519
          %2861 = vmatmul.mubr.f32.gmra.mrb[0].mxu0 %v2518
          %v2862 = vpop.f32.mrb[0].mxu0
          %v2863 = vadd.f32 %v2598, %v2862
          %v2864 = vpop.f32.mrb[0].mxu0
          %2865 = vmatprep.mubr.f32.mxu0 %v2522
          %2866 = vmatmul.mubr.f32.gmra.mrb[0].mxu0 %v2521
          %v2867 = vpop.f32.mrb[0].mxu0
          %v2868 = vadd.f32 %v2598, %v2867
          %v2869 = vpop.f32.mrb[0].mxu0
          %2870 = vmatprep.mubr.f32.mxu0 %v2525
          %2871 = vmatmul.mubr.f32.gmra.mrb[0].mxu0 %v2524
          %v2872 = vpop.f32.mrb[0].mxu0
          %v2873 = vadd.f32 %v2598, %v2872
          %v2874 = vpop.f32.mrb[0].mxu0
          %2875 = vmatprep.mubr.f32.mxu0 %v2528
          %2876 = vmatmul.mubr.f32.gmra.mrb[0].mxu0 %v2527
          %v2877 = vpop.f32.mrb[0].mxu0
          %v2878 = vadd.f32 %v2598, %v2877
          %v2879 = vpop.f32.mrb[0].mxu0
          %2880 = vmatprep.mubr.f32.mxu0 %v2531
          %2881 = vmatmul.mubr.f32.gmra.mrb[0].mxu0 %v2530
          %v2882 = vpop.f32.mrb[0].mxu0
          %v2883 = vadd.f32 %v2598, %v2882
          %v2884 = vpop.f32.mrb[0].mxu0
          %2885 = vmatprep.mubr.f32.mxu0 %v2534
          %2886 = vmatmul.mubr.f32.gmra.mrb[0].mxu0 %v2533
          %v2887 = vpop.f32.mrb[0].mxu0
          %v2888 = vadd.f32 %v2598, %v2887
          %v2889 = vpop.f32.mrb[0].mxu0
          %2890 = vmatprep.mubr.f32.mxu0 %v2537
          %2891 = vmatmul.mubr.f32.gmra.mrb[0].mxu0 %v2536
          %v2892 = vpop.f32.mrb[0].mxu0
          %v2893 = vadd.f32 %v2598, %v2892
          %v2894 = vpop.f32.mrb[0].mxu0
          %2895 = vmatprep.mubr.f32.mxu0 %v2540
          %2896 = vmatmul.mubr.f32.gmra.mrb[0].mxu0 %v2539
          %v2897 = vpop.f32.mrb[0].mxu0
          %v2898 = vadd.f32 %v2598, %v2897
          %v2899 = vpop.f32.mrb[0].mxu0
          %2900 = vmatprep.mubr.f32.mxu0 %v2543
          %2901 = vmatmul.mubr.f32.gmra.mrb[0].mxu0 %v2542
          %v2902 = vpop.f32.mrb[0].mxu0
          %v2903 = vadd.f32 %v2598, %v2902
          %v2904 = vpop.f32.mrb[0].mxu0
          %2905 = vmatprep.mubr.f32.mxu0 %v2546
          %2906 = vmatmul.mubr.f32.gmra.mrb[0].mxu0 %v2545
          %v2907 = vpop.f32.mrb[0].mxu0
          %v2908 = vadd.f32 %v2598, %v2907
          %v2909 = vpop.f32.mrb[0].mxu0
          %2910 = vmatprep.mubr.f32.mxu0 %v2549
          %2911 = vmatmul.mubr.f32.gmra.mrb[0].mxu0 %v2548
          %v2912 = vpop.f32.mrb[0].mxu0
          %v2913 = vadd.f32 %v2598, %v2912
          %v2914 = vpop.f32.mrb[0].mxu0
          %2915 = vmatprep.mubr.f32.mxu0 %v2552
          %2916 = vmatmul.mubr.f32.gmra.mrb[0].mxu0 %v2551
          %v2917 = vpop.f32.mrb[0].mxu0
          %v2918 = vadd.f32 %v2598, %v2917
          %v2919 = vpop.f32.mrb[0].mxu0
          %2920 = vdwg.mxu0
          %2921 = vmatprep.subr.mxu0 0.0
          %2922 = vmatpush1.msra.mxu0 %v2588
          %2923 = vmatprep.subr.mxu0 0.0
          %2924 = vmatpush1.msra.mxu0 %v2589
          %2925 = vmatprep.subr.mxu0 0.0
          %2926 = vmatpush1.msra.mxu0 %v2590
          %2927 = vmatprep.subr.mxu0 0.0
          %2928 = vmatpush1.msra.mxu0 %v2591
          %2929 = vmatprep.subr.mxu0 0.0
          %2930 = vmatpush1.msra.mxu0 0.0
          %2931 = vmatprep.subr.mxu0 0.0
          %2932 = vmatpush1.msra.mxu0 0.0
          %2933 = vmatprep.subr.mxu0 0.0
          %2934 = vmatpush1.msra.mxu0 0.0
          %2935 = vmatprep.subr.mxu0 0.0
          %2936 = vmatpush1.msra.mxu0 0.0
          %2937 = vmatprep.subr.mxu0 0.0
          %2938 = vmatpush1.msra.mxu0 0.0
          %2939 = vmatprep.subr.mxu0 0.0
          %2940 = vmatpush1.msra.mxu0 0.0
          %2941 = vmatprep.subr.mxu0 0.0
          %2942 = vmatpush1.msra.mxu0 0.0
          %2943 = vmatprep.subr.mxu0 0.0
          %2944 = vmatpush1.msra.mxu0 0.0
          %2945 = vmatprep.subr.mxu0 0.0
          %2946 = vmatpush1.msra.mxu0 0.0
          %2947 = vmatprep.subr.mxu0 0.0
          %2948 = vmatpush1.msra.mxu0 0.0
          %2949 = vmatprep.subr.mxu0 0.0
          %2950 = vmatpush1.msra.mxu0 0.0
          %2951 = vmatprep.subr.mxu0 0.0
          %2952 = vmatpush1.msra.mxu0 0.0
          %2953 = vmatprep.subr.mxu0 0.0
          %2954 = vmatpush1.msra.mxu0 0.0
          %2955 = vmatprep.subr.mxu0 0.0
          %2956 = vmatpush1.msra.mxu0 0.0
          %2957 = vmatprep.subr.mxu0 0.0
          %2958 = vmatpush1.msra.mxu0 0.0
          %2959 = vmatprep.subr.mxu0 0.0
          %2960 = vmatpush1.msra.mxu0 0.0
          %2961 = vmatprep.subr.mxu0 0.0
          %2962 = vmatpush1.msra.mxu0 0.0
          %2963 = vmatprep.subr.mxu0 0.0
          %2964 = vmatpush1.msra.mxu0 0.0
          %2965 = vmatprep.subr.mxu0 0.0
          %2966 = vmatpush1.msra.mxu0 0.0
          %2967 = vmatprep.subr.mxu0 0.0
          %2968 = vmatpush1.msra.mxu0 0.0
          %2969 = vmatprep.subr.mxu0 0.0
          %2970 = vmatpush1.msra.mxu0 0.0
          %2971 = vmatprep.subr.mxu0 0.0
          %2972 = vmatpush1.msra.mxu0 0.0
          %2973 = vmatprep.subr.mxu0 0.0
          %2974 = vmatpush1.msra.mxu0 0.0
          %2975 = vmatprep.subr.mxu0 0.0
          %2976 = vmatpush1.msra.mxu0 0.0
          %2977 = vmatprep.subr.mxu0 0.0
          %2978 = vmatpush1.msra.mxu0 0.0
          %2979 = vmatprep.subr.mxu0 0.0
          %2980 = vmatpush1.msra.mxu0 0.0
          %2981 = vmatprep.subr.mxu0 0.0
          %2982 = vmatpush1.msra.mxu0 0.0
          %2983 = vmatprep.subr.mxu0 0.0
          %2984 = vmatpush1.msra.mxu0 0.0
          %2985 = vmatprep.mubr.f32.mxu0 0.0
          %2986 = vmatmul.mubr.f32.gmra.mrb[0].mxu0 %v2601
          %v2987 = vpop.f32.mrb[0].mxu0
          %v2988 = vadd.f32 %v2763, %v2987
          %v2989 = vpop.f32.mrb[0].mxu0
          %2990 = vmatprep.mubr.f32.mxu0 0.0
          %2991 = vmatmul.mubr.f32.gmra.mrb[0].mxu0 %v2604
          %v2992 = vpop.f32.mrb[0].mxu0
          %v2993 = vadd.f32 %v2768, %v2992
          %v2994 = vpop.f32.mrb[0].mxu0
          %2995 = vmatprep.mubr.f32.mxu0 0.0
          %2996 = vmatmul.mubr.f32.gmra.mrb[0].mxu0 %v2607
          %v2997 = vpop.f32.mrb[0].mxu0
          %v2998 = vadd.f32 %v2773, %v2997
          %v2999 = vpop.f32.mrb[0].mxu0
          %3000 = vmatprep.mubr.f32.mxu0 0.0
          %3001 = vmatmul.mubr.f32.gmra.mrb[0].mxu0 %v2610
          %v3002 = vpop.f32.mrb[0].mxu0
          %v3003 = vadd.f32 %v2778, %v3002
          %v3004 = vpop.f32.mrb[0].mxu0
          %3005 = vmatprep.mubr.f32.mxu0 0.0
          %3006 = vmatmul.mubr.f32.gmra.mrb[0].mxu0 %v2613
          %v3007 = vpop.f32.mrb[0].mxu0
          %v3008 = vadd.f32 %v2783, %v3007
          %v3009 = vpop.f32.mrb[0].mxu0
          %3010 = vmatprep.mubr.f32.mxu0 0.0
          %3011 = vmatmul.mubr.f32.gmra.mrb[0].mxu0 %v2616
          %v3012 = vpop.f32.mrb[0].mxu0
          %v3013 = vadd.f32 %v2788, %v3012
          %v3014 = vpop.f32.mrb[0].mxu0
          %3015 = vmatprep.mubr.f32.mxu0 0.0
          %3016 = vmatmul.mubr.f32.gmra.mrb[0].mxu0 %v2619
          %v3017 = vpop.f32.mrb[0].mxu0
          %v3018 = vadd.f32 %v2793, %v3017
          %v3019 = vpop.f32.mrb[0].mxu0
          %3020 = vmatprep.mubr.f32.mxu0 0.0
          %3021 = vmatmul.mubr.f32.gmra.mrb[0].mxu0 %v2622
          %v3022 = vpop.f32.mrb[0].mxu0
          %v3023 = vadd.f32 %v2798, %v3022
          %v3024 = vpop.f32.mrb[0].mxu0
          %3025 = vmatprep.mubr.f32.mxu0 0.0
          %3026 = vmatmul.mubr.f32.gmra.mrb[0].mxu0 %v2625
          %v3027 = vpop.f32.mrb[0].mxu0
          %v3028 = vadd.f32 %v2803, %v3027
          %v3029 = vpop.f32.mrb[0].mxu0
          %3030 = vmatprep.mubr.f32.mxu0 0.0
          %3031 = vmatmul.mubr.f32.gmra.mrb[0].mxu0 %v2628
          %v3032 = vpop.f32.mrb[0].mxu0
          %v3033 = vadd.f32 %v2808, %v3032
          %v3034 = vpop.f32.mrb[0].mxu0
          %3035 = vmatprep.mubr.f32.mxu0 0.0
          %3036 = vmatmul.mubr.f32.gmra.mrb[0].mxu0 %v2631
          %v3037 = vpop.f32.mrb[0].mxu0
          %v3038 = vadd.f32 %v2813, %v3037
          %v3039 = vpop.f32.mrb[0].mxu0
          %3040 = vmatprep.mubr.f32.mxu0 0.0
          %3041 = vmatmul.mubr.f32.gmra.mrb[0].mxu0 %v2634
          %v3042 = vpop.f32.mrb[0].mxu0
          %v3043 = vadd.f32 %v2818, %v3042
          %v3044 = vpop.f32.mrb[0].mxu0
          %3045 = vmatprep.mubr.f32.mxu0 0.0
          %3046 = vmatmul.mubr.f32.gmra.mrb[0].mxu0 %v2637
          %v3047 = vpop.f32.mrb[0].mxu0
          %v3048 = vadd.f32 %v2823, %v3047
          %v3049 = vpop.f32.mrb[0].mxu0
          %3050 = vmatprep.mubr.f32.mxu0 0.0
          %3051 = vmatmul.mubr.f32.gmra.mrb[0].mxu0 %v2640
          %v3052 = vpop.f32.mrb[0].mxu0
          %v3053 = vadd.f32 %v2828, %v3052
          %v3054 = vpop.f32.mrb[0].mxu0
          %3055 = vmatprep.mubr.f32.mxu0 0.0
          %3056 = vmatmul.mubr.f32.gmra.mrb[0].mxu0 %v2643
          %v3057 = vpop.f32.mrb[0].mxu0
          %v3058 = vadd.f32 %v2833, %v3057
          %v3059 = vpop.f32.mrb[0].mxu0
          %3060 = vmatprep.mubr.f32.mxu0 0.0
          %3061 = vmatmul.mubr.f32.gmra.mrb[0].mxu0 %v2646
          %v3062 = vpop.f32.mrb[0].mxu0
          %v3063 = vadd.f32 %v2838, %v3062
          %v3064 = vpop.f32.mrb[0].mxu0
          %3065 = vmatprep.mubr.f32.mxu0 0.0
          %3066 = vmatmul.mubr.f32.gmra.mrb[0].mxu0 %v2649
          %v3067 = vpop.f32.mrb[0].mxu0
          %v3068 = vadd.f32 %v2843, %v3067
          %v3069 = vpop.f32.mrb[0].mxu0
          %3070 = vmatprep.mubr.f32.mxu0 0.0
          %3071 = vmatmul.mubr.f32.gmra.mrb[0].mxu0 %v2652
          %v3072 = vpop.f32.mrb[0].mxu0
          %v3073 = vadd.f32 %v2848, %v3072
          %v3074 = vpop.f32.mrb[0].mxu0
          %3075 = vmatprep.mubr.f32.mxu0 0.0
          %3076 = vmatmul.mubr.f32.gmra.mrb[0].mxu0 %v2655
          %v3077 = vpop.f32.mrb[0].mxu0
          %v3078 = vadd.f32 %v2853, %v3077
          %v3079 = vpop.f32.mrb[0].mxu0
          %3080 = vmatprep.mubr.f32.mxu0 0.0
          %3081 = vmatmul.mubr.f32.gmra.mrb[0].mxu0 %v2658
          %v3082 = vpop.f32.mrb[0].mxu0
          %v3083 = vadd.f32 %v2858, %v3082
          %v3084 = vpop.f32.mrb[0].mxu0
          %3085 = vmatprep.mubr.f32.mxu0 0.0
          %3086 = vmatmul.mubr.f32.gmra.mrb[0].mxu0 %v2661
          %v3087 = vpop.f32.mrb[0].mxu0
          %v3088 = vadd.f32 %v2863, %v3087
          %v3089 = vpop.f32.mrb[0].mxu0
          %3090 = vmatprep.mubr.f32.mxu0 0.0
          %3091 = vmatmul.mubr.f32.gmra.mrb[0].mxu0 %v2664
          %v3092 = vpop.f32.mrb[0].mxu0
          %v3093 = vadd.f32 %v2868, %v3092
          %v3094 = vpop.f32.mrb[0].mxu0
          %3095 = vmatprep.mubr.f32.mxu0 0.0
          %3096 = vmatmul.mubr.f32.gmra.mrb[0].mxu0 %v2667
          %v3097 = vpop.f32.mrb[0].mxu0
          %v3098 = vadd.f32 %v2873, %v3097
          %v3099 = vpop.f32.mrb[0].mxu0
          %3100 = vmatprep.mubr.f32.mxu0 0.0
          %3101 = vmatmul.mubr.f32.gmra.mrb[0].mxu0 %v2670
          %v3102 = vpop.f32.mrb[0].mxu0
          %v3103 = vadd.f32 %v2878, %v3102
          %v3104 = vpop.f32.mrb[0].mxu0
          %3105 = vmatprep.mubr.f32.mxu0 0.0
          %3106 = vmatmul.mubr.f32.gmra.mrb[0].mxu0 %v2673
          %v3107 = vpop.f32.mrb[0].mxu0
          %v3108 = vadd.f32 %v2883, %v3107
          %v3109 = vpop.f32.mrb[0].mxu0
          %3110 = vmatprep.mubr.f32.mxu0 0.0
          %3111 = vmatmul.mubr.f32.gmra.mrb[0].mxu0 %v2676
          %v3112 = vpop.f32.mrb[0].mxu0
          %v3113 = vadd.f32 %v2888, %v3112
          %v3114 = vpop.f32.mrb[0].mxu0
          %3115 = vmatprep.mubr.f32.mxu0 0.0
          %3116 = vmatmul.mubr.f32.gmra.mrb[0].mxu0 %v2679
          %v3117 = vpop.f32.mrb[0].mxu0
          %v3118 = vadd.f32 %v2893, %v3117
          %v3119 = vpop.f32.mrb[0].mxu0
          %3120 = vmatprep.mubr.f32.mxu0 0.0
          %3121 = vmatmul.mubr.f32.gmra.mrb[0].mxu0 %v2682
          %v3122 = vpop.f32.mrb[0].mxu0
          %v3123 = vadd.f32 %v2898, %v3122
          %v3124 = vpop.f32.mrb[0].mxu0
          %3125 = vmatprep.mubr.f32.mxu0 0.0
          %3126 = vmatmul.mubr.f32.gmra.mrb[0].mxu0 %v2685
          %v3127 = vpop.f32.mrb[0].mxu0
          %v3128 = vadd.f32 %v2903, %v3127
          %v3129 = vpop.f32.mrb[0].mxu0
          %3130 = vmatprep.mubr.f32.mxu0 0.0
          %3131 = vmatmul.mubr.f32.gmra.mrb[0].mxu0 %v2688
          %v3132 = vpop.f32.mrb[0].mxu0
          %v3133 = vadd.f32 %v2908, %v3132
          %v3134 = vpop.f32.mrb[0].mxu0
          %3135 = vmatprep.mubr.f32.mxu0 0.0
          %3136 = vmatmul.mubr.f32.gmra.mrb[0].mxu0 %v2691
          %v3137 = vpop.f32.mrb[0].mxu0
          %v3138 = vadd.f32 %v2913, %v3137
          %v3139 = vpop.f32.mrb[0].mxu0
          %3140 = vmatprep.mubr.f32.mxu0 0.0
          %3141 = vmatmul.mubr.f32.gmra.mrb[0].mxu0 %v2694
          %v3142 = vpop.f32.mrb[0].mxu0
          %v3143 = vadd.f32 %v2918, %v3142
          %v3144 = vpop.f32.mrb[0].mxu0
          %3145 = vdwg.mxu0
          %vm3146 = vcmp.gt.f32.partialorder %v2988, 0.0
          %vm3147 = vcmp.gt.f32.partialorder %v2993, 0.0
          %vm3148 = vcmp.gt.f32.partialorder %v2998, 0.0
          %vm3149 = vcmp.gt.f32.partialorder %v3003, 0.0
          %vm3150 = vcmp.gt.f32.partialorder %v3008, 0.0
          %vm3151 = vcmp.gt.f32.partialorder %v3013, 0.0
          %vm3152 = vcmp.gt.f32.partialorder %v3018, 0.0
          %vm3153 = vcmp.gt.f32.partialorder %v3023, 0.0
          %vm3154 = vcmp.gt.f32.partialorder %v3028, 0.0
          %vm3155 = vcmp.gt.f32.partialorder %v3033, 0.0
          %vm3156 = vcmp.gt.f32.partialorder %v3038, 0.0
          %vm3157 = vcmp.gt.f32.partialorder %v3043, 0.0
          %vm3158 = vcmp.gt.f32.partialorder %v3048, 0.0
          %vm3159 = vcmp.gt.f32.partialorder %v3053, 0.0
          %vm3160 = vcmp.gt.f32.partialorder %v3058, 0.0
          %vm3161 = vcmp.gt.f32.partialorder %v3063, 0.0
          %vm3162 = vcmp.gt.f32.partialorder %v3068, 0.0
          %vm3163 = vcmp.gt.f32.partialorder %v3073, 0.0
          %vm3164 = vcmp.gt.f32.partialorder %v3078, 0.0
          %vm3165 = vcmp.gt.f32.partialorder %v3083, 0.0
          %vm3166 = vcmp.gt.f32.partialorder %v3088, 0.0
          %vm3167 = vcmp.gt.f32.partialorder %v3093, 0.0
          %vm3168 = vcmp.gt.f32.partialorder %v3098, 0.0
          %vm3169 = vcmp.gt.f32.partialorder %v3103, 0.0
          %vm3170 = vcmp.gt.f32.partialorder %v3108, 0.0
          %vm3171 = vcmp.gt.f32.partialorder %v3113, 0.0
          %vm3172 = vcmp.gt.f32.partialorder %v3118, 0.0
          %vm3173 = vcmp.gt.f32.partialorder %v3123, 0.0
          %vm3174 = vcmp.gt.f32.partialorder %v3128, 0.0
          %vm3175 = vcmp.gt.f32.partialorder %v3133, 0.0
          %vm3176 = vcmp.gt.f32.partialorder %v3138, 0.0
          %vm3177 = vcmp.gt.f32.partialorder %v3143, 0.0
          %s3178 = scalar_lea.vmem [#allocation10], %s594
          %v3179 = vld [vmem:[%s3178] sm:$0x1]
          %v3181 = vlaneseq
          %v3182 = vshrl.u32 %v3181, 7
          %v3183 = vsub.s32 0, %v3182
          %v3184 = vrot.slane %v3179, %v3183
          %v3186 = vmul.f32 %v3184, %v2988
          %v3187 = vmul.f32 %v3184, %v2993
          %v3188 = vmul.f32 %v3184, %v2998
          %v3189 = vmul.f32 %v3184, %v3003
          %v3190 = vmul.f32 %v3184, %v3008
          %v3191 = vmul.f32 %v3184, %v3013
          %v3192 = vmul.f32 %v3184, %v3018
          %v3193 = vmul.f32 %v3184, %v3023
          %v3194 = vmul.f32 %v3184, %v3028
          %v3195 = vmul.f32 %v3184, %v3033
          %v3196 = vmul.f32 %v3184, %v3038
          %v3197 = vmul.f32 %v3184, %v3043
          %v3198 = vmul.f32 %v3184, %v3048
          %v3199 = vmul.f32 %v3184, %v3053
          %v3200 = vmul.f32 %v3184, %v3058
          %v3201 = vmul.f32 %v3184, %v3063
          %v3202 = vmul.f32 %v3184, %v3068
          %v3203 = vmul.f32 %v3184, %v3073
          %v3204 = vmul.f32 %v3184, %v3078
          %v3205 = vmul.f32 %v3184, %v3083
          %v3206 = vmul.f32 %v3184, %v3088
          %v3207 = vmul.f32 %v3184, %v3093
          %v3208 = vmul.f32 %v3184, %v3098
          %v3209 = vmul.f32 %v3184, %v3103
          %v3210 = vmul.f32 %v3184, %v3108
          %v3211 = vmul.f32 %v3184, %v3113
          %v3212 = vmul.f32 %v3184, %v3118
          %v3213 = vmul.f32 %v3184, %v3123
          %v3214 = vmul.f32 %v3184, %v3128
          %v3215 = vmul.f32 %v3184, %v3133
          %v3216 = vmul.f32 %v3184, %v3138
          %v3217 = vmul.f32 %v3184, %v3143
          %v3218 = vsel %vm3146, %v2988, %v3186
          %v3219 = vsel %vm3147, %v2993, %v3187
          %v3220 = vsel %vm3148, %v2998, %v3188
          %v3221 = vsel %vm3149, %v3003, %v3189
          %v3222 = vsel %vm3150, %v3008, %v3190
          %v3223 = vsel %vm3151, %v3013, %v3191
          %v3224 = vsel %vm3152, %v3018, %v3192
          %v3225 = vsel %vm3153, %v3023, %v3193
          %v3226 = vsel %vm3154, %v3028, %v3194
          %v3227 = vsel %vm3155, %v3033, %v3195
          %v3228 = vsel %vm3156, %v3038, %v3196
          %v3229 = vsel %vm3157, %v3043, %v3197
          %v3230 = vsel %vm3158, %v3048, %v3198
          %v3231 = vsel %vm3159, %v3053, %v3199
          %v3232 = vsel %vm3160, %v3058, %v3200
          %v3233 = vsel %vm3161, %v3063, %v3201
          %v3234 = vsel %vm3162, %v3068, %v3202
          %v3235 = vsel %vm3163, %v3073, %v3203
          %v3236 = vsel %vm3164, %v3078, %v3204
          %v3237 = vsel %vm3165, %v3083, %v3205
          %v3238 = vsel %vm3166, %v3088, %v3206
          %v3239 = vsel %vm3167, %v3093, %v3207
          %v3240 = vsel %vm3168, %v3098, %v3208
          %v3241 = vsel %vm3169, %v3103, %v3209
          %v3242 = vsel %vm3170, %v3108, %v3210
          %v3243 = vsel %vm3171, %v3113, %v3211
          %v3244 = vsel %vm3172, %v3118, %v3212
          %v3245 = vsel %vm3173, %v3123, %v3213
          %v3246 = vsel %vm3174, %v3128, %v3214
          %v3247 = vsel %vm3175, %v3133, %v3215
          %v3248 = vsel %vm3176, %v3138, %v3216
          %v3249 = vsel %vm3177, %v3143, %v3217
          %3250 = vst.msk [vmem:[#allocation2 + $0x18] sm:$0xff] %vm424, %v3218
          %3251 = vst.msk [vmem:[#allocation2 + $0x20] sm:$0xff] %vm424, %v3219
          %3252 = vst.msk [vmem:[#allocation2 + $0x28] sm:$0xff] %vm424, %v3220
          %3253 = vst.msk [vmem:[#allocation2 + $0x30] sm:$0xff] %vm424, %v3221
          %3254 = vst.msk [vmem:[#allocation2 + $0x38] sm:$0xff] %vm424, %v3222
          %3255 = vst.msk [vmem:[#allocation2 + $0x40] sm:$0xff] %vm424, %v3223
          %3256 = vst.msk [vmem:[#allocation2 + $0x48] sm:$0xff] %vm424, %v3224
          %3257 = vst.msk [vmem:[#allocation2 + $0x50] sm:$0xff] %vm424, %v3225
          %3258 = vst.msk [vmem:[#allocation2 + $0x58] sm:$0xff] %vm424, %v3226
          %3259 = vst.msk [vmem:[#allocation2 + $0x60] sm:$0xff] %vm424, %v3227
          %3260 = vst.msk [vmem:[#allocation2 + $0x68] sm:$0xff] %vm424, %v3228
          %3261 = vst.msk [vmem:[#allocation2 + $0x70] sm:$0xff] %vm424, %v3229
          %3262 = vst.msk [vmem:[#allocation2 + $0x78] sm:$0xff] %vm424, %v3230
          %3263 = vst.msk [vmem:[#allocation2 + $0x80] sm:$0xff] %vm424, %v3231
          %3264 = vst.msk [vmem:[#allocation2 + $0x88] sm:$0xff] %vm424, %v3232
          %3265 = vst.msk [vmem:[#allocation2 + $0x90] sm:$0xff] %vm424, %v3233
          %3266 = vst.msk [vmem:[#allocation2 + $0x98] sm:$0xff] %vm424, %v3234
          %3267 = vst.msk [vmem:[#allocation2 + $0xa0] sm:$0xff] %vm424, %v3235
          %3268 = vst.msk [vmem:[#allocation2 + $0xa8] sm:$0xff] %vm424, %v3236
          %3269 = vst.msk [vmem:[#allocation2 + $0xb0] sm:$0xff] %vm424, %v3237
          %3270 = vst.msk [vmem:[#allocation2 + $0xb8] sm:$0xff] %vm424, %v3238
          %3271 = vst.msk [vmem:[#allocation2 + $0xc0] sm:$0xff] %vm424, %v3239
          %3272 = vst.msk [vmem:[#allocation2 + $0xc8] sm:$0xff] %vm424, %v3240
          %3273 = vst.msk [vmem:[#allocation2 + $0xd0] sm:$0xff] %vm424, %v3241
          %3274 = vst.msk [vmem:[#allocation2 + $0xd8] sm:$0xff] %vm424, %v3242
          %3275 = vst.msk [vmem:[#allocation2 + $0xe0] sm:$0xff] %vm424, %v3243
          %3276 = vst.msk [vmem:[#allocation2 + $0xe8] sm:$0xff] %vm424, %v3244
          %3277 = vst.msk [vmem:[#allocation2 + $0xf0] sm:$0xff] %vm424, %v3245
          %3278 = vst.msk [vmem:[#allocation2 + $0xf8] sm:$0xff] %vm424, %v3246
          %3279 = vst.msk [vmem:[#allocation2 + $0x100] sm:$0xff] %vm424, %v3247
          %3280 = vst.msk [vmem:[#allocation2 + $0x108] sm:$0xff] %vm424, %v3248
          %3281 = vst.msk [vmem:[#allocation2 + $0x110] sm:$0xff] %vm424, %v3249
        $region89: #{lite_srnet_forward.1} parent=51 // loop_footer
          %s598 = sadd.s32 1, %s594
        $region90: #{lite_srnet_forward.1} parent=51 // loop_footer_branch
          %593 = sbr.rel target = $region86
        $region91: #{lite_srnet_forward.1} parent=51 // loop_exit
          _
        %v3282 = vld [vmem:[#allocation2 + $0x7] sm:$0xff]
        %v3283 = vld [vmem:[#allocation2 + $0xf] sm:$0xff]
        %v3284 = vld [vmem:[#allocation2 + $0x17] sm:$0xff]
        %v3285 = vld [vmem:[#allocation2 + $0x1f] sm:$0xff]
        %v3286 = vld [vmem:[#allocation2 + $0x27] sm:$0xff]
        %v3287 = vld [vmem:[#allocation2 + $0x2f] sm:$0xff]
        %v3288 = vld [vmem:[#allocation2 + $0x37] sm:$0xff]
        %v3289 = vld [vmem:[#allocation2 + $0x3f] sm:$0xff]
        %v3290 = vld [vmem:[#allocation2 + $0x47] sm:$0xff]
        %v3291 = vld [vmem:[#allocation2 + $0x4f] sm:$0xff]
        %v3292 = vld [vmem:[#allocation2 + $0x57] sm:$0xff]
        %v3293 = vld [vmem:[#allocation2 + $0x5f] sm:$0xff]
        %v3294 = vld [vmem:[#allocation2 + $0x67] sm:$0xff]
        %v3295 = vld [vmem:[#allocation2 + $0x6f] sm:$0xff]
        %v3296 = vld [vmem:[#allocation2 + $0x77] sm:$0xff]
        %v3297 = vld [vmem:[#allocation2 + $0x7f] sm:$0xff]
        %v3298 = vld [vmem:[#allocation2 + $0x87] sm:$0xff]
        %v3299 = vld [vmem:[#allocation2 + $0x8f] sm:$0xff]
        %v3300 = vld [vmem:[#allocation2 + $0x97] sm:$0xff]
        %v3301 = vld [vmem:[#allocation2 + $0x9f] sm:$0xff]
        %v3302 = vld [vmem:[#allocation2 + $0xa7] sm:$0xff]
        %v3303 = vld [vmem:[#allocation2 + $0xaf] sm:$0xff]
        %v3304 = vld [vmem:[#allocation2 + $0xb7] sm:$0xff]
        %v3305 = vld [vmem:[#allocation2 + $0xbf] sm:$0xff]
        %v3306 = vld [vmem:[#allocation2 + $0xc7] sm:$0xff]
        %v3307 = vld [vmem:[#allocation2 + $0xcf] sm:$0xff]
        %v3308 = vld [vmem:[#allocation2 + $0xd7] sm:$0xff]
        %v3309 = vld [vmem:[#allocation2 + $0xdf] sm:$0xff]
        %v3310 = vld [vmem:[#allocation2 + $0xe7] sm:$0xff]
        %v3311 = vld [vmem:[#allocation2 + $0xef] sm:$0xff]
        %v3312 = vld [vmem:[#allocation2 + $0xf7] sm:$0xff]
        %v3313 = vld [vmem:[#allocation2 + $0xff] sm:$0xff]
        %3315 = vset.pattern.permute.xlu0 0
        %3316 = vperm.xlu0 %3315, %v529
        %v3317 = vpop.permute.xlu0 %3316
        %3320 = vset.pattern.permute.xlu0 0
        %3321 = vperm.xlu0 %3320, %v530
        %v3322 = vpop.permute.xlu0 %3321
        %3325 = vset.pattern.permute.xlu0 0
        %3326 = vperm.xlu0 %3325, %v531
        %v3327 = vpop.permute.xlu0 %3326
        %3330 = vset.pattern.permute.xlu0 0
        %3331 = vperm.xlu0 %3330, %v532
        %v3332 = vpop.permute.xlu0 %3331
        %3335 = vset.pattern.permute.xlu0 0
        %3336 = vperm.xlu0 %3335, %v533
        %v3337 = vpop.permute.xlu0 %3336
        %3340 = vset.pattern.permute.xlu0 0
        %3341 = vperm.xlu0 %3340, %v534
        %v3342 = vpop.permute.xlu0 %3341
        %3345 = vset.pattern.permute.xlu0 0
        %3346 = vperm.xlu0 %3345, %v535
        %v3347 = vpop.permute.xlu0 %3346
        %3350 = vset.pattern.permute.xlu0 0
        %3351 = vperm.xlu0 %3350, %v536
        %v3352 = vpop.permute.xlu0 %3351
        %3355 = vset.pattern.permute.xlu0 0
        %3356 = vperm.xlu0 %3355, %v537
        %v3357 = vpop.permute.xlu0 %3356
        %3360 = vset.pattern.permute.xlu0 0
        %3361 = vperm.xlu0 %3360, %v538
        %v3362 = vpop.permute.xlu0 %3361
        %3365 = vset.pattern.permute.xlu0 0
        %3366 = vperm.xlu0 %3365, %v539
        %v3367 = vpop.permute.xlu0 %3366
        %3370 = vset.pattern.permute.xlu0 0
        %3371 = vperm.xlu0 %3370, %v540
        %v3372 = vpop.permute.xlu0 %3371
        %3375 = vset.pattern.permute.xlu0 0
        %3376 = vperm.xlu0 %3375, %v541
        %v3377 = vpop.permute.xlu0 %3376
        %3380 = vset.pattern.permute.xlu0 0
        %3381 = vperm.xlu0 %3380, %v542
        %v3382 = vpop.permute.xlu0 %3381
        %3385 = vset.pattern.permute.xlu0 0
        %3386 = vperm.xlu0 %3385, %v543
        %v3387 = vpop.permute.xlu0 %3386
        %3390 = vset.pattern.permute.xlu0 0
        %3391 = vperm.xlu0 %3390, %v544
        %v3392 = vpop.permute.xlu0 %3391
        %3395 = vset.pattern.permute.xlu0 0
        %3396 = vperm.xlu0 %3395, %v545
        %v3397 = vpop.permute.xlu0 %3396
        %3400 = vset.pattern.permute.xlu0 0
        %3401 = vperm.xlu0 %3400, %v546
        %v3402 = vpop.permute.xlu0 %3401
        %3405 = vset.pattern.permute.xlu0 0
        %3406 = vperm.xlu0 %3405, %v547
        %v3407 = vpop.permute.xlu0 %3406
        %3410 = vset.pattern.permute.xlu0 0
        %3411 = vperm.xlu0 %3410, %v548
        %v3412 = vpop.permute.xlu0 %3411
        %3415 = vset.pattern.permute.xlu0 0
        %3416 = vperm.xlu0 %3415, %v549
        %v3417 = vpop.permute.xlu0 %3416
        %3420 = vset.pattern.permute.xlu0 0
        %3421 = vperm.xlu0 %3420, %v550
        %v3422 = vpop.permute.xlu0 %3421
        %3425 = vset.pattern.permute.xlu0 0
        %3426 = vperm.xlu0 %3425, %v551
        %v3427 = vpop.permute.xlu0 %3426
        %3430 = vset.pattern.permute.xlu0 0
        %3431 = vperm.xlu0 %3430, %v552
        %v3432 = vpop.permute.xlu0 %3431
        %3435 = vset.pattern.permute.xlu0 0
        %3436 = vperm.xlu0 %3435, %v553
        %v3437 = vpop.permute.xlu0 %3436
        %3440 = vset.pattern.permute.xlu0 0
        %3441 = vperm.xlu0 %3440, %v554
        %v3442 = vpop.permute.xlu0 %3441
        %3445 = vset.pattern.permute.xlu0 0
        %3446 = vperm.xlu0 %3445, %v555
        %v3447 = vpop.permute.xlu0 %3446
        %3450 = vset.pattern.permute.xlu0 0
        %3451 = vperm.xlu0 %3450, %v556
        %v3452 = vpop.permute.xlu0 %3451
        %3455 = vset.pattern.permute.xlu0 0
        %3456 = vperm.xlu0 %3455, %v557
        %v3457 = vpop.permute.xlu0 %3456
        %3460 = vset.pattern.permute.xlu0 0
        %3461 = vperm.xlu0 %3460, %v558
        %v3462 = vpop.permute.xlu0 %3461
        %3465 = vset.pattern.permute.xlu0 0
        %3466 = vperm.xlu0 %3465, %v559
        %v3467 = vpop.permute.xlu0 %3466
        %3470 = vset.pattern.permute.xlu0 0
        %3471 = vperm.xlu0 %3470, %v560
        %v3472 = vpop.permute.xlu0 %3471
        %v3474 = vmul.f32 %v3282, %v3317
        %v3475 = vmul.f32 %v3283, %v3322
        %v3476 = vmul.f32 %v3284, %v3327
        %v3477 = vmul.f32 %v3285, %v3332
        %v3478 = vmul.f32 %v3286, %v3337
        %v3479 = vmul.f32 %v3287, %v3342
        %v3480 = vmul.f32 %v3288, %v3347
        %v3481 = vmul.f32 %v3289, %v3352
        %v3482 = vmul.f32 %v3290, %v3357
        %v3483 = vmul.f32 %v3291, %v3362
        %v3484 = vmul.f32 %v3292, %v3367
        %v3485 = vmul.f32 %v3293, %v3372
        %v3486 = vmul.f32 %v3294, %v3377
        %v3487 = vmul.f32 %v3295, %v3382
        %v3488 = vmul.f32 %v3296, %v3387
        %v3489 = vmul.f32 %v3297, %v3392
        %v3490 = vmul.f32 %v3298, %v3397
        %v3491 = vmul.f32 %v3299, %v3402
        %v3492 = vmul.f32 %v3300, %v3407
        %v3493 = vmul.f32 %v3301, %v3412
        %v3494 = vmul.f32 %v3302, %v3417
        %v3495 = vmul.f32 %v3303, %v3422
        %v3496 = vmul.f32 %v3304, %v3427
        %v3497 = vmul.f32 %v3305, %v3432
        %v3498 = vmul.f32 %v3306, %v3437
        %v3499 = vmul.f32 %v3307, %v3442
        %v3500 = vmul.f32 %v3308, %v3447
        %v3501 = vmul.f32 %v3309, %v3452
        %v3502 = vmul.f32 %v3310, %v3457
        %v3503 = vmul.f32 %v3311, %v3462
        %v3504 = vmul.f32 %v3312, %v3467
        %v3505 = vmul.f32 %v3313, %v3472
        %3506 = vst.msk [vmem:[#allocation3] sm:$0xff] %vm424, %v3474
        %3507 = vst.msk [vmem:[#allocation3 + $0x18] sm:$0xff] %vm424, %v3475
        %3508 = vst.msk [vmem:[#allocation3 + $0x30] sm:$0xff] %vm424, %v3476
        %3509 = vst.msk [vmem:[#allocation3 + $0x48] sm:$0xff] %vm424, %v3477
        %3510 = vst.msk [vmem:[#allocation3 + $0x60] sm:$0xff] %vm424, %v3478
        %3511 = vst.msk [vmem:[#allocation3 + $0x78] sm:$0xff] %vm424, %v3479
        %3512 = vst.msk [vmem:[#allocation3 + $0x90] sm:$0xff] %vm424, %v3480
        %3513 = vst.msk [vmem:[#allocation3 + $0xa8] sm:$0xff] %vm424, %v3481
        %3514 = vst.msk [vmem:[#allocation3 + $0xc0] sm:$0xff] %vm424, %v3482
        %3515 = vst.msk [vmem:[#allocation3 + $0xd8] sm:$0xff] %vm424, %v3483
        %3516 = vst.msk [vmem:[#allocation3 + $0xf0] sm:$0xff] %vm424, %v3484
        %3517 = vst.msk [vmem:[#allocation3 + $0x108] sm:$0xff] %vm424, %v3485
        %3518 = vst.msk [vmem:[#allocation3 + $0x120] sm:$0xff] %vm424, %v3486
        %3519 = vst.msk [vmem:[#allocation3 + $0x138] sm:$0xff] %vm424, %v3487
        %3520 = vst.msk [vmem:[#allocation3 + $0x150] sm:$0xff] %vm424, %v3488
        %3521 = vst.msk [vmem:[#allocation3 + $0x168] sm:$0xff] %vm424, %v3489
        %3522 = vst.msk [vmem:[#allocation3 + $0x180] sm:$0xff] %vm424, %v3490
        %3523 = vst.msk [vmem:[#allocation3 + $0x198] sm:$0xff] %vm424, %v3491
        %3524 = vst.msk [vmem:[#allocation3 + $0x1b0] sm:$0xff] %vm424, %v3492
        %3525 = vst.msk [vmem:[#allocation3 + $0x1c8] sm:$0xff] %vm424, %v3493
        %3526 = vst.msk [vmem:[#allocation3 + $0x1e0] sm:$0xff] %vm424, %v3494
        %3527 = vst.msk [vmem:[#allocation3 + $0x1f8] sm:$0xff] %vm424, %v3495
        %3528 = vst.msk [vmem:[#allocation3 + $0x210] sm:$0xff] %vm424, %v3496
        %3529 = vst.msk [vmem:[#allocation3 + $0x228] sm:$0xff] %vm424, %v3497
        %3530 = vst.msk [vmem:[#allocation3 + $0x240] sm:$0xff] %vm424, %v3498
        %3531 = vst.msk [vmem:[#allocation3 + $0x258] sm:$0xff] %vm424, %v3499
        %3532 = vst.msk [vmem:[#allocation3 + $0x270] sm:$0xff] %vm424, %v3500
        %3533 = vst.msk [vmem:[#allocation3 + $0x288] sm:$0xff] %vm424, %v3501
        %3534 = vst.msk [vmem:[#allocation3 + $0x2a0] sm:$0xff] %vm424, %v3502
        %3535 = vst.msk [vmem:[#allocation3 + $0x2b8] sm:$0xff] %vm424, %v3503
        %3536 = vst.msk [vmem:[#allocation3 + $0x2d0] sm:$0xff] %vm424, %v3504
        %3537 = vst.msk [vmem:[#allocation3 + $0x2e8] sm:$0xff] %vm424, %v3505
        %v3538 = vld [vmem:[#allocation2 + $0x8] sm:$0xff]
        %v3539 = vld [vmem:[#allocation2 + $0x10] sm:$0xff]
        %v3540 = vld [vmem:[#allocation2 + $0x18] sm:$0xff]
        %v3541 = vld [vmem:[#allocation2 + $0x20] sm:$0xff]
        %v3542 = vld [vmem:[#allocation2 + $0x28] sm:$0xff]
        %v3543 = vld [vmem:[#allocation2 + $0x30] sm:$0xff]
        %v3544 = vld [vmem:[#allocation2 + $0x38] sm:$0xff]
        %v3545 = vld [vmem:[#allocation2 + $0x40] sm:$0xff]
        %v3546 = vld [vmem:[#allocation2 + $0x48] sm:$0xff]
        %v3547 = vld [vmem:[#allocation2 + $0x50] sm:$0xff]
        %v3548 = vld [vmem:[#allocation2 + $0x58] sm:$0xff]
        %v3549 = vld [vmem:[#allocation2 + $0x60] sm:$0xff]
        %v3550 = vld [vmem:[#allocation2 + $0x68] sm:$0xff]
        %v3551 = vld [vmem:[#allocation2 + $0x70] sm:$0xff]
        %v3552 = vld [vmem:[#allocation2 + $0x78] sm:$0xff]
        %v3553 = vld [vmem:[#allocation2 + $0x80] sm:$0xff]
        %v3554 = vld [vmem:[#allocation2 + $0x88] sm:$0xff]
        %v3555 = vld [vmem:[#allocation2 + $0x90] sm:$0xff]
        %v3556 = vld [vmem:[#allocation2 + $0x98] sm:$0xff]
        %v3557 = vld [vmem:[#allocation2 + $0xa0] sm:$0xff]
        %v3558 = vld [vmem:[#allocation2 + $0xa8] sm:$0xff]
        %v3559 = vld [vmem:[#allocation2 + $0xb0] sm:$0xff]
        %v3560 = vld [vmem:[#allocation2 + $0xb8] sm:$0xff]
        %v3561 = vld [vmem:[#allocation2 + $0xc0] sm:$0xff]
        %v3562 = vld [vmem:[#allocation2 + $0xc8] sm:$0xff]
        %v3563 = vld [vmem:[#allocation2 + $0xd0] sm:$0xff]
        %v3564 = vld [vmem:[#allocation2 + $0xd8] sm:$0xff]
        %v3565 = vld [vmem:[#allocation2 + $0xe0] sm:$0xff]
        %v3566 = vld [vmem:[#allocation2 + $0xe8] sm:$0xff]
        %v3567 = vld [vmem:[#allocation2 + $0xf0] sm:$0xff]
        %v3568 = vld [vmem:[#allocation2 + $0xf8] sm:$0xff]
        %v3569 = vld [vmem:[#allocation2 + $0x100] sm:$0xff]
        %3602 = vrot.lane.b32.xlu0 %v3538, 32
        %v3603 = vpop.permute.xlu0 %3602
        %3604 = vrot.lane.b32.xlu0 %v3539, 32
        %v3605 = vpop.permute.xlu0 %3604
        %3606 = vrot.lane.b32.xlu0 %v3540, 32
        %v3607 = vpop.permute.xlu0 %3606
        %3608 = vrot.lane.b32.xlu0 %v3541, 32
        %v3609 = vpop.permute.xlu0 %3608
        %3610 = vrot.lane.b32.xlu0 %v3542, 32
        %v3611 = vpop.permute.xlu0 %3610
        %3612 = vrot.lane.b32.xlu0 %v3543, 32
        %v3613 = vpop.permute.xlu0 %3612
        %3614 = vrot.lane.b32.xlu0 %v3544, 32
        %v3615 = vpop.permute.xlu0 %3614
        %3616 = vrot.lane.b32.xlu0 %v3545, 32
        %v3617 = vpop.permute.xlu0 %3616
        %3618 = vrot.lane.b32.xlu0 %v3546, 32
        %v3619 = vpop.permute.xlu0 %3618
        %3620 = vrot.lane.b32.xlu0 %v3547, 32
        %v3621 = vpop.permute.xlu0 %3620
        %3622 = vrot.lane.b32.xlu0 %v3548, 32
        %v3623 = vpop.permute.xlu0 %3622
        %3624 = vrot.lane.b32.xlu0 %v3549, 32
        %v3625 = vpop.permute.xlu0 %3624
        %3626 = vrot.lane.b32.xlu0 %v3550, 32
        %v3627 = vpop.permute.xlu0 %3626
        %3628 = vrot.lane.b32.xlu0 %v3551, 32
        %v3629 = vpop.permute.xlu0 %3628
        %3630 = vrot.lane.b32.xlu0 %v3552, 32
        %v3631 = vpop.permute.xlu0 %3630
        %3632 = vrot.lane.b32.xlu0 %v3553, 32
        %v3633 = vpop.permute.xlu0 %3632
        %3634 = vrot.lane.b32.xlu0 %v3554, 32
        %v3635 = vpop.permute.xlu0 %3634
        %3636 = vrot.lane.b32.xlu0 %v3555, 32
        %v3637 = vpop.permute.xlu0 %3636
        %3638 = vrot.lane.b32.xlu0 %v3556, 32
        %v3639 = vpop.permute.xlu0 %3638
        %3640 = vrot.lane.b32.xlu0 %v3557, 32
        %v3641 = vpop.permute.xlu0 %3640
        %3642 = vrot.lane.b32.xlu0 %v3558, 32
        %v3643 = vpop.permute.xlu0 %3642
        %3644 = vrot.lane.b32.xlu0 %v3559, 32
        %v3645 = vpop.permute.xlu0 %3644
        %3646 = vrot.lane.b32.xlu0 %v3560, 32
        %v3647 = vpop.permute.xlu0 %3646
        %3648 = vrot.lane.b32.xlu0 %v3561, 32
        %v3649 = vpop.permute.xlu0 %3648
        %3650 = vrot.lane.b32.xlu0 %v3562, 32
        %v3651 = vpop.permute.xlu0 %3650
        %3652 = vrot.lane.b32.xlu0 %v3563, 32
        %v3653 = vpop.permute.xlu0 %3652
        %3654 = vrot.lane.b32.xlu0 %v3564, 32
        %v3655 = vpop.permute.xlu0 %3654
        %3656 = vrot.lane.b32.xlu0 %v3565, 32
        %v3657 = vpop.permute.xlu0 %3656
        %3658 = vrot.lane.b32.xlu0 %v3566, 32
        %v3659 = vpop.permute.xlu0 %3658
        %3660 = vrot.lane.b32.xlu0 %v3567, 32
        %v3661 = vpop.permute.xlu0 %3660
        %3662 = vrot.lane.b32.xlu0 %v3568, 32
        %v3663 = vpop.permute.xlu0 %3662
        %3664 = vrot.lane.b32.xlu0 %v3569, 32
        %v3665 = vpop.permute.xlu0 %3664
        %vm3698 = vcmask 523520
        %3699 = vst.msk [vmem:[#allocation3] sm:$0xff] %vm3698, %v3603
        %3700 = vst.msk [vmem:[#allocation3 + $0x18] sm:$0xff] %vm3698, %v3605
        %3701 = vst.msk [vmem:[#allocation3 + $0x30] sm:$0xff] %vm3698, %v3607
        %3702 = vst.msk [vmem:[#allocation3 + $0x48] sm:$0xff] %vm3698, %v3609
        %3703 = vst.msk [vmem:[#allocation3 + $0x60] sm:$0xff] %vm3698, %v3611
        %3704 = vst.msk [vmem:[#allocation3 + $0x78] sm:$0xff] %vm3698, %v3613
        %3705 = vst.msk [vmem:[#allocation3 + $0x90] sm:$0xff] %vm3698, %v3615
        %3706 = vst.msk [vmem:[#allocation3 + $0xa8] sm:$0xff] %vm3698, %v3617
        %3707 = vst.msk [vmem:[#allocation3 + $0xc0] sm:$0xff] %vm3698, %v3619
        %3708 = vst.msk [vmem:[#allocation3 + $0xd8] sm:$0xff] %vm3698, %v3621
        %3709 = vst.msk [vmem:[#allocation3 + $0xf0] sm:$0xff] %vm3698, %v3623
        %3710 = vst.msk [vmem:[#allocation3 + $0x108] sm:$0xff] %vm3698, %v3625
        %3711 = vst.msk [vmem:[#allocation3 + $0x120] sm:$0xff] %vm3698, %v3627
        %3712 = vst.msk [vmem:[#allocation3 + $0x138] sm:$0xff] %vm3698, %v3629
        %3713 = vst.msk [vmem:[#allocation3 + $0x150] sm:$0xff] %vm3698, %v3631
        %3714 = vst.msk [vmem:[#allocation3 + $0x168] sm:$0xff] %vm3698, %v3633
        %3715 = vst.msk [vmem:[#allocation3 + $0x180] sm:$0xff] %vm3698, %v3635
        %3716 = vst.msk [vmem:[#allocation3 + $0x198] sm:$0xff] %vm3698, %v3637
        %3717 = vst.msk [vmem:[#allocation3 + $0x1b0] sm:$0xff] %vm3698, %v3639
        %3718 = vst.msk [vmem:[#allocation3 + $0x1c8] sm:$0xff] %vm3698, %v3641
        %3719 = vst.msk [vmem:[#allocation3 + $0x1e0] sm:$0xff] %vm3698, %v3643
        %3720 = vst.msk [vmem:[#allocation3 + $0x1f8] sm:$0xff] %vm3698, %v3645
        %3721 = vst.msk [vmem:[#allocation3 + $0x210] sm:$0xff] %vm3698, %v3647
        %3722 = vst.msk [vmem:[#allocation3 + $0x228] sm:$0xff] %vm3698, %v3649
        %3723 = vst.msk [vmem:[#allocation3 + $0x240] sm:$0xff] %vm3698, %v3651
        %3724 = vst.msk [vmem:[#allocation3 + $0x258] sm:$0xff] %vm3698, %v3653
        %3725 = vst.msk [vmem:[#allocation3 + $0x270] sm:$0xff] %vm3698, %v3655
        %3726 = vst.msk [vmem:[#allocation3 + $0x288] sm:$0xff] %vm3698, %v3657
        %3727 = vst.msk [vmem:[#allocation3 + $0x2a0] sm:$0xff] %vm3698, %v3659
        %3728 = vst.msk [vmem:[#allocation3 + $0x2b8] sm:$0xff] %vm3698, %v3661
        %3729 = vst.msk [vmem:[#allocation3 + $0x2d0] sm:$0xff] %vm3698, %v3663
        %3730 = vst.msk [vmem:[#allocation3 + $0x2e8] sm:$0xff] %vm3698, %v3665
        %v3731 = vld [vmem:[#allocation2 + $0x9] sm:$0xff]
        %v3732 = vld [vmem:[#allocation2 + $0x11] sm:$0xff]
        %v3733 = vld [vmem:[#allocation2 + $0x19] sm:$0xff]
        %v3734 = vld [vmem:[#allocation2 + $0x21] sm:$0xff]
        %v3735 = vld [vmem:[#allocation2 + $0x29] sm:$0xff]
        %v3736 = vld [vmem:[#allocation2 + $0x31] sm:$0xff]
        %v3737 = vld [vmem:[#allocation2 + $0x39] sm:$0xff]
        %v3738 = vld [vmem:[#allocation2 + $0x41] sm:$0xff]
        %v3739 = vld [vmem:[#allocation2 + $0x49] sm:$0xff]
        %v3740 = vld [vmem:[#allocation2 + $0x51] sm:$0xff]
        %v3741 = vld [vmem:[#allocation2 + $0x59] sm:$0xff]
        %v3742 = vld [vmem:[#allocation2 + $0x61] sm:$0xff]
        %v3743 = vld [vmem:[#allocation2 + $0x69] sm:$0xff]
        %v3744 = vld [vmem:[#allocation2 + $0x71] sm:$0xff]
        %v3745 = vld [vmem:[#allocation2 + $0x79] sm:$0xff]
        %v3746 = vld [vmem:[#allocation2 + $0x81] sm:$0xff]
        %v3747 = vld [vmem:[#allocation2 + $0x89] sm:$0xff]
        %v3748 = vld [vmem:[#allocation2 + $0x91] sm:$0xff]
        %v3749 = vld [vmem:[#allocation2 + $0x99] sm:$0xff]
        %v3750 = vld [vmem:[#allocation2 + $0xa1] sm:$0xff]
        %v3751 = vld [vmem:[#allocation2 + $0xa9] sm:$0xff]
        %v3752 = vld [vmem:[#allocation2 + $0xb1] sm:$0xff]
        %v3753 = vld [vmem:[#allocation2 + $0xb9] sm:$0xff]
        %v3754 = vld [vmem:[#allocation2 + $0xc1] sm:$0xff]
        %v3755 = vld [vmem:[#allocation2 + $0xc9] sm:$0xff]
        %v3756 = vld [vmem:[#allocation2 + $0xd1] sm:$0xff]
        %v3757 = vld [vmem:[#allocation2 + $0xd9] sm:$0xff]
        %v3758 = vld [vmem:[#allocation2 + $0xe1] sm:$0xff]
        %v3759 = vld [vmem:[#allocation2 + $0xe9] sm:$0xff]
        %v3760 = vld [vmem:[#allocation2 + $0xf1] sm:$0xff]
        %v3761 = vld [vmem:[#allocation2 + $0xf9] sm:$0xff]
        %v3762 = vld [vmem:[#allocation2 + $0x101] sm:$0xff]
        %3764 = vset.pattern.permute.xlu0 0
        %3765 = vperm.xlu0 %3764, %v561
        %v3766 = vpop.permute.xlu0 %3765
        %3769 = vset.pattern.permute.xlu0 0
        %3770 = vperm.xlu0 %3769, %v562
        %v3771 = vpop.permute.xlu0 %3770
        %3774 = vset.pattern.permute.xlu0 0
        %3775 = vperm.xlu0 %3774, %v563
        %v3776 = vpop.permute.xlu0 %3775
        %3779 = vset.pattern.permute.xlu0 0
        %3780 = vperm.xlu0 %3779, %v564
        %v3781 = vpop.permute.xlu0 %3780
        %3784 = vset.pattern.permute.xlu0 0
        %3785 = vperm.xlu0 %3784, %v565
        %v3786 = vpop.permute.xlu0 %3785
        %3789 = vset.pattern.permute.xlu0 0
        %3790 = vperm.xlu0 %3789, %v566
        %v3791 = vpop.permute.xlu0 %3790
        %3794 = vset.pattern.permute.xlu0 0
        %3795 = vperm.xlu0 %3794, %v567
        %v3796 = vpop.permute.xlu0 %3795
        %3799 = vset.pattern.permute.xlu0 0
        %3800 = vperm.xlu0 %3799, %v568
        %v3801 = vpop.permute.xlu0 %3800
        %3804 = vset.pattern.permute.xlu0 0
        %3805 = vperm.xlu0 %3804, %v569
        %v3806 = vpop.permute.xlu0 %3805
        %3809 = vset.pattern.permute.xlu0 0
        %3810 = vperm.xlu0 %3809, %v570
        %v3811 = vpop.permute.xlu0 %3810
        %3814 = vset.pattern.permute.xlu0 0
        %3815 = vperm.xlu0 %3814, %v571
        %v3816 = vpop.permute.xlu0 %3815
        %3819 = vset.pattern.permute.xlu0 0
        %3820 = vperm.xlu0 %3819, %v572
        %v3821 = vpop.permute.xlu0 %3820
        %3824 = vset.pattern.permute.xlu0 0
        %3825 = vperm.xlu0 %3824, %v573
        %v3826 = vpop.permute.xlu0 %3825
        %3829 = vset.pattern.permute.xlu0 0
        %3830 = vperm.xlu0 %3829, %v574
        %v3831 = vpop.permute.xlu0 %3830
        %3834 = vset.pattern.permute.xlu0 0
        %3835 = vperm.xlu0 %3834, %v575
        %v3836 = vpop.permute.xlu0 %3835
        %3839 = vset.pattern.permute.xlu0 0
        %3840 = vperm.xlu0 %3839, %v576
        %v3841 = vpop.permute.xlu0 %3840
        %3844 = vset.pattern.permute.xlu0 0
        %3845 = vperm.xlu0 %3844, %v577
        %v3846 = vpop.permute.xlu0 %3845
        %3849 = vset.pattern.permute.xlu0 0
        %3850 = vperm.xlu0 %3849, %v578
        %v3851 = vpop.permute.xlu0 %3850
        %3854 = vset.pattern.permute.xlu0 0
        %3855 = vperm.xlu0 %3854, %v579
        %v3856 = vpop.permute.xlu0 %3855
        %3859 = vset.pattern.permute.xlu0 0
        %3860 = vperm.xlu0 %3859, %v580
        %v3861 = vpop.permute.xlu0 %3860
        %3864 = vset.pattern.permute.xlu0 0
        %3865 = vperm.xlu0 %3864, %v581
        %v3866 = vpop.permute.xlu0 %3865
        %3869 = vset.pattern.permute.xlu0 0
        %3870 = vperm.xlu0 %3869, %v582
        %v3871 = vpop.permute.xlu0 %3870
        %3874 = vset.pattern.permute.xlu0 0
        %3875 = vperm.xlu0 %3874, %v583
        %v3876 = vpop.permute.xlu0 %3875
        %3879 = vset.pattern.permute.xlu0 0
        %3880 = vperm.xlu0 %3879, %v584
        %v3881 = vpop.permute.xlu0 %3880
        %3884 = vset.pattern.permute.xlu0 0
        %3885 = vperm.xlu0 %3884, %v585
        %v3886 = vpop.permute.xlu0 %3885
        %3889 = vset.pattern.permute.xlu0 0
        %3890 = vperm.xlu0 %3889, %v586
        %v3891 = vpop.permute.xlu0 %3890
        %3894 = vset.pattern.permute.xlu0 0
        %3895 = vperm.xlu0 %3894, %v587
        %v3896 = vpop.permute.xlu0 %3895
        %3899 = vset.pattern.permute.xlu0 0
        %3900 = vperm.xlu0 %3899, %v588
        %v3901 = vpop.permute.xlu0 %3900
        %3904 = vset.pattern.permute.xlu0 0
        %3905 = vperm.xlu0 %3904, %v589
        %v3906 = vpop.permute.xlu0 %3905
        %3909 = vset.pattern.permute.xlu0 0
        %3910 = vperm.xlu0 %3909, %v590
        %v3911 = vpop.permute.xlu0 %3910
        %3914 = vset.pattern.permute.xlu0 0
        %3915 = vperm.xlu0 %3914, %v591
        %v3916 = vpop.permute.xlu0 %3915
        %3919 = vset.pattern.permute.xlu0 0
        %3920 = vperm.xlu0 %3919, %v592
        %v3921 = vpop.permute.xlu0 %3920
        %v3923 = vmul.f32 %v3731, %v3766
        %v3924 = vmul.f32 %v3732, %v3771
        %v3925 = vmul.f32 %v3733, %v3776
        %v3926 = vmul.f32 %v3734, %v3781
        %v3927 = vmul.f32 %v3735, %v3786
        %v3928 = vmul.f32 %v3736, %v3791
        %v3929 = vmul.f32 %v3737, %v3796
        %v3930 = vmul.f32 %v3738, %v3801
        %v3931 = vmul.f32 %v3739, %v3806
        %v3932 = vmul.f32 %v3740, %v3811
        %v3933 = vmul.f32 %v3741, %v3816
        %v3934 = vmul.f32 %v3742, %v3821
        %v3935 = vmul.f32 %v3743, %v3826
        %v3936 = vmul.f32 %v3744, %v3831
        %v3937 = vmul.f32 %v3745, %v3836
        %v3938 = vmul.f32 %v3746, %v3841
        %v3939 = vmul.f32 %v3747, %v3846
        %v3940 = vmul.f32 %v3748, %v3851
        %v3941 = vmul.f32 %v3749, %v3856
        %v3942 = vmul.f32 %v3750, %v3861
        %v3943 = vmul.f32 %v3751, %v3866
        %v3944 = vmul.f32 %v3752, %v3871
        %v3945 = vmul.f32 %v3753, %v3876
        %v3946 = vmul.f32 %v3754, %v3881
        %v3947 = vmul.f32 %v3755, %v3886
        %v3948 = vmul.f32 %v3756, %v3891
        %v3949 = vmul.f32 %v3757, %v3896
        %v3950 = vmul.f32 %v3758, %v3901
        %v3951 = vmul.f32 %v3759, %v3906
        %v3952 = vmul.f32 %v3760, %v3911
        %v3953 = vmul.f32 %v3761, %v3916
        %v3954 = vmul.f32 %v3762, %v3921
        %3987 = vrot.lane.b32.xlu0 %v3923, 64
        %v3988 = vpop.permute.xlu0 %3987
        %3989 = vrot.lane.b32.xlu0 %v3924, 64
        %v3990 = vpop.permute.xlu0 %3989
        %3991 = vrot.lane.b32.xlu0 %v3925, 64
        %v3992 = vpop.permute.xlu0 %3991
        %3993 = vrot.lane.b32.xlu0 %v3926, 64
        %v3994 = vpop.permute.xlu0 %3993
        %3995 = vrot.lane.b32.xlu0 %v3927, 64
        %v3996 = vpop.permute.xlu0 %3995
        %3997 = vrot.lane.b32.xlu0 %v3928, 64
        %v3998 = vpop.permute.xlu0 %3997
        %3999 = vrot.lane.b32.xlu0 %v3929, 64
        %v4000 = vpop.permute.xlu0 %3999
        %4001 = vrot.lane.b32.xlu0 %v3930, 64
        %v4002 = vpop.permute.xlu0 %4001
        %4003 = vrot.lane.b32.xlu0 %v3931, 64
        %v4004 = vpop.permute.xlu0 %4003
        %4005 = vrot.lane.b32.xlu0 %v3932, 64
        %v4006 = vpop.permute.xlu0 %4005
        %4007 = vrot.lane.b32.xlu0 %v3933, 64
        %v4008 = vpop.permute.xlu0 %4007
        %4009 = vrot.lane.b32.xlu0 %v3934, 64
        %v4010 = vpop.permute.xlu0 %4009
        %4011 = vrot.lane.b32.xlu0 %v3935, 64
        %v4012 = vpop.permute.xlu0 %4011
        %4013 = vrot.lane.b32.xlu0 %v3936, 64
        %v4014 = vpop.permute.xlu0 %4013
        %4015 = vrot.lane.b32.xlu0 %v3937, 64
        %v4016 = vpop.permute.xlu0 %4015
        %4017 = vrot.lane.b32.xlu0 %v3938, 64
        %v4018 = vpop.permute.xlu0 %4017
        %4019 = vrot.lane.b32.xlu0 %v3939, 64
        %v4020 = vpop.permute.xlu0 %4019
        %4021 = vrot.lane.b32.xlu0 %v3940, 64
        %v4022 = vpop.permute.xlu0 %4021
        %4023 = vrot.lane.b32.xlu0 %v3941, 64
        %v4024 = vpop.permute.xlu0 %4023
        %4025 = vrot.lane.b32.xlu0 %v3942, 64
        %v4026 = vpop.permute.xlu0 %4025
        %4027 = vrot.lane.b32.xlu0 %v3943, 64
        %v4028 = vpop.permute.xlu0 %4027
        %4029 = vrot.lane.b32.xlu0 %v3944, 64
        %v4030 = vpop.permute.xlu0 %4029
        %4031 = vrot.lane.b32.xlu0 %v3945, 64
        %v4032 = vpop.permute.xlu0 %4031
        %4033 = vrot.lane.b32.xlu0 %v3946, 64
        %v4034 = vpop.permute.xlu0 %4033
        %4035 = vrot.lane.b32.xlu0 %v3947, 64
        %v4036 = vpop.permute.xlu0 %4035
        %4037 = vrot.lane.b32.xlu0 %v3948, 64
        %v4038 = vpop.permute.xlu0 %4037
        %4039 = vrot.lane.b32.xlu0 %v3949, 64
        %v4040 = vpop.permute.xlu0 %4039
        %4041 = vrot.lane.b32.xlu0 %v3950, 64
        %v4042 = vpop.permute.xlu0 %4041
        %4043 = vrot.lane.b32.xlu0 %v3951, 64
        %v4044 = vpop.permute.xlu0 %4043
        %4045 = vrot.lane.b32.xlu0 %v3952, 64
        %v4046 = vpop.permute.xlu0 %4045
        %4047 = vrot.lane.b32.xlu0 %v3953, 64
        %v4048 = vpop.permute.xlu0 %4047
        %4049 = vrot.lane.b32.xlu0 %v3954, 64
        %v4050 = vpop.permute.xlu0 %4049
        %vm4083 = vcmask 785920
        %4084 = vst.msk [vmem:[#allocation3] sm:$0xff] %vm4083, %v3988
        %4085 = vst.msk [vmem:[#allocation3 + $0x18] sm:$0xff] %vm4083, %v3990
        %4086 = vst.msk [vmem:[#allocation3 + $0x30] sm:$0xff] %vm4083, %v3992
        %4087 = vst.msk [vmem:[#allocation3 + $0x48] sm:$0xff] %vm4083, %v3994
        %4088 = vst.msk [vmem:[#allocation3 + $0x60] sm:$0xff] %vm4083, %v3996
        %4089 = vst.msk [vmem:[#allocation3 + $0x78] sm:$0xff] %vm4083, %v3998
        %4090 = vst.msk [vmem:[#allocation3 + $0x90] sm:$0xff] %vm4083, %v4000
        %4091 = vst.msk [vmem:[#allocation3 + $0xa8] sm:$0xff] %vm4083, %v4002
        %4092 = vst.msk [vmem:[#allocation3 + $0xc0] sm:$0xff] %vm4083, %v4004
        %4093 = vst.msk [vmem:[#allocation3 + $0xd8] sm:$0xff] %vm4083, %v4006
        %4094 = vst.msk [vmem:[#allocation3 + $0xf0] sm:$0xff] %vm4083, %v4008
        %4095 = vst.msk [vmem:[#allocation3 + $0x108] sm:$0xff] %vm4083, %v4010
        %4096 = vst.msk [vmem:[#allocation3 + $0x120] sm:$0xff] %vm4083, %v4012
        %4097 = vst.msk [vmem:[#allocation3 + $0x138] sm:$0xff] %vm4083, %v4014
        %4098 = vst.msk [vmem:[#allocation3 + $0x150] sm:$0xff] %vm4083, %v4016
        %4099 = vst.msk [vmem:[#allocation3 + $0x168] sm:$0xff] %vm4083, %v4018
        %4100 = vst.msk [vmem:[#allocation3 + $0x180] sm:$0xff] %vm4083, %v4020
        %4101 = vst.msk [vmem:[#allocation3 + $0x198] sm:$0xff] %vm4083, %v4022
        %4102 = vst.msk [vmem:[#allocation3 + $0x1b0] sm:$0xff] %vm4083, %v4024
        %4103 = vst.msk [vmem:[#allocation3 + $0x1c8] sm:$0xff] %vm4083, %v4026
        %4104 = vst.msk [vmem:[#allocation3 + $0x1e0] sm:$0xff] %vm4083, %v4028
        %4105 = vst.msk [vmem:[#allocation3 + $0x1f8] sm:$0xff] %vm4083, %v4030
        %4106 = vst.msk [vmem:[#allocation3 + $0x210] sm:$0xff] %vm4083, %v4032
        %4107 = vst.msk [vmem:[#allocation3 + $0x228] sm:$0xff] %vm4083, %v4034
        %4108 = vst.msk [vmem:[#allocation3 + $0x240] sm:$0xff] %vm4083, %v4036
        %4109 = vst.msk [vmem:[#allocation3 + $0x258] sm:$0xff] %vm4083, %v4038
        %4110 = vst.msk [vmem:[#allocation3 + $0x270] sm:$0xff] %vm4083, %v4040
        %4111 = vst.msk [vmem:[#allocation3 + $0x288] sm:$0xff] %vm4083, %v4042
        %4112 = vst.msk [vmem:[#allocation3 + $0x2a0] sm:$0xff] %vm4083, %v4044
        %4113 = vst.msk [vmem:[#allocation3 + $0x2b8] sm:$0xff] %vm4083, %v4046
        %4114 = vst.msk [vmem:[#allocation3 + $0x2d0] sm:$0xff] %vm4083, %v4048
        %4115 = vst.msk [vmem:[#allocation3 + $0x2e8] sm:$0xff] %vm4083, %v4050
        %v4116 = vld [vmem:[#allocation2 + $0x17] sm:$0xff]
        %v4117 = vld [vmem:[#allocation2 + $0x1f] sm:$0xff]
        %v4118 = vld [vmem:[#allocation2 + $0x27] sm:$0xff]
        %v4119 = vld [vmem:[#allocation2 + $0x2f] sm:$0xff]
        %v4120 = vld [vmem:[#allocation2 + $0x37] sm:$0xff]
        %v4121 = vld [vmem:[#allocation2 + $0x3f] sm:$0xff]
        %v4122 = vld [vmem:[#allocation2 + $0x47] sm:$0xff]
        %v4123 = vld [vmem:[#allocation2 + $0x4f] sm:$0xff]
        %v4124 = vld [vmem:[#allocation2 + $0x57] sm:$0xff]
        %v4125 = vld [vmem:[#allocation2 + $0x5f] sm:$0xff]
        %v4126 = vld [vmem:[#allocation2 + $0x67] sm:$0xff]
        %v4127 = vld [vmem:[#allocation2 + $0x6f] sm:$0xff]
        %v4128 = vld [vmem:[#allocation2 + $0x77] sm:$0xff]
        %v4129 = vld [vmem:[#allocation2 + $0x7f] sm:$0xff]
        %v4130 = vld [vmem:[#allocation2 + $0x87] sm:$0xff]
        %v4131 = vld [vmem:[#allocation2 + $0x8f] sm:$0xff]
        %v4132 = vld [vmem:[#allocation2 + $0x97] sm:$0xff]
        %v4133 = vld [vmem:[#allocation2 + $0x9f] sm:$0xff]
        %v4134 = vld [vmem:[#allocation2 + $0xa7] sm:$0xff]
        %v4135 = vld [vmem:[#allocation2 + $0xaf] sm:$0xff]
        %v4136 = vld [vmem:[#allocation2 + $0xb7] sm:$0xff]
        %v4137 = vld [vmem:[#allocation2 + $0xbf] sm:$0xff]
        %v4138 = vld [vmem:[#allocation2 + $0xc7] sm:$0xff]
        %v4139 = vld [vmem:[#allocation2 + $0xcf] sm:$0xff]
        %v4140 = vld [vmem:[#allocation2 + $0xd7] sm:$0xff]
        %v4141 = vld [vmem:[#allocation2 + $0xdf] sm:$0xff]
        %v4142 = vld [vmem:[#allocation2 + $0xe7] sm:$0xff]
        %v4143 = vld [vmem:[#allocation2 + $0xef] sm:$0xff]
        %v4144 = vld [vmem:[#allocation2 + $0xf7] sm:$0xff]
        %v4145 = vld [vmem:[#allocation2 + $0xff] sm:$0xff]
        %v4146 = vld [vmem:[#allocation2 + $0x107] sm:$0xff]
        %v4147 = vld [vmem:[#allocation2 + $0x10f] sm:$0xff]
        %v4148 = vmul.f32 %v4116, %v3317
        %v4149 = vmul.f32 %v4117, %v3322
        %v4150 = vmul.f32 %v4118, %v3327
        %v4151 = vmul.f32 %v4119, %v3332
        %v4152 = vmul.f32 %v4120, %v3337
        %v4153 = vmul.f32 %v4121, %v3342
        %v4154 = vmul.f32 %v4122, %v3347
        %v4155 = vmul.f32 %v4123, %v3352
        %v4156 = vmul.f32 %v4124, %v3357
        %v4157 = vmul.f32 %v4125, %v3362
        %v4158 = vmul.f32 %v4126, %v3367
        %v4159 = vmul.f32 %v4127, %v3372
        %v4160 = vmul.f32 %v4128, %v3377
        %v4161 = vmul.f32 %v4129, %v3382
        %v4162 = vmul.f32 %v4130, %v3387
        %v4163 = vmul.f32 %v4131, %v3392
        %v4164 = vmul.f32 %v4132, %v3397
        %v4165 = vmul.f32 %v4133, %v3402
        %v4166 = vmul.f32 %v4134, %v3407
        %v4167 = vmul.f32 %v4135, %v3412
        %v4168 = vmul.f32 %v4136, %v3417
        %v4169 = vmul.f32 %v4137, %v3422
        %v4170 = vmul.f32 %v4138, %v3427
        %v4171 = vmul.f32 %v4139, %v3432
        %v4172 = vmul.f32 %v4140, %v3437
        %v4173 = vmul.f32 %v4141, %v3442
        %v4174 = vmul.f32 %v4142, %v3447
        %v4175 = vmul.f32 %v4143, %v3452
        %v4176 = vmul.f32 %v4144, %v3457
        %v4177 = vmul.f32 %v4145, %v3462
        %v4178 = vmul.f32 %v4146, %v3467
        %v4179 = vmul.f32 %v4147, %v3472
        %4212 = vrot.lane.b32.xlu0 %v4148, 96
        %v4213 = vpop.permute.xlu0 %4212
        %4214 = vrot.lane.b32.xlu0 %v4149, 96
        %v4215 = vpop.permute.xlu0 %4214
        %4216 = vrot.lane.b32.xlu0 %v4150, 96
        %v4217 = vpop.permute.xlu0 %4216
        %4218 = vrot.lane.b32.xlu0 %v4151, 96
        %v4219 = vpop.permute.xlu0 %4218
        %4220 = vrot.lane.b32.xlu0 %v4152, 96
        %v4221 = vpop.permute.xlu0 %4220
        %4222 = vrot.lane.b32.xlu0 %v4153, 96
        %v4223 = vpop.permute.xlu0 %4222
        %4224 = vrot.lane.b32.xlu0 %v4154, 96
        %v4225 = vpop.permute.xlu0 %4224
        %4226 = vrot.lane.b32.xlu0 %v4155, 96
        %v4227 = vpop.permute.xlu0 %4226
        %4228 = vrot.lane.b32.xlu0 %v4156, 96
        %v4229 = vpop.permute.xlu0 %4228
        %4230 = vrot.lane.b32.xlu0 %v4157, 96
        %v4231 = vpop.permute.xlu0 %4230
        %4232 = vrot.lane.b32.xlu0 %v4158, 96
        %v4233 = vpop.permute.xlu0 %4232
        %4234 = vrot.lane.b32.xlu0 %v4159, 96
        %v4235 = vpop.permute.xlu0 %4234
        %4236 = vrot.lane.b32.xlu0 %v4160, 96
        %v4237 = vpop.permute.xlu0 %4236
        %4238 = vrot.lane.b32.xlu0 %v4161, 96
        %v4239 = vpop.permute.xlu0 %4238
        %4240 = vrot.lane.b32.xlu0 %v4162, 96
        %v4241 = vpop.permute.xlu0 %4240
        %4242 = vrot.lane.b32.xlu0 %v4163, 96
        %v4243 = vpop.permute.xlu0 %4242
        %4244 = vrot.lane.b32.xlu0 %v4164, 96
        %v4245 = vpop.permute.xlu0 %4244
        %4246 = vrot.lane.b32.xlu0 %v4165, 96
        %v4247 = vpop.permute.xlu0 %4246
        %4248 = vrot.lane.b32.xlu0 %v4166, 96
        %v4249 = vpop.permute.xlu0 %4248
        %4250 = vrot.lane.b32.xlu0 %v4167, 96
        %v4251 = vpop.permute.xlu0 %4250
        %4252 = vrot.lane.b32.xlu0 %v4168, 96
        %v4253 = vpop.permute.xlu0 %4252
        %4254 = vrot.lane.b32.xlu0 %v4169, 96
        %v4255 = vpop.permute.xlu0 %4254
        %4256 = vrot.lane.b32.xlu0 %v4170, 96
        %v4257 = vpop.permute.xlu0 %4256
        %4258 = vrot.lane.b32.xlu0 %v4171, 96
        %v4259 = vpop.permute.xlu0 %4258
        %4260 = vrot.lane.b32.xlu0 %v4172, 96
        %v4261 = vpop.permute.xlu0 %4260
        %4262 = vrot.lane.b32.xlu0 %v4173, 96
        %v4263 = vpop.permute.xlu0 %4262
        %4264 = vrot.lane.b32.xlu0 %v4174, 96
        %v4265 = vpop.permute.xlu0 %4264
        %4266 = vrot.lane.b32.xlu0 %v4175, 96
        %v4267 = vpop.permute.xlu0 %4266
        %4268 = vrot.lane.b32.xlu0 %v4176, 96
        %v4269 = vpop.permute.xlu0 %4268
        %4270 = vrot.lane.b32.xlu0 %v4177, 96
        %v4271 = vpop.permute.xlu0 %4270
        %4272 = vrot.lane.b32.xlu0 %v4178, 96
        %v4273 = vpop.permute.xlu0 %4272
        %4274 = vrot.lane.b32.xlu0 %v4179, 96
        %v4275 = vpop.permute.xlu0 %4274
        %vm4308 = vcmask 1048320
        %4309 = vst.msk [vmem:[#allocation3] sm:$0xff] %vm4308, %v4213
        %4310 = vst.msk [vmem:[#allocation3 + $0x18] sm:$0xff] %vm4308, %v4215
        %4311 = vst.msk [vmem:[#allocation3 + $0x30] sm:$0xff] %vm4308, %v4217
        %4312 = vst.msk [vmem:[#allocation3 + $0x48] sm:$0xff] %vm4308, %v4219
        %4313 = vst.msk [vmem:[#allocation3 + $0x60] sm:$0xff] %vm4308, %v4221
        %4314 = vst.msk [vmem:[#allocation3 + $0x78] sm:$0xff] %vm4308, %v4223
        %4315 = vst.msk [vmem:[#allocation3 + $0x90] sm:$0xff] %vm4308, %v4225
        %4316 = vst.msk [vmem:[#allocation3 + $0xa8] sm:$0xff] %vm4308, %v4227
        %4317 = vst.msk [vmem:[#allocation3 + $0xc0] sm:$0xff] %vm4308, %v4229
        %4318 = vst.msk [vmem:[#allocation3 + $0xd8] sm:$0xff] %vm4308, %v4231
        %4319 = vst.msk [vmem:[#allocation3 + $0xf0] sm:$0xff] %vm4308, %v4233
        %4320 = vst.msk [vmem:[#allocation3 + $0x108] sm:$0xff] %vm4308, %v4235
        %4321 = vst.msk [vmem:[#allocation3 + $0x120] sm:$0xff] %vm4308, %v4237
        %4322 = vst.msk [vmem:[#allocation3 + $0x138] sm:$0xff] %vm4308, %v4239
        %4323 = vst.msk [vmem:[#allocation3 + $0x150] sm:$0xff] %vm4308, %v4241
        %4324 = vst.msk [vmem:[#allocation3 + $0x168] sm:$0xff] %vm4308, %v4243
        %4325 = vst.msk [vmem:[#allocation3 + $0x180] sm:$0xff] %vm4308, %v4245
        %4326 = vst.msk [vmem:[#allocation3 + $0x198] sm:$0xff] %vm4308, %v4247
        %4327 = vst.msk [vmem:[#allocation3 + $0x1b0] sm:$0xff] %vm4308, %v4249
        %4328 = vst.msk [vmem:[#allocation3 + $0x1c8] sm:$0xff] %vm4308, %v4251
        %4329 = vst.msk [vmem:[#allocation3 + $0x1e0] sm:$0xff] %vm4308, %v4253
        %4330 = vst.msk [vmem:[#allocation3 + $0x1f8] sm:$0xff] %vm4308, %v4255
        %4331 = vst.msk [vmem:[#allocation3 + $0x210] sm:$0xff] %vm4308, %v4257
        %4332 = vst.msk [vmem:[#allocation3 + $0x228] sm:$0xff] %vm4308, %v4259
        %4333 = vst.msk [vmem:[#allocation3 + $0x240] sm:$0xff] %vm4308, %v4261
        %4334 = vst.msk [vmem:[#allocation3 + $0x258] sm:$0xff] %vm4308, %v4263
        %4335 = vst.msk [vmem:[#allocation3 + $0x270] sm:$0xff] %vm4308, %v4265
        %4336 = vst.msk [vmem:[#allocation3 + $0x288] sm:$0xff] %vm4308, %v4267
        %4337 = vst.msk [vmem:[#allocation3 + $0x2a0] sm:$0xff] %vm4308, %v4269
        %4338 = vst.msk [vmem:[#allocation3 + $0x2b8] sm:$0xff] %vm4308, %v4271
        %4339 = vst.msk [vmem:[#allocation3 + $0x2d0] sm:$0xff] %vm4308, %v4273
        %4340 = vst.msk [vmem:[#allocation3 + $0x2e8] sm:$0xff] %vm4308, %v4275
        %v4341 = vld [vmem:[#allocation2 + $0x18] sm:$0xff]
        %v4342 = vld [vmem:[#allocation2 + $0x20] sm:$0xff]
        %v4343 = vld [vmem:[#allocation2 + $0x28] sm:$0xff]
        %v4344 = vld [vmem:[#allocation2 + $0x30] sm:$0xff]
        %v4345 = vld [vmem:[#allocation2 + $0x38] sm:$0xff]
        %v4346 = vld [vmem:[#allocation2 + $0x40] sm:$0xff]
        %v4347 = vld [vmem:[#allocation2 + $0x48] sm:$0xff]
        %v4348 = vld [vmem:[#allocation2 + $0x50] sm:$0xff]
        %v4349 = vld [vmem:[#allocation2 + $0x58] sm:$0xff]
        %v4350 = vld [vmem:[#allocation2 + $0x60] sm:$0xff]
        %v4351 = vld [vmem:[#allocation2 + $0x68] sm:$0xff]
        %v4352 = vld [vmem:[#allocation2 + $0x70] sm:$0xff]
        %v4353 = vld [vmem:[#allocation2 + $0x78] sm:$0xff]
        %v4354 = vld [vmem:[#allocation2 + $0x80] sm:$0xff]
        %v4355 = vld [vmem:[#allocation2 + $0x88] sm:$0xff]
        %v4356 = vld [vmem:[#allocation2 + $0x90] sm:$0xff]
        %v4357 = vld [vmem:[#allocation2 + $0x98] sm:$0xff]
        %v4358 = vld [vmem:[#allocation2 + $0xa0] sm:$0xff]
        %v4359 = vld [vmem:[#allocation2 + $0xa8] sm:$0xff]
        %v4360 = vld [vmem:[#allocation2 + $0xb0] sm:$0xff]
        %v4361 = vld [vmem:[#allocation2 + $0xb8] sm:$0xff]
        %v4362 = vld [vmem:[#allocation2 + $0xc0] sm:$0xff]
        %v4363 = vld [vmem:[#allocation2 + $0xc8] sm:$0xff]
        %v4364 = vld [vmem:[#allocation2 + $0xd0] sm:$0xff]
        %v4365 = vld [vmem:[#allocation2 + $0xd8] sm:$0xff]
        %v4366 = vld [vmem:[#allocation2 + $0xe0] sm:$0xff]
        %v4367 = vld [vmem:[#allocation2 + $0xe8] sm:$0xff]
        %v4368 = vld [vmem:[#allocation2 + $0xf0] sm:$0xff]
        %v4369 = vld [vmem:[#allocation2 + $0xf8] sm:$0xff]
        %v4370 = vld [vmem:[#allocation2 + $0x100] sm:$0xff]
        %v4371 = vld [vmem:[#allocation2 + $0x108] sm:$0xff]
        %v4372 = vld [vmem:[#allocation2 + $0x110] sm:$0xff]
        %4373 = vst.msk [vmem:[#allocation3 + $0x8] sm:$0xff] %vm424, %v4341
        %4374 = vst.msk [vmem:[#allocation3 + $0x20] sm:$0xff] %vm424, %v4342
        %4375 = vst.msk [vmem:[#allocation3 + $0x38] sm:$0xff] %vm424, %v4343
        %4376 = vst.msk [vmem:[#allocation3 + $0x50] sm:$0xff] %vm424, %v4344
        %4377 = vst.msk [vmem:[#allocation3 + $0x68] sm:$0xff] %vm424, %v4345
        %4378 = vst.msk [vmem:[#allocation3 + $0x80] sm:$0xff] %vm424, %v4346
        %4379 = vst.msk [vmem:[#allocation3 + $0x98] sm:$0xff] %vm424, %v4347
        %4380 = vst.msk [vmem:[#allocation3 + $0xb0] sm:$0xff] %vm424, %v4348
        %4381 = vst.msk [vmem:[#allocation3 + $0xc8] sm:$0xff] %vm424, %v4349
        %4382 = vst.msk [vmem:[#allocation3 + $0xe0] sm:$0xff] %vm424, %v4350
        %4383 = vst.msk [vmem:[#allocation3 + $0xf8] sm:$0xff] %vm424, %v4351
        %4384 = vst.msk [vmem:[#allocation3 + $0x110] sm:$0xff] %vm424, %v4352
        %4385 = vst.msk [vmem:[#allocation3 + $0x128] sm:$0xff] %vm424, %v4353
        %4386 = vst.msk [vmem:[#allocation3 + $0x140] sm:$0xff] %vm424, %v4354
        %4387 = vst.msk [vmem:[#allocation3 + $0x158] sm:$0xff] %vm424, %v4355
        %4388 = vst.msk [vmem:[#allocation3 + $0x170] sm:$0xff] %vm424, %v4356
        %4389 = vst.msk [vmem:[#allocation3 + $0x188] sm:$0xff] %vm424, %v4357
        %4390 = vst.msk [vmem:[#allocation3 + $0x1a0] sm:$0xff] %vm424, %v4358
        %4391 = vst.msk [vmem:[#allocation3 + $0x1b8] sm:$0xff] %vm424, %v4359
        %4392 = vst.msk [vmem:[#allocation3 + $0x1d0] sm:$0xff] %vm424, %v4360
        %4393 = vst.msk [vmem:[#allocation3 + $0x1e8] sm:$0xff] %vm424, %v4361
        %4394 = vst.msk [vmem:[#allocation3 + $0x200] sm:$0xff] %vm424, %v4362
        %4395 = vst.msk [vmem:[#allocation3 + $0x218] sm:$0xff] %vm424, %v4363
        %4396 = vst.msk [vmem:[#allocation3 + $0x230] sm:$0xff] %vm424, %v4364
        %4397 = vst.msk [vmem:[#allocation3 + $0x248] sm:$0xff] %vm424, %v4365
        %4398 = vst.msk [vmem:[#allocation3 + $0x260] sm:$0xff] %vm424, %v4366
        %4399 = vst.msk [vmem:[#allocation3 + $0x278] sm:$0xff] %vm424, %v4367
        %4400 = vst.msk [vmem:[#allocation3 + $0x290] sm:$0xff] %vm424, %v4368
        %4401 = vst.msk [vmem:[#allocation3 + $0x2a8] sm:$0xff] %vm424, %v4369
        %4402 = vst.msk [vmem:[#allocation3 + $0x2c0] sm:$0xff] %vm424, %v4370
        %4403 = vst.msk [vmem:[#allocation3 + $0x2d8] sm:$0xff] %vm424, %v4371
        %4404 = vst.msk [vmem:[#allocation3 + $0x2f0] sm:$0xff] %vm424, %v4372
        %v4405 = vld [vmem:[#allocation2 + $0x19] sm:$0xff]
        %v4406 = vld [vmem:[#allocation2 + $0x21] sm:$0xff]
        %v4407 = vld [vmem:[#allocation2 + $0x29] sm:$0xff]
        %v4408 = vld [vmem:[#allocation2 + $0x31] sm:$0xff]
        %v4409 = vld [vmem:[#allocation2 + $0x39] sm:$0xff]
        %v4410 = vld [vmem:[#allocation2 + $0x41] sm:$0xff]
        %v4411 = vld [vmem:[#allocation2 + $0x49] sm:$0xff]
        %v4412 = vld [vmem:[#allocation2 + $0x51] sm:$0xff]
        %v4413 = vld [vmem:[#allocation2 + $0x59] sm:$0xff]
        %v4414 = vld [vmem:[#allocation2 + $0x61] sm:$0xff]
        %v4415 = vld [vmem:[#allocation2 + $0x69] sm:$0xff]
        %v4416 = vld [vmem:[#allocation2 + $0x71] sm:$0xff]
        %v4417 = vld [vmem:[#allocation2 + $0x79] sm:$0xff]
        %v4418 = vld [vmem:[#allocation2 + $0x81] sm:$0xff]
        %v4419 = vld [vmem:[#allocation2 + $0x89] sm:$0xff]
        %v4420 = vld [vmem:[#allocation2 + $0x91] sm:$0xff]
        %v4421 = vld [vmem:[#allocation2 + $0x99] sm:$0xff]
        %v4422 = vld [vmem:[#allocation2 + $0xa1] sm:$0xff]
        %v4423 = vld [vmem:[#allocation2 + $0xa9] sm:$0xff]
        %v4424 = vld [vmem:[#allocation2 + $0xb1] sm:$0xff]
        %v4425 = vld [vmem:[#allocation2 + $0xb9] sm:$0xff]
        %v4426 = vld [vmem:[#allocation2 + $0xc1] sm:$0xff]
        %v4427 = vld [vmem:[#allocation2 + $0xc9] sm:$0xff]
        %v4428 = vld [vmem:[#allocation2 + $0xd1] sm:$0xff]
        %v4429 = vld [vmem:[#allocation2 + $0xd9] sm:$0xff]
        %v4430 = vld [vmem:[#allocation2 + $0xe1] sm:$0xff]
        %v4431 = vld [vmem:[#allocation2 + $0xe9] sm:$0xff]
        %v4432 = vld [vmem:[#allocation2 + $0xf1] sm:$0xff]
        %v4433 = vld [vmem:[#allocation2 + $0xf9] sm:$0xff]
        %v4434 = vld [vmem:[#allocation2 + $0x101] sm:$0xff]
        %v4435 = vld [vmem:[#allocation2 + $0x109] sm:$0xff]
        %v4436 = vld [vmem:[#allocation2 + $0x111] sm:$0xff]
        %v4437 = vmul.f32 %v4405, %v3766
        %v4438 = vmul.f32 %v4406, %v3771
        %v4439 = vmul.f32 %v4407, %v3776
        %v4440 = vmul.f32 %v4408, %v3781
        %v4441 = vmul.f32 %v4409, %v3786
        %v4442 = vmul.f32 %v4410, %v3791
        %v4443 = vmul.f32 %v4411, %v3796
        %v4444 = vmul.f32 %v4412, %v3801
        %v4445 = vmul.f32 %v4413, %v3806
        %v4446 = vmul.f32 %v4414, %v3811
        %v4447 = vmul.f32 %v4415, %v3816
        %v4448 = vmul.f32 %v4416, %v3821
        %v4449 = vmul.f32 %v4417, %v3826
        %v4450 = vmul.f32 %v4418, %v3831
        %v4451 = vmul.f32 %v4419, %v3836
        %v4452 = vmul.f32 %v4420, %v3841
        %v4453 = vmul.f32 %v4421, %v3846
        %v4454 = vmul.f32 %v4422, %v3851
        %v4455 = vmul.f32 %v4423, %v3856
        %v4456 = vmul.f32 %v4424, %v3861
        %v4457 = vmul.f32 %v4425, %v3866
        %v4458 = vmul.f32 %v4426, %v3871
        %v4459 = vmul.f32 %v4427, %v3876
        %v4460 = vmul.f32 %v4428, %v3881
        %v4461 = vmul.f32 %v4429, %v3886
        %v4462 = vmul.f32 %v4430, %v3891
        %v4463 = vmul.f32 %v4431, %v3896
        %v4464 = vmul.f32 %v4432, %v3901
        %v4465 = vmul.f32 %v4433, %v3906
        %v4466 = vmul.f32 %v4434, %v3911
        %v4467 = vmul.f32 %v4435, %v3916
        %v4468 = vmul.f32 %v4436, %v3921
        %4501 = vrot.lane.b32.xlu0 %v4437, 32
        %v4502 = vpop.permute.xlu0 %4501
        %4503 = vrot.lane.b32.xlu0 %v4438, 32
        %v4504 = vpop.permute.xlu0 %4503
        %4505 = vrot.lane.b32.xlu0 %v4439, 32
        %v4506 = vpop.permute.xlu0 %4505
        %4507 = vrot.lane.b32.xlu0 %v4440, 32
        %v4508 = vpop.permute.xlu0 %4507
        %4509 = vrot.lane.b32.xlu0 %v4441, 32
        %v4510 = vpop.permute.xlu0 %4509
        %4511 = vrot.lane.b32.xlu0 %v4442, 32
        %v4512 = vpop.permute.xlu0 %4511
        %4513 = vrot.lane.b32.xlu0 %v4443, 32
        %v4514 = vpop.permute.xlu0 %4513
        %4515 = vrot.lane.b32.xlu0 %v4444, 32
        %v4516 = vpop.permute.xlu0 %4515
        %4517 = vrot.lane.b32.xlu0 %v4445, 32
        %v4518 = vpop.permute.xlu0 %4517
        %4519 = vrot.lane.b32.xlu0 %v4446, 32
        %v4520 = vpop.permute.xlu0 %4519
        %4521 = vrot.lane.b32.xlu0 %v4447, 32
        %v4522 = vpop.permute.xlu0 %4521
        %4523 = vrot.lane.b32.xlu0 %v4448, 32
        %v4524 = vpop.permute.xlu0 %4523
        %4525 = vrot.lane.b32.xlu0 %v4449, 32
        %v4526 = vpop.permute.xlu0 %4525
        %4527 = vrot.lane.b32.xlu0 %v4450, 32
        %v4528 = vpop.permute.xlu0 %4527
        %4529 = vrot.lane.b32.xlu0 %v4451, 32
        %v4530 = vpop.permute.xlu0 %4529
        %4531 = vrot.lane.b32.xlu0 %v4452, 32
        %v4532 = vpop.permute.xlu0 %4531
        %4533 = vrot.lane.b32.xlu0 %v4453, 32
        %v4534 = vpop.permute.xlu0 %4533
        %4535 = vrot.lane.b32.xlu0 %v4454, 32
        %v4536 = vpop.permute.xlu0 %4535
        %4537 = vrot.lane.b32.xlu0 %v4455, 32
        %v4538 = vpop.permute.xlu0 %4537
        %4539 = vrot.lane.b32.xlu0 %v4456, 32
        %v4540 = vpop.permute.xlu0 %4539
        %4541 = vrot.lane.b32.xlu0 %v4457, 32
        %v4542 = vpop.permute.xlu0 %4541
        %4543 = vrot.lane.b32.xlu0 %v4458, 32
        %v4544 = vpop.permute.xlu0 %4543
        %4545 = vrot.lane.b32.xlu0 %v4459, 32
        %v4546 = vpop.permute.xlu0 %4545
        %4547 = vrot.lane.b32.xlu0 %v4460, 32
        %v4548 = vpop.permute.xlu0 %4547
        %4549 = vrot.lane.b32.xlu0 %v4461, 32
        %v4550 = vpop.permute.xlu0 %4549
        %4551 = vrot.lane.b32.xlu0 %v4462, 32
        %v4552 = vpop.permute.xlu0 %4551
        %4553 = vrot.lane.b32.xlu0 %v4463, 32
        %v4554 = vpop.permute.xlu0 %4553
        %4555 = vrot.lane.b32.xlu0 %v4464, 32
        %v4556 = vpop.permute.xlu0 %4555
        %4557 = vrot.lane.b32.xlu0 %v4465, 32
        %v4558 = vpop.permute.xlu0 %4557
        %4559 = vrot.lane.b32.xlu0 %v4466, 32
        %v4560 = vpop.permute.xlu0 %4559
        %4561 = vrot.lane.b32.xlu0 %v4467, 32
        %v4562 = vpop.permute.xlu0 %4561
        %4563 = vrot.lane.b32.xlu0 %v4468, 32
        %v4564 = vpop.permute.xlu0 %4563
        %4597 = vst.msk [vmem:[#allocation3 + $0x8] sm:$0xff] %vm3698, %v4502
        %4598 = vst.msk [vmem:[#allocation3 + $0x20] sm:$0xff] %vm3698, %v4504
        %4599 = vst.msk [vmem:[#allocation3 + $0x38] sm:$0xff] %vm3698, %v4506
        %4600 = vst.msk [vmem:[#allocation3 + $0x50] sm:$0xff] %vm3698, %v4508
        %4601 = vst.msk [vmem:[#allocation3 + $0x68] sm:$0xff] %vm3698, %v4510
        %4602 = vst.msk [vmem:[#allocation3 + $0x80] sm:$0xff] %vm3698, %v4512
        %4603 = vst.msk [vmem:[#allocation3 + $0x98] sm:$0xff] %vm3698, %v4514
        %4604 = vst.msk [vmem:[#allocation3 + $0xb0] sm:$0xff] %vm3698, %v4516
        %4605 = vst.msk [vmem:[#allocation3 + $0xc8] sm:$0xff] %vm3698, %v4518
        %4606 = vst.msk [vmem:[#allocation3 + $0xe0] sm:$0xff] %vm3698, %v4520
        %4607 = vst.msk [vmem:[#allocation3 + $0xf8] sm:$0xff] %vm3698, %v4522
        %4608 = vst.msk [vmem:[#allocation3 + $0x110] sm:$0xff] %vm3698, %v4524
        %4609 = vst.msk [vmem:[#allocation3 + $0x128] sm:$0xff] %vm3698, %v4526
        %4610 = vst.msk [vmem:[#allocation3 + $0x140] sm:$0xff] %vm3698, %v4528
        %4611 = vst.msk [vmem:[#allocation3 + $0x158] sm:$0xff] %vm3698, %v4530
        %4612 = vst.msk [vmem:[#allocation3 + $0x170] sm:$0xff] %vm3698, %v4532
        %4613 = vst.msk [vmem:[#allocation3 + $0x188] sm:$0xff] %vm3698, %v4534
        %4614 = vst.msk [vmem:[#allocation3 + $0x1a0] sm:$0xff] %vm3698, %v4536
        %4615 = vst.msk [vmem:[#allocation3 + $0x1b8] sm:$0xff] %vm3698, %v4538
        %4616 = vst.msk [vmem:[#allocation3 + $0x1d0] sm:$0xff] %vm3698, %v4540
        %4617 = vst.msk [vmem:[#allocation3 + $0x1e8] sm:$0xff] %vm3698, %v4542
        %4618 = vst.msk [vmem:[#allocation3 + $0x200] sm:$0xff] %vm3698, %v4544
        %4619 = vst.msk [vmem:[#allocation3 + $0x218] sm:$0xff] %vm3698, %v4546
        %4620 = vst.msk [vmem:[#allocation3 + $0x230] sm:$0xff] %vm3698, %v4548
        %4621 = vst.msk [vmem:[#allocation3 + $0x248] sm:$0xff] %vm3698, %v4550
        %4622 = vst.msk [vmem:[#allocation3 + $0x260] sm:$0xff] %vm3698, %v4552
        %4623 = vst.msk [vmem:[#allocation3 + $0x278] sm:$0xff] %vm3698, %v4554
        %4624 = vst.msk [vmem:[#allocation3 + $0x290] sm:$0xff] %vm3698, %v4556
        %4625 = vst.msk [vmem:[#allocation3 + $0x2a8] sm:$0xff] %vm3698, %v4558
        %4626 = vst.msk [vmem:[#allocation3 + $0x2c0] sm:$0xff] %vm3698, %v4560
        %4627 = vst.msk [vmem:[#allocation3 + $0x2d8] sm:$0xff] %vm3698, %v4562
        %4628 = vst.msk [vmem:[#allocation3 + $0x2f0] sm:$0xff] %vm3698, %v4564
        %v4629 = vld [vmem:[#allocation2 + $0x27] sm:$0xff]
        %v4630 = vld [vmem:[#allocation2 + $0x2f] sm:$0xff]
        %v4631 = vld [vmem:[#allocation2 + $0x37] sm:$0xff]
        %v4632 = vld [vmem:[#allocation2 + $0x3f] sm:$0xff]
        %v4633 = vld [vmem:[#allocation2 + $0x47] sm:$0xff]
        %v4634 = vld [vmem:[#allocation2 + $0x4f] sm:$0xff]
        %v4635 = vld [vmem:[#allocation2 + $0x57] sm:$0xff]
        %v4636 = vld [vmem:[#allocation2 + $0x5f] sm:$0xff]
        %v4637 = vld [vmem:[#allocation2 + $0x67] sm:$0xff]
        %v4638 = vld [vmem:[#allocation2 + $0x6f] sm:$0xff]
        %v4639 = vld [vmem:[#allocation2 + $0x77] sm:$0xff]
        %v4640 = vld [vmem:[#allocation2 + $0x7f] sm:$0xff]
        %v4641 = vld [vmem:[#allocation2 + $0x87] sm:$0xff]
        %v4642 = vld [vmem:[#allocation2 + $0x8f] sm:$0xff]
        %v4643 = vld [vmem:[#allocation2 + $0x97] sm:$0xff]
        %v4644 = vld [vmem:[#allocation2 + $0x9f] sm:$0xff]
        %v4645 = vld [vmem:[#allocation2 + $0xa7] sm:$0xff]
        %v4646 = vld [vmem:[#allocation2 + $0xaf] sm:$0xff]
        %v4647 = vld [vmem:[#allocation2 + $0xb7] sm:$0xff]
        %v4648 = vld [vmem:[#allocation2 + $0xbf] sm:$0xff]
        %v4649 = vld [vmem:[#allocation2 + $0xc7] sm:$0xff]
        %v4650 = vld [vmem:[#allocation2 + $0xcf] sm:$0xff]
        %v4651 = vld [vmem:[#allocation2 + $0xd7] sm:$0xff]
        %v4652 = vld [vmem:[#allocation2 + $0xdf] sm:$0xff]
        %v4653 = vld [vmem:[#allocation2 + $0xe7] sm:$0xff]
        %v4654 = vld [vmem:[#allocation2 + $0xef] sm:$0xff]
        %v4655 = vld [vmem:[#allocation2 + $0xf7] sm:$0xff]
        %v4656 = vld [vmem:[#allocation2 + $0xff] sm:$0xff]
        %v4657 = vld [vmem:[#allocation2 + $0x107] sm:$0xff]
        %v4658 = vld [vmem:[#allocation2 + $0x10f] sm:$0xff]
        %v4659 = vld [vmem:[#allocation2 + $0x117] sm:$0xff]
        %v4660 = vld [vmem:[#allocation2 + $0x11f] sm:$0xff]
        %v4661 = vmul.f32 %v4629, %v3317
        %v4662 = vmul.f32 %v4630, %v3322
        %v4663 = vmul.f32 %v4631, %v3327
        %v4664 = vmul.f32 %v4632, %v3332
        %v4665 = vmul.f32 %v4633, %v3337
        %v4666 = vmul.f32 %v4634, %v3342
        %v4667 = vmul.f32 %v4635, %v3347
        %v4668 = vmul.f32 %v4636, %v3352
        %v4669 = vmul.f32 %v4637, %v3357
        %v4670 = vmul.f32 %v4638, %v3362
        %v4671 = vmul.f32 %v4639, %v3367
        %v4672 = vmul.f32 %v4640, %v3372
        %v4673 = vmul.f32 %v4641, %v3377
        %v4674 = vmul.f32 %v4642, %v3382
        %v4675 = vmul.f32 %v4643, %v3387
        %v4676 = vmul.f32 %v4644, %v3392
        %v4677 = vmul.f32 %v4645, %v3397
        %v4678 = vmul.f32 %v4646, %v3402
        %v4679 = vmul.f32 %v4647, %v3407
        %v4680 = vmul.f32 %v4648, %v3412
        %v4681 = vmul.f32 %v4649, %v3417
        %v4682 = vmul.f32 %v4650, %v3422
        %v4683 = vmul.f32 %v4651, %v3427
        %v4684 = vmul.f32 %v4652, %v3432
        %v4685 = vmul.f32 %v4653, %v3437
        %v4686 = vmul.f32 %v4654, %v3442
        %v4687 = vmul.f32 %v4655, %v3447
        %v4688 = vmul.f32 %v4656, %v3452
        %v4689 = vmul.f32 %v4657, %v3457
        %v4690 = vmul.f32 %v4658, %v3462
        %v4691 = vmul.f32 %v4659, %v3467
        %v4692 = vmul.f32 %v4660, %v3472
        %4725 = vrot.lane.b32.xlu0 %v4661, 64
        %v4726 = vpop.permute.xlu0 %4725
        %4727 = vrot.lane.b32.xlu0 %v4662, 64
        %v4728 = vpop.permute.xlu0 %4727
        %4729 = vrot.lane.b32.xlu0 %v4663, 64
        %v4730 = vpop.permute.xlu0 %4729
        %4731 = vrot.lane.b32.xlu0 %v4664, 64
        %v4732 = vpop.permute.xlu0 %4731
        %4733 = vrot.lane.b32.xlu0 %v4665, 64
        %v4734 = vpop.permute.xlu0 %4733
        %4735 = vrot.lane.b32.xlu0 %v4666, 64
        %v4736 = vpop.permute.xlu0 %4735
        %4737 = vrot.lane.b32.xlu0 %v4667, 64
        %v4738 = vpop.permute.xlu0 %4737
        %4739 = vrot.lane.b32.xlu0 %v4668, 64
        %v4740 = vpop.permute.xlu0 %4739
        %4741 = vrot.lane.b32.xlu0 %v4669, 64
        %v4742 = vpop.permute.xlu0 %4741
        %4743 = vrot.lane.b32.xlu0 %v4670, 64
        %v4744 = vpop.permute.xlu0 %4743
        %4745 = vrot.lane.b32.xlu0 %v4671, 64
        %v4746 = vpop.permute.xlu0 %4745
        %4747 = vrot.lane.b32.xlu0 %v4672, 64
        %v4748 = vpop.permute.xlu0 %4747
        %4749 = vrot.lane.b32.xlu0 %v4673, 64
        %v4750 = vpop.permute.xlu0 %4749
        %4751 = vrot.lane.b32.xlu0 %v4674, 64
        %v4752 = vpop.permute.xlu0 %4751
        %4753 = vrot.lane.b32.xlu0 %v4675, 64
        %v4754 = vpop.permute.xlu0 %4753
        %4755 = vrot.lane.b32.xlu0 %v4676, 64
        %v4756 = vpop.permute.xlu0 %4755
        %4757 = vrot.lane.b32.xlu0 %v4677, 64
        %v4758 = vpop.permute.xlu0 %4757
        %4759 = vrot.lane.b32.xlu0 %v4678, 64
        %v4760 = vpop.permute.xlu0 %4759
        %4761 = vrot.lane.b32.xlu0 %v4679, 64
        %v4762 = vpop.permute.xlu0 %4761
        %4763 = vrot.lane.b32.xlu0 %v4680, 64
        %v4764 = vpop.permute.xlu0 %4763
        %4765 = vrot.lane.b32.xlu0 %v4681, 64
        %v4766 = vpop.permute.xlu0 %4765
        %4767 = vrot.lane.b32.xlu0 %v4682, 64
        %v4768 = vpop.permute.xlu0 %4767
        %4769 = vrot.lane.b32.xlu0 %v4683, 64
        %v4770 = vpop.permute.xlu0 %4769
        %4771 = vrot.lane.b32.xlu0 %v4684, 64
        %v4772 = vpop.permute.xlu0 %4771
        %4773 = vrot.lane.b32.xlu0 %v4685, 64
        %v4774 = vpop.permute.xlu0 %4773
        %4775 = vrot.lane.b32.xlu0 %v4686, 64
        %v4776 = vpop.permute.xlu0 %4775
        %4777 = vrot.lane.b32.xlu0 %v4687, 64
        %v4778 = vpop.permute.xlu0 %4777
        %4779 = vrot.lane.b32.xlu0 %v4688, 64
        %v4780 = vpop.permute.xlu0 %4779
        %4781 = vrot.lane.b32.xlu0 %v4689, 64
        %v4782 = vpop.permute.xlu0 %4781
        %4783 = vrot.lane.b32.xlu0 %v4690, 64
        %v4784 = vpop.permute.xlu0 %4783
        %4785 = vrot.lane.b32.xlu0 %v4691, 64
        %v4786 = vpop.permute.xlu0 %4785
        %4787 = vrot.lane.b32.xlu0 %v4692, 64
        %v4788 = vpop.permute.xlu0 %4787
        %4821 = vst.msk [vmem:[#allocation3 + $0x8] sm:$0xff] %vm4083, %v4726
        %4822 = vst.msk [vmem:[#allocation3 + $0x20] sm:$0xff] %vm4083, %v4728
        %4823 = vst.msk [vmem:[#allocation3 + $0x38] sm:$0xff] %vm4083, %v4730
        %4824 = vst.msk [vmem:[#allocation3 + $0x50] sm:$0xff] %vm4083, %v4732
        %4825 = vst.msk [vmem:[#allocation3 + $0x68] sm:$0xff] %vm4083, %v4734
        %4826 = vst.msk [vmem:[#allocation3 + $0x80] sm:$0xff] %vm4083, %v4736
        %4827 = vst.msk [vmem:[#allocation3 + $0x98] sm:$0xff] %vm4083, %v4738
        %4828 = vst.msk [vmem:[#allocation3 + $0xb0] sm:$0xff] %vm4083, %v4740
        %4829 = vst.msk [vmem:[#allocation3 + $0xc8] sm:$0xff] %vm4083, %v4742
        %4830 = vst.msk [vmem:[#allocation3 + $0xe0] sm:$0xff] %vm4083, %v4744
        %4831 = vst.msk [vmem:[#allocation3 + $0xf8] sm:$0xff] %vm4083, %v4746
        %4832 = vst.msk [vmem:[#allocation3 + $0x110] sm:$0xff] %vm4083, %v4748
        %4833 = vst.msk [vmem:[#allocation3 + $0x128] sm:$0xff] %vm4083, %v4750
        %4834 = vst.msk [vmem:[#allocation3 + $0x140] sm:$0xff] %vm4083, %v4752
        %4835 = vst.msk [vmem:[#allocation3 + $0x158] sm:$0xff] %vm4083, %v4754
        %4836 = vst.msk [vmem:[#allocation3 + $0x170] sm:$0xff] %vm4083, %v4756
        %4837 = vst.msk [vmem:[#allocation3 + $0x188] sm:$0xff] %vm4083, %v4758
        %4838 = vst.msk [vmem:[#allocation3 + $0x1a0] sm:$0xff] %vm4083, %v4760
        %4839 = vst.msk [vmem:[#allocation3 + $0x1b8] sm:$0xff] %vm4083, %v4762
        %4840 = vst.msk [vmem:[#allocation3 + $0x1d0] sm:$0xff] %vm4083, %v4764
        %4841 = vst.msk [vmem:[#allocation3 + $0x1e8] sm:$0xff] %vm4083, %v4766
        %4842 = vst.msk [vmem:[#allocation3 + $0x200] sm:$0xff] %vm4083, %v4768
        %4843 = vst.msk [vmem:[#allocation3 + $0x218] sm:$0xff] %vm4083, %v4770
        %4844 = vst.msk [vmem:[#allocation3 + $0x230] sm:$0xff] %vm4083, %v4772
        %4845 = vst.msk [vmem:[#allocation3 + $0x248] sm:$0xff] %vm4083, %v4774
        %4846 = vst.msk [vmem:[#allocation3 + $0x260] sm:$0xff] %vm4083, %v4776
        %4847 = vst.msk [vmem:[#allocation3 + $0x278] sm:$0xff] %vm4083, %v4778
        %4848 = vst.msk [vmem:[#allocation3 + $0x290] sm:$0xff] %vm4083, %v4780
        %4849 = vst.msk [vmem:[#allocation3 + $0x2a8] sm:$0xff] %vm4083, %v4782
        %4850 = vst.msk [vmem:[#allocation3 + $0x2c0] sm:$0xff] %vm4083, %v4784
        %4851 = vst.msk [vmem:[#allocation3 + $0x2d8] sm:$0xff] %vm4083, %v4786
        %4852 = vst.msk [vmem:[#allocation3 + $0x2f0] sm:$0xff] %vm4083, %v4788
        %v4853 = vld [vmem:[#allocation2 + $0x28] sm:$0xff]
        %v4854 = vld [vmem:[#allocation2 + $0x30] sm:$0xff]
        %v4855 = vld [vmem:[#allocation2 + $0x38] sm:$0xff]
        %v4856 = vld [vmem:[#allocation2 + $0x40] sm:$0xff]
        %v4857 = vld [vmem:[#allocation2 + $0x48] sm:$0xff]
        %v4858 = vld [vmem:[#allocation2 + $0x50] sm:$0xff]
        %v4859 = vld [vmem:[#allocation2 + $0x58] sm:$0xff]
        %v4860 = vld [vmem:[#allocation2 + $0x60] sm:$0xff]
        %v4861 = vld [vmem:[#allocation2 + $0x68] sm:$0xff]
        %v4862 = vld [vmem:[#allocation2 + $0x70] sm:$0xff]
        %v4863 = vld [vmem:[#allocation2 + $0x78] sm:$0xff]
        %v4864 = vld [vmem:[#allocation2 + $0x80] sm:$0xff]
        %v4865 = vld [vmem:[#allocation2 + $0x88] sm:$0xff]
        %v4866 = vld [vmem:[#allocation2 + $0x90] sm:$0xff]
        %v4867 = vld [vmem:[#allocation2 + $0x98] sm:$0xff]
        %v4868 = vld [vmem:[#allocation2 + $0xa0] sm:$0xff]
        %v4869 = vld [vmem:[#allocation2 + $0xa8] sm:$0xff]
        %v4870 = vld [vmem:[#allocation2 + $0xb0] sm:$0xff]
        %v4871 = vld [vmem:[#allocation2 + $0xb8] sm:$0xff]
        %v4872 = vld [vmem:[#allocation2 + $0xc0] sm:$0xff]
        %v4873 = vld [vmem:[#allocation2 + $0xc8] sm:$0xff]
        %v4874 = vld [vmem:[#allocation2 + $0xd0] sm:$0xff]
        %v4875 = vld [vmem:[#allocation2 + $0xd8] sm:$0xff]
        %v4876 = vld [vmem:[#allocation2 + $0xe0] sm:$0xff]
        %v4877 = vld [vmem:[#allocation2 + $0xe8] sm:$0xff]
        %v4878 = vld [vmem:[#allocation2 + $0xf0] sm:$0xff]
        %v4879 = vld [vmem:[#allocation2 + $0xf8] sm:$0xff]
        %v4880 = vld [vmem:[#allocation2 + $0x100] sm:$0xff]
        %v4881 = vld [vmem:[#allocation2 + $0x108] sm:$0xff]
        %v4882 = vld [vmem:[#allocation2 + $0x110] sm:$0xff]
        %v4883 = vld [vmem:[#allocation2 + $0x118] sm:$0xff]
        %v4884 = vld [vmem:[#allocation2 + $0x120] sm:$0xff]
        %4917 = vrot.lane.b32.xlu0 %v4853, 96
        %v4918 = vpop.permute.xlu0 %4917
        %4919 = vrot.lane.b32.xlu0 %v4854, 96
        %v4920 = vpop.permute.xlu0 %4919
        %4921 = vrot.lane.b32.xlu0 %v4855, 96
        %v4922 = vpop.permute.xlu0 %4921
        %4923 = vrot.lane.b32.xlu0 %v4856, 96
        %v4924 = vpop.permute.xlu0 %4923
        %4925 = vrot.lane.b32.xlu0 %v4857, 96
        %v4926 = vpop.permute.xlu0 %4925
        %4927 = vrot.lane.b32.xlu0 %v4858, 96
        %v4928 = vpop.permute.xlu0 %4927
        %4929 = vrot.lane.b32.xlu0 %v4859, 96
        %v4930 = vpop.permute.xlu0 %4929
        %4931 = vrot.lane.b32.xlu0 %v4860, 96
        %v4932 = vpop.permute.xlu0 %4931
        %4933 = vrot.lane.b32.xlu0 %v4861, 96
        %v4934 = vpop.permute.xlu0 %4933
        %4935 = vrot.lane.b32.xlu0 %v4862, 96
        %v4936 = vpop.permute.xlu0 %4935
        %4937 = vrot.lane.b32.xlu0 %v4863, 96
        %v4938 = vpop.permute.xlu0 %4937
        %4939 = vrot.lane.b32.xlu0 %v4864, 96
        %v4940 = vpop.permute.xlu0 %4939
        %4941 = vrot.lane.b32.xlu0 %v4865, 96
        %v4942 = vpop.permute.xlu0 %4941
        %4943 = vrot.lane.b32.xlu0 %v4866, 96
        %v4944 = vpop.permute.xlu0 %4943
        %4945 = vrot.lane.b32.xlu0 %v4867, 96
        %v4946 = vpop.permute.xlu0 %4945
        %4947 = vrot.lane.b32.xlu0 %v4868, 96
        %v4948 = vpop.permute.xlu0 %4947
        %4949 = vrot.lane.b32.xlu0 %v4869, 96
        %v4950 = vpop.permute.xlu0 %4949
        %4951 = vrot.lane.b32.xlu0 %v4870, 96
        %v4952 = vpop.permute.xlu0 %4951
        %4953 = vrot.lane.b32.xlu0 %v4871, 96
        %v4954 = vpop.permute.xlu0 %4953
        %4955 = vrot.lane.b32.xlu0 %v4872, 96
        %v4956 = vpop.permute.xlu0 %4955
        %4957 = vrot.lane.b32.xlu0 %v4873, 96
        %v4958 = vpop.permute.xlu0 %4957
        %4959 = vrot.lane.b32.xlu0 %v4874, 96
        %v4960 = vpop.permute.xlu0 %4959
        %4961 = vrot.lane.b32.xlu0 %v4875, 96
        %v4962 = vpop.permute.xlu0 %4961
        %4963 = vrot.lane.b32.xlu0 %v4876, 96
        %v4964 = vpop.permute.xlu0 %4963
        %4965 = vrot.lane.b32.xlu0 %v4877, 96
        %v4966 = vpop.permute.xlu0 %4965
        %4967 = vrot.lane.b32.xlu0 %v4878, 96
        %v4968 = vpop.permute.xlu0 %4967
        %4969 = vrot.lane.b32.xlu0 %v4879, 96
        %v4970 = vpop.permute.xlu0 %4969
        %4971 = vrot.lane.b32.xlu0 %v4880, 96
        %v4972 = vpop.permute.xlu0 %4971
        %4973 = vrot.lane.b32.xlu0 %v4881, 96
        %v4974 = vpop.permute.xlu0 %4973
        %4975 = vrot.lane.b32.xlu0 %v4882, 96
        %v4976 = vpop.permute.xlu0 %4975
        %4977 = vrot.lane.b32.xlu0 %v4883, 96
        %v4978 = vpop.permute.xlu0 %4977
        %4979 = vrot.lane.b32.xlu0 %v4884, 96
        %v4980 = vpop.permute.xlu0 %4979
        %5013 = vst.msk [vmem:[#allocation3 + $0x8] sm:$0xff] %vm4308, %v4918
        %5014 = vst.msk [vmem:[#allocation3 + $0x20] sm:$0xff] %vm4308, %v4920
        %5015 = vst.msk [vmem:[#allocation3 + $0x38] sm:$0xff] %vm4308, %v4922
        %5016 = vst.msk [vmem:[#allocation3 + $0x50] sm:$0xff] %vm4308, %v4924
        %5017 = vst.msk [vmem:[#allocation3 + $0x68] sm:$0xff] %vm4308, %v4926
        %5018 = vst.msk [vmem:[#allocation3 + $0x80] sm:$0xff] %vm4308, %v4928
        %5019 = vst.msk [vmem:[#allocation3 + $0x98] sm:$0xff] %vm4308, %v4930
        %5020 = vst.msk [vmem:[#allocation3 + $0xb0] sm:$0xff] %vm4308, %v4932
        %5021 = vst.msk [vmem:[#allocation3 + $0xc8] sm:$0xff] %vm4308, %v4934
        %5022 = vst.msk [vmem:[#allocation3 + $0xe0] sm:$0xff] %vm4308, %v4936
        %5023 = vst.msk [vmem:[#allocation3 + $0xf8] sm:$0xff] %vm4308, %v4938
        %5024 = vst.msk [vmem:[#allocation3 + $0x110] sm:$0xff] %vm4308, %v4940
        %5025 = vst.msk [vmem:[#allocation3 + $0x128] sm:$0xff] %vm4308, %v4942
        %5026 = vst.msk [vmem:[#allocation3 + $0x140] sm:$0xff] %vm4308, %v4944
        %5027 = vst.msk [vmem:[#allocation3 + $0x158] sm:$0xff] %vm4308, %v4946
        %5028 = vst.msk [vmem:[#allocation3 + $0x170] sm:$0xff] %vm4308, %v4948
        %5029 = vst.msk [vmem:[#allocation3 + $0x188] sm:$0xff] %vm4308, %v4950
        %5030 = vst.msk [vmem:[#allocation3 + $0x1a0] sm:$0xff] %vm4308, %v4952
        %5031 = vst.msk [vmem:[#allocation3 + $0x1b8] sm:$0xff] %vm4308, %v4954
        %5032 = vst.msk [vmem:[#allocation3 + $0x1d0] sm:$0xff] %vm4308, %v4956
        %5033 = vst.msk [vmem:[#allocation3 + $0x1e8] sm:$0xff] %vm4308, %v4958
        %5034 = vst.msk [vmem:[#allocation3 + $0x200] sm:$0xff] %vm4308, %v4960
        %5035 = vst.msk [vmem:[#allocation3 + $0x218] sm:$0xff] %vm4308, %v4962
        %5036 = vst.msk [vmem:[#allocation3 + $0x230] sm:$0xff] %vm4308, %v4964
        %5037 = vst.msk [vmem:[#allocation3 + $0x248] sm:$0xff] %vm4308, %v4966
        %5038 = vst.msk [vmem:[#allocation3 + $0x260] sm:$0xff] %vm4308, %v4968
        %5039 = vst.msk [vmem:[#allocation3 + $0x278] sm:$0xff] %vm4308, %v4970
        %5040 = vst.msk [vmem:[#allocation3 + $0x290] sm:$0xff] %vm4308, %v4972
        %5041 = vst.msk [vmem:[#allocation3 + $0x2a8] sm:$0xff] %vm4308, %v4974
        %5042 = vst.msk [vmem:[#allocation3 + $0x2c0] sm:$0xff] %vm4308, %v4976
        %5043 = vst.msk [vmem:[#allocation3 + $0x2d8] sm:$0xff] %vm4308, %v4978
        %5044 = vst.msk [vmem:[#allocation3 + $0x2f0] sm:$0xff] %vm4308, %v4980
        %v5045 = vld [vmem:[#allocation2 + $0x29] sm:$0xff]
        %v5046 = vld [vmem:[#allocation2 + $0x31] sm:$0xff]
        %v5047 = vld [vmem:[#allocation2 + $0x39] sm:$0xff]
        %v5048 = vld [vmem:[#allocation2 + $0x41] sm:$0xff]
        %v5049 = vld [vmem:[#allocation2 + $0x49] sm:$0xff]
        %v5050 = vld [vmem:[#allocation2 + $0x51] sm:$0xff]
        %v5051 = vld [vmem:[#allocation2 + $0x59] sm:$0xff]
        %v5052 = vld [vmem:[#allocation2 + $0x61] sm:$0xff]
        %v5053 = vld [vmem:[#allocation2 + $0x69] sm:$0xff]
        %v5054 = vld [vmem:[#allocation2 + $0x71] sm:$0xff]
        %v5055 = vld [vmem:[#allocation2 + $0x79] sm:$0xff]
        %v5056 = vld [vmem:[#allocation2 + $0x81] sm:$0xff]
        %v5057 = vld [vmem:[#allocation2 + $0x89] sm:$0xff]
        %v5058 = vld [vmem:[#allocation2 + $0x91] sm:$0xff]
        %v5059 = vld [vmem:[#allocation2 + $0x99] sm:$0xff]
        %v5060 = vld [vmem:[#allocation2 + $0xa1] sm:$0xff]
        %v5061 = vld [vmem:[#allocation2 + $0xa9] sm:$0xff]
        %v5062 = vld [vmem:[#allocation2 + $0xb1] sm:$0xff]
        %v5063 = vld [vmem:[#allocation2 + $0xb9] sm:$0xff]
        %v5064 = vld [vmem:[#allocation2 + $0xc1] sm:$0xff]
        %v5065 = vld [vmem:[#allocation2 + $0xc9] sm:$0xff]
        %v5066 = vld [vmem:[#allocation2 + $0xd1] sm:$0xff]
        %v5067 = vld [vmem:[#allocation2 + $0xd9] sm:$0xff]
        %v5068 = vld [vmem:[#allocation2 + $0xe1] sm:$0xff]
        %v5069 = vld [vmem:[#allocation2 + $0xe9] sm:$0xff]
        %v5070 = vld [vmem:[#allocation2 + $0xf1] sm:$0xff]
        %v5071 = vld [vmem:[#allocation2 + $0xf9] sm:$0xff]
        %v5072 = vld [vmem:[#allocation2 + $0x101] sm:$0xff]
        %v5073 = vld [vmem:[#allocation2 + $0x109] sm:$0xff]
        %v5074 = vld [vmem:[#allocation2 + $0x111] sm:$0xff]
        %v5075 = vld [vmem:[#allocation2 + $0x119] sm:$0xff]
        %v5076 = vld [vmem:[#allocation2 + $0x121] sm:$0xff]
        %v5077 = vmul.f32 %v5045, %v3766
        %v5078 = vmul.f32 %v5046, %v3771
        %v5079 = vmul.f32 %v5047, %v3776
        %v5080 = vmul.f32 %v5048, %v3781
        %v5081 = vmul.f32 %v5049, %v3786
        %v5082 = vmul.f32 %v5050, %v3791
        %v5083 = vmul.f32 %v5051, %v3796
        %v5084 = vmul.f32 %v5052, %v3801
        %v5085 = vmul.f32 %v5053, %v3806
        %v5086 = vmul.f32 %v5054, %v3811
        %v5087 = vmul.f32 %v5055, %v3816
        %v5088 = vmul.f32 %v5056, %v3821
        %v5089 = vmul.f32 %v5057, %v3826
        %v5090 = vmul.f32 %v5058, %v3831
        %v5091 = vmul.f32 %v5059, %v3836
        %v5092 = vmul.f32 %v5060, %v3841
        %v5093 = vmul.f32 %v5061, %v3846
        %v5094 = vmul.f32 %v5062, %v3851
        %v5095 = vmul.f32 %v5063, %v3856
        %v5096 = vmul.f32 %v5064, %v3861
        %v5097 = vmul.f32 %v5065, %v3866
        %v5098 = vmul.f32 %v5066, %v3871
        %v5099 = vmul.f32 %v5067, %v3876
        %v5100 = vmul.f32 %v5068, %v3881
        %v5101 = vmul.f32 %v5069, %v3886
        %v5102 = vmul.f32 %v5070, %v3891
        %v5103 = vmul.f32 %v5071, %v3896
        %v5104 = vmul.f32 %v5072, %v3901
        %v5105 = vmul.f32 %v5073, %v3906
        %v5106 = vmul.f32 %v5074, %v3911
        %v5107 = vmul.f32 %v5075, %v3916
        %v5108 = vmul.f32 %v5076, %v3921
        %5109 = vst.msk [vmem:[#allocation3 + $0x10] sm:$0xff] %vm424, %v5077
        %5110 = vst.msk [vmem:[#allocation3 + $0x28] sm:$0xff] %vm424, %v5078
        %5111 = vst.msk [vmem:[#allocation3 + $0x40] sm:$0xff] %vm424, %v5079
        %5112 = vst.msk [vmem:[#allocation3 + $0x58] sm:$0xff] %vm424, %v5080
        %5113 = vst.msk [vmem:[#allocation3 + $0x70] sm:$0xff] %vm424, %v5081
        %5114 = vst.msk [vmem:[#allocation3 + $0x88] sm:$0xff] %vm424, %v5082
        %5115 = vst.msk [vmem:[#allocation3 + $0xa0] sm:$0xff] %vm424, %v5083
        %5116 = vst.msk [vmem:[#allocation3 + $0xb8] sm:$0xff] %vm424, %v5084
        %5117 = vst.msk [vmem:[#allocation3 + $0xd0] sm:$0xff] %vm424, %v5085
        %5118 = vst.msk [vmem:[#allocation3 + $0xe8] sm:$0xff] %vm424, %v5086
        %5119 = vst.msk [vmem:[#allocation3 + $0x100] sm:$0xff] %vm424, %v5087
        %5120 = vst.msk [vmem:[#allocation3 + $0x118] sm:$0xff] %vm424, %v5088
        %5121 = vst.msk [vmem:[#allocation3 + $0x130] sm:$0xff] %vm424, %v5089
        %5122 = vst.msk [vmem:[#allocation3 + $0x148] sm:$0xff] %vm424, %v5090
        %5123 = vst.msk [vmem:[#allocation3 + $0x160] sm:$0xff] %vm424, %v5091
        %5124 = vst.msk [vmem:[#allocation3 + $0x178] sm:$0xff] %vm424, %v5092
        %5125 = vst.msk [vmem:[#allocation3 + $0x190] sm:$0xff] %vm424, %v5093
        %5126 = vst.msk [vmem:[#allocation3 + $0x1a8] sm:$0xff] %vm424, %v5094
        %5127 = vst.msk [vmem:[#allocation3 + $0x1c0] sm:$0xff] %vm424, %v5095
        %5128 = vst.msk [vmem:[#allocation3 + $0x1d8] sm:$0xff] %vm424, %v5096
        %5129 = vst.msk [vmem:[#allocation3 + $0x1f0] sm:$0xff] %vm424, %v5097
        %5130 = vst.msk [vmem:[#allocation3 + $0x208] sm:$0xff] %vm424, %v5098
        %5131 = vst.msk [vmem:[#allocation3 + $0x220] sm:$0xff] %vm424, %v5099
        %5132 = vst.msk [vmem:[#allocation3 + $0x238] sm:$0xff] %vm424, %v5100
        %5133 = vst.msk [vmem:[#allocation3 + $0x250] sm:$0xff] %vm424, %v5101
        %5134 = vst.msk [vmem:[#allocation3 + $0x268] sm:$0xff] %vm424, %v5102
        %5135 = vst.msk [vmem:[#allocation3 + $0x280] sm:$0xff] %vm424, %v5103
        %5136 = vst.msk [vmem:[#allocation3 + $0x298] sm:$0xff] %vm424, %v5104
        %5137 = vst.msk [vmem:[#allocation3 + $0x2b0] sm:$0xff] %vm424, %v5105
        %5138 = vst.msk [vmem:[#allocation3 + $0x2c8] sm:$0xff] %vm424, %v5106
        %5139 = vst.msk [vmem:[#allocation3 + $0x2e0] sm:$0xff] %vm424, %v5107
        %5140 = vst.msk [vmem:[#allocation3 + $0x2f8] sm:$0xff] %vm424, %v5108
        %v5141 = vld [vmem:[#allocation3] sm:$0xff]
        %v5142 = vld [vmem:[#allocation3 + $0x8] sm:$0xff]
        %v5143 = vld [vmem:[#allocation3 + $0x10] sm:$0xff]
        %v5144 = vld [vmem:[#allocation3 + $0x18] sm:$0xff]
        %v5145 = vld [vmem:[#allocation3 + $0x20] sm:$0xff]
        %v5146 = vld [vmem:[#allocation3 + $0x28] sm:$0xff]
        %v5147 = vld [vmem:[#allocation3 + $0x30] sm:$0xff]
        %v5148 = vld [vmem:[#allocation3 + $0x38] sm:$0xff]
        %v5149 = vld [vmem:[#allocation3 + $0x40] sm:$0xff]
        %v5150 = vld [vmem:[#allocation3 + $0x48] sm:$0xff]
        %v5151 = vld [vmem:[#allocation3 + $0x50] sm:$0xff]
        %v5152 = vld [vmem:[#allocation3 + $0x58] sm:$0xff]
        %v5153 = vld [vmem:[#allocation3 + $0x60] sm:$0xff]
        %v5154 = vld [vmem:[#allocation3 + $0x68] sm:$0xff]
        %v5155 = vld [vmem:[#allocation3 + $0x70] sm:$0xff]
        %v5156 = vld [vmem:[#allocation3 + $0x78] sm:$0xff]
        %v5157 = vld [vmem:[#allocation3 + $0x80] sm:$0xff]
        %v5158 = vld [vmem:[#allocation3 + $0x88] sm:$0xff]
        %v5159 = vld [vmem:[#allocation3 + $0x90] sm:$0xff]
        %v5160 = vld [vmem:[#allocation3 + $0x98] sm:$0xff]
        %v5161 = vld [vmem:[#allocation3 + $0xa0] sm:$0xff]
        %v5162 = vld [vmem:[#allocation3 + $0xa8] sm:$0xff]
        %v5163 = vld [vmem:[#allocation3 + $0xb0] sm:$0xff]
        %v5164 = vld [vmem:[#allocation3 + $0xb8] sm:$0xff]
        %v5165 = vld [vmem:[#allocation3 + $0xc0] sm:$0xff]
        %v5166 = vld [vmem:[#allocation3 + $0xc8] sm:$0xff]
        %v5167 = vld [vmem:[#allocation3 + $0xd0] sm:$0xff]
        %v5168 = vld [vmem:[#allocation3 + $0xd8] sm:$0xff]
        %v5169 = vld [vmem:[#allocation3 + $0xe0] sm:$0xff]
        %v5170 = vld [vmem:[#allocation3 + $0xe8] sm:$0xff]
        %v5171 = vld [vmem:[#allocation3 + $0xf0] sm:$0xff]
        %v5172 = vld [vmem:[#allocation3 + $0xf8] sm:$0xff]
        %v5173 = vld [vmem:[#allocation3 + $0x100] sm:$0xff]
        %v5174 = vld [vmem:[#allocation3 + $0x108] sm:$0xff]
        %v5175 = vld [vmem:[#allocation3 + $0x110] sm:$0xff]
        %v5176 = vld [vmem:[#allocation3 + $0x118] sm:$0xff]
        %v5177 = vld [vmem:[#allocation3 + $0x120] sm:$0xff]
        %v5178 = vld [vmem:[#allocation3 + $0x128] sm:$0xff]
        %v5179 = vld [vmem:[#allocation3 + $0x130] sm:$0xff]
        %v5180 = vld [vmem:[#allocation3 + $0x138] sm:$0xff]
        %v5181 = vld [vmem:[#allocation3 + $0x140] sm:$0xff]
        %v5182 = vld [vmem:[#allocation3 + $0x148] sm:$0xff]
        %v5183 = vld [vmem:[#allocation3 + $0x150] sm:$0xff]
        %v5184 = vld [vmem:[#allocation3 + $0x158] sm:$0xff]
        %v5185 = vld [vmem:[#allocation3 + $0x160] sm:$0xff]
        %v5186 = vld [vmem:[#allocation3 + $0x168] sm:$0xff]
        %v5187 = vld [vmem:[#allocation3 + $0x170] sm:$0xff]
        %v5188 = vld [vmem:[#allocation3 + $0x178] sm:$0xff]
        %v5189 = vld [vmem:[#allocation3 + $0x180] sm:$0xff]
        %v5190 = vld [vmem:[#allocation3 + $0x188] sm:$0xff]
        %v5191 = vld [vmem:[#allocation3 + $0x190] sm:$0xff]
        %v5192 = vld [vmem:[#allocation3 + $0x198] sm:$0xff]
        %v5193 = vld [vmem:[#allocation3 + $0x1a0] sm:$0xff]
        %v5194 = vld [vmem:[#allocation3 + $0x1a8] sm:$0xff]
        %v5195 = vld [vmem:[#allocation3 + $0x1b0] sm:$0xff]
        %v5196 = vld [vmem:[#allocation3 + $0x1b8] sm:$0xff]
        %v5197 = vld [vmem:[#allocation3 + $0x1c0] sm:$0xff]
        %v5198 = vld [vmem:[#allocation3 + $0x1c8] sm:$0xff]
        %v5199 = vld [vmem:[#allocation3 + $0x1d0] sm:$0xff]
        %v5200 = vld [vmem:[#allocation3 + $0x1d8] sm:$0xff]
        %v5201 = vld [vmem:[#allocation3 + $0x1e0] sm:$0xff]
        %v5202 = vld [vmem:[#allocation3 + $0x1e8] sm:$0xff]
        %v5203 = vld [vmem:[#allocation3 + $0x1f0] sm:$0xff]
        %v5204 = vld [vmem:[#allocation3 + $0x1f8] sm:$0xff]
        %v5205 = vld [vmem:[#allocation3 + $0x200] sm:$0xff]
        %v5206 = vld [vmem:[#allocation3 + $0x208] sm:$0xff]
        %v5207 = vld [vmem:[#allocation3 + $0x210] sm:$0xff]
        %v5208 = vld [vmem:[#allocation3 + $0x218] sm:$0xff]
        %v5209 = vld [vmem:[#allocation3 + $0x220] sm:$0xff]
        %v5210 = vld [vmem:[#allocation3 + $0x228] sm:$0xff]
        %v5211 = vld [vmem:[#allocation3 + $0x230] sm:$0xff]
        %v5212 = vld [vmem:[#allocation3 + $0x238] sm:$0xff]
        %v5213 = vld [vmem:[#allocation3 + $0x240] sm:$0xff]
        %v5214 = vld [vmem:[#allocation3 + $0x248] sm:$0xff]
        %v5215 = vld [vmem:[#allocation3 + $0x250] sm:$0xff]
        %v5216 = vld [vmem:[#allocation3 + $0x258] sm:$0xff]
        %v5217 = vld [vmem:[#allocation3 + $0x260] sm:$0xff]
        %v5218 = vld [vmem:[#allocation3 + $0x268] sm:$0xff]
        %v5219 = vld [vmem:[#allocation3 + $0x270] sm:$0xff]
        %v5220 = vld [vmem:[#allocation3 + $0x278] sm:$0xff]
        %v5221 = vld [vmem:[#allocation3 + $0x280] sm:$0xff]
        %v5222 = vld [vmem:[#allocation3 + $0x288] sm:$0xff]
        %v5223 = vld [vmem:[#allocation3 + $0x290] sm:$0xff]
        %v5224 = vld [vmem:[#allocation3 + $0x298] sm:$0xff]
        %v5225 = vld [vmem:[#allocation3 + $0x2a0] sm:$0xff]
        %v5226 = vld [vmem:[#allocation3 + $0x2a8] sm:$0xff]
        %v5227 = vld [vmem:[#allocation3 + $0x2b0] sm:$0xff]
        %v5228 = vld [vmem:[#allocation3 + $0x2b8] sm:$0xff]
        %v5229 = vld [vmem:[#allocation3 + $0x2c0] sm:$0xff]
        %v5230 = vld [vmem:[#allocation3 + $0x2c8] sm:$0xff]
        %v5231 = vld [vmem:[#allocation3 + $0x2d0] sm:$0xff]
        %v5232 = vld [vmem:[#allocation3 + $0x2d8] sm:$0xff]
        %v5233 = vld [vmem:[#allocation3 + $0x2e0] sm:$0xff]
        %v5234 = vld [vmem:[#allocation3 + $0x2e8] sm:$0xff]
        %v5235 = vld [vmem:[#allocation3 + $0x2f0] sm:$0xff]
        %v5236 = vld [vmem:[#allocation3 + $0x2f8] sm:$0xff]
        %v5237 = vld [vmem:[#allocation12] sm:$0xff]
        %v5238 = vld [vmem:[#allocation12 + $0x8] sm:$0xff]
        %v5239 = vld [vmem:[#allocation12 + $0x10] sm:$0xff]
        %v5240 = vld [vmem:[#allocation12 + $0x18] sm:$0xff]
        %v5241 = vld [vmem:[#allocation12 + $0x20] sm:$0xff]
        %v5242 = vld [vmem:[#allocation12 + $0x28] sm:$0xff]
        %v5243 = vld [vmem:[#allocation12 + $0x30] sm:$0xff]
        %v5244 = vld [vmem:[#allocation12 + $0x38] sm:$0xff]
        %v5245 = vld [vmem:[#allocation12 + $0x40] sm:$0xff]
        %v5246 = vld [vmem:[#allocation12 + $0x48] sm:$0xff]
        %v5247 = vld [vmem:[#allocation12 + $0x50] sm:$0xff]
        %v5248 = vld [vmem:[#allocation12 + $0x58] sm:$0xff]
        %v5249 = vld [vmem:[#allocation12 + $0x60] sm:$0xff]
        %v5250 = vld [vmem:[#allocation12 + $0x68] sm:$0xff]
        %v5251 = vld [vmem:[#allocation12 + $0x70] sm:$0xff]
        %v5252 = vld [vmem:[#allocation12 + $0x78] sm:$0xff]
        %v5253 = vld [vmem:[#allocation12 + $0x80] sm:$0xff]
        %v5254 = vld [vmem:[#allocation12 + $0x88] sm:$0xff]
        %v5255 = vld [vmem:[#allocation12 + $0x90] sm:$0xff]
        %v5256 = vld [vmem:[#allocation12 + $0x98] sm:$0xff]
        %v5257 = vld [vmem:[#allocation12 + $0xa0] sm:$0xff]
        %v5258 = vld [vmem:[#allocation12 + $0xa8] sm:$0xff]
        %v5259 = vld [vmem:[#allocation12 + $0xb0] sm:$0xff]
        %v5260 = vld [vmem:[#allocation12 + $0xb8] sm:$0xff]
        %v5261 = vld [vmem:[#allocation12 + $0xc0] sm:$0xff]
        %v5262 = vld [vmem:[#allocation12 + $0xc8] sm:$0xff]
        %v5263 = vld [vmem:[#allocation12 + $0xd0] sm:$0xff]
        %v5264 = vld [vmem:[#allocation12 + $0xd8] sm:$0xff]
        %v5265 = vld [vmem:[#allocation12 + $0xe0] sm:$0xff]
        %v5266 = vld [vmem:[#allocation12 + $0xe8] sm:$0xff]
        %v5267 = vld [vmem:[#allocation12 + $0xf0] sm:$0xff]
        %v5268 = vld [vmem:[#allocation12 + $0xf8] sm:$0xff]
        %v5269 = vld [vmem:[#allocation12 + $0x100] sm:$0xff]
        %v5270 = vld [vmem:[#allocation12 + $0x108] sm:$0xff]
        %v5271 = vld [vmem:[#allocation12 + $0x110] sm:$0xff]
        %v5272 = vld [vmem:[#allocation12 + $0x118] sm:$0xff]
        %v5273 = vld [vmem:[#allocation13] sm:$0x1]
        %v5275 = vlaneseq
        %v5276 = vshrl.u32 %v5275, 7
        %v5277 = vsub.s32 0, %v5276
        %v5278 = vrot.slane %v5273, %v5277
        %v5281 = vsel %vm424, %v5143, 0
        %v5284 = vsel %vm424, %v5146, 0
        %v5287 = vsel %vm424, %v5149, 0
        %v5290 = vsel %vm424, %v5152, 0
        %v5293 = vsel %vm424, %v5155, 0
        %v5296 = vsel %vm424, %v5158, 0
        %v5299 = vsel %vm424, %v5161, 0
        %v5302 = vsel %vm424, %v5164, 0
        %v5305 = vsel %vm424, %v5167, 0
        %v5308 = vsel %vm424, %v5170, 0
        %v5311 = vsel %vm424, %v5173, 0
        %v5314 = vsel %vm424, %v5176, 0
        %v5317 = vsel %vm424, %v5179, 0
        %v5320 = vsel %vm424, %v5182, 0
        %v5323 = vsel %vm424, %v5185, 0
        %v5326 = vsel %vm424, %v5188, 0
        %v5329 = vsel %vm424, %v5191, 0
        %v5332 = vsel %vm424, %v5194, 0
        %v5335 = vsel %vm424, %v5197, 0
        %v5338 = vsel %vm424, %v5200, 0
        %v5341 = vsel %vm424, %v5203, 0
        %v5344 = vsel %vm424, %v5206, 0
        %v5347 = vsel %vm424, %v5209, 0
        %v5350 = vsel %vm424, %v5212, 0
        %v5353 = vsel %vm424, %v5215, 0
        %v5356 = vsel %vm424, %v5218, 0
        %v5359 = vsel %vm424, %v5221, 0
        %v5362 = vsel %vm424, %v5224, 0
        %v5365 = vsel %vm424, %v5227, 0
        %v5368 = vsel %vm424, %v5230, 0
        %v5371 = vsel %vm424, %v5233, 0
        %v5374 = vsel %vm424, %v5236, 0
        %5376 = vmatprep.subr.mxu0 0.0
        %5377 = vmatpush1.msra.mxu0 %v5237
        %5378 = vmatprep.subr.mxu0 0.0
        %5379 = vmatpush1.msra.mxu0 %v5238
        %5380 = vmatprep.subr.mxu0 0.0
        %5381 = vmatpush1.msra.mxu0 %v5239
        %5382 = vmatprep.subr.mxu0 0.0
        %5383 = vmatpush1.msra.mxu0 %v5240
        %5384 = vmatprep.subr.mxu0 0.0
        %5385 = vmatpush1.msra.mxu0 %v5241
        %5386 = vmatprep.subr.mxu0 0.0
        %5387 = vmatpush1.msra.mxu0 %v5242
        %5388 = vmatprep.subr.mxu0 0.0
        %5389 = vmatpush1.msra.mxu0 %v5243
        %5390 = vmatprep.subr.mxu0 0.0
        %5391 = vmatpush1.msra.mxu0 %v5244
        %5392 = vmatprep.subr.mxu0 0.0
        %5393 = vmatpush1.msra.mxu0 %v5245
        %5394 = vmatprep.subr.mxu0 0.0
        %5395 = vmatpush1.msra.mxu0 %v5246
        %5396 = vmatprep.subr.mxu0 0.0
        %5397 = vmatpush1.msra.mxu0 %v5247
        %5398 = vmatprep.subr.mxu0 0.0
        %5399 = vmatpush1.msra.mxu0 %v5248
        %5400 = vmatprep.subr.mxu0 0.0
        %5401 = vmatpush1.msra.mxu0 %v5249
        %5402 = vmatprep.subr.mxu0 0.0
        %5403 = vmatpush1.msra.mxu0 %v5250
        %5404 = vmatprep.subr.mxu0 0.0
        %5405 = vmatpush1.msra.mxu0 %v5251
        %5406 = vmatprep.subr.mxu0 0.0
        %5407 = vmatpush1.msra.mxu0 %v5252
        %5408 = vmatprep.subr.mxu0 0.0
        %5409 = vmatpush1.msra.mxu0 %v5253
        %5410 = vmatprep.subr.mxu0 0.0
        %5411 = vmatpush1.msra.mxu0 %v5254
        %5412 = vmatprep.subr.mxu0 0.0
        %5413 = vmatpush1.msra.mxu0 %v5255
        %5414 = vmatprep.subr.mxu0 0.0
        %5415 = vmatpush1.msra.mxu0 %v5256
        %5416 = vmatprep.subr.mxu0 0.0
        %5417 = vmatpush1.msra.mxu0 %v5257
        %5418 = vmatprep.subr.mxu0 0.0
        %5419 = vmatpush1.msra.mxu0 %v5258
        %5420 = vmatprep.subr.mxu0 0.0
        %5421 = vmatpush1.msra.mxu0 %v5259
        %5422 = vmatprep.subr.mxu0 0.0
        %5423 = vmatpush1.msra.mxu0 %v5260
        %5424 = vmatprep.subr.mxu0 0.0
        %5425 = vmatpush1.msra.mxu0 %v5261
        %5426 = vmatprep.subr.mxu0 0.0
        %5427 = vmatpush1.msra.mxu0 %v5262
        %5428 = vmatprep.subr.mxu0 0.0
        %5429 = vmatpush1.msra.mxu0 %v5263
        %5430 = vmatprep.subr.mxu0 0.0
        %5431 = vmatpush1.msra.mxu0 %v5264
        %5432 = vmatprep.subr.mxu0 0.0
        %5433 = vmatpush1.msra.mxu0 %v5265
        %5434 = vmatprep.subr.mxu0 0.0
        %5435 = vmatpush1.msra.mxu0 %v5266
        %5436 = vmatprep.subr.mxu0 0.0
        %5437 = vmatpush1.msra.mxu0 %v5267
        %5438 = vmatprep.subr.mxu0 0.0
        %5439 = vmatpush1.msra.mxu0 %v5268
        %5440 = vmatprep.mubr.f32.mxu0 %v5142
        %5441 = vmatmul.mubr.f32.gmra.mrb[0].mxu0 %v5141
        %v5442 = vpop.f32.mrb[0].mxu0
        %v5443 = vadd.f32 %v5278, %v5442
        %v5444 = vpop.f32.mrb[0].mxu0
        %5445 = vmatprep.mubr.f32.mxu0 %v5145
        %5446 = vmatmul.mubr.f32.gmra.mrb[0].mxu0 %v5144
        %v5447 = vpop.f32.mrb[0].mxu0
        %v5448 = vadd.f32 %v5278, %v5447
        %v5449 = vpop.f32.mrb[0].mxu0
        %5450 = vmatprep.mubr.f32.mxu0 %v5148
        %5451 = vmatmul.mubr.f32.gmra.mrb[0].mxu0 %v5147
        %v5452 = vpop.f32.mrb[0].mxu0
        %v5453 = vadd.f32 %v5278, %v5452
        %v5454 = vpop.f32.mrb[0].mxu0
        %5455 = vmatprep.mubr.f32.mxu0 %v5151
        %5456 = vmatmul.mubr.f32.gmra.mrb[0].mxu0 %v5150
        %v5457 = vpop.f32.mrb[0].mxu0
        %v5458 = vadd.f32 %v5278, %v5457
        %v5459 = vpop.f32.mrb[0].mxu0
        %5460 = vmatprep.mubr.f32.mxu0 %v5154
        %5461 = vmatmul.mubr.f32.gmra.mrb[0].mxu0 %v5153
        %v5462 = vpop.f32.mrb[0].mxu0
        %v5463 = vadd.f32 %v5278, %v5462
        %v5464 = vpop.f32.mrb[0].mxu0
        %5465 = vmatprep.mubr.f32.mxu0 %v5157
        %5466 = vmatmul.mubr.f32.gmra.mrb[0].mxu0 %v5156
        %v5467 = vpop.f32.mrb[0].mxu0
        %v5468 = vadd.f32 %v5278, %v5467
        %v5469 = vpop.f32.mrb[0].mxu0
        %5470 = vmatprep.mubr.f32.mxu0 %v5160
        %5471 = vmatmul.mubr.f32.gmra.mrb[0].mxu0 %v5159
        %v5472 = vpop.f32.mrb[0].mxu0
        %v5473 = vadd.f32 %v5278, %v5472
        %v5474 = vpop.f32.mrb[0].mxu0
        %5475 = vmatprep.mubr.f32.mxu0 %v5163
        %5476 = vmatmul.mubr.f32.gmra.mrb[0].mxu0 %v5162
        %v5477 = vpop.f32.mrb[0].mxu0
        %v5478 = vadd.f32 %v5278, %v5477
        %v5479 = vpop.f32.mrb[0].mxu0
        %5480 = vmatprep.mubr.f32.mxu0 %v5166
        %5481 = vmatmul.mubr.f32.gmra.mrb[0].mxu0 %v5165
        %v5482 = vpop.f32.mrb[0].mxu0
        %v5483 = vadd.f32 %v5278, %v5482
        %v5484 = vpop.f32.mrb[0].mxu0
        %5485 = vmatprep.mubr.f32.mxu0 %v5169
        %5486 = vmatmul.mubr.f32.gmra.mrb[0].mxu0 %v5168
        %v5487 = vpop.f32.mrb[0].mxu0
        %v5488 = vadd.f32 %v5278, %v5487
        %v5489 = vpop.f32.mrb[0].mxu0
        %5490 = vmatprep.mubr.f32.mxu0 %v5172
        %5491 = vmatmul.mubr.f32.gmra.mrb[0].mxu0 %v5171
        %v5492 = vpop.f32.mrb[0].mxu0
        %v5493 = vadd.f32 %v5278, %v5492
        %v5494 = vpop.f32.mrb[0].mxu0
        %5495 = vmatprep.mubr.f32.mxu0 %v5175
        %5496 = vmatmul.mubr.f32.gmra.mrb[0].mxu0 %v5174
        %v5497 = vpop.f32.mrb[0].mxu0
        %v5498 = vadd.f32 %v5278, %v5497
        %v5499 = vpop.f32.mrb[0].mxu0
        %5500 = vmatprep.mubr.f32.mxu0 %v5178
        %5501 = vmatmul.mubr.f32.gmra.mrb[0].mxu0 %v5177
        %v5502 = vpop.f32.mrb[0].mxu0
        %v5503 = vadd.f32 %v5278, %v5502
        %v5504 = vpop.f32.mrb[0].mxu0
        %5505 = vmatprep.mubr.f32.mxu0 %v5181
        %5506 = vmatmul.mubr.f32.gmra.mrb[0].mxu0 %v5180
        %v5507 = vpop.f32.mrb[0].mxu0
        %v5508 = vadd.f32 %v5278, %v5507
        %v5509 = vpop.f32.mrb[0].mxu0
        %5510 = vmatprep.mubr.f32.mxu0 %v5184
        %5511 = vmatmul.mubr.f32.gmra.mrb[0].mxu0 %v5183
        %v5512 = vpop.f32.mrb[0].mxu0
        %v5513 = vadd.f32 %v5278, %v5512
        %v5514 = vpop.f32.mrb[0].mxu0
        %5515 = vmatprep.mubr.f32.mxu0 %v5187
        %5516 = vmatmul.mubr.f32.gmra.mrb[0].mxu0 %v5186
        %v5517 = vpop.f32.mrb[0].mxu0
        %v5518 = vadd.f32 %v5278, %v5517
        %v5519 = vpop.f32.mrb[0].mxu0
        %5520 = vmatprep.mubr.f32.mxu0 %v5190
        %5521 = vmatmul.mubr.f32.gmra.mrb[0].mxu0 %v5189
        %v5522 = vpop.f32.mrb[0].mxu0
        %v5523 = vadd.f32 %v5278, %v5522
        %v5524 = vpop.f32.mrb[0].mxu0
        %5525 = vmatprep.mubr.f32.mxu0 %v5193
        %5526 = vmatmul.mubr.f32.gmra.mrb[0].mxu0 %v5192
        %v5527 = vpop.f32.mrb[0].mxu0
        %v5528 = vadd.f32 %v5278, %v5527
        %v5529 = vpop.f32.mrb[0].mxu0
        %5530 = vmatprep.mubr.f32.mxu0 %v5196
        %5531 = vmatmul.mubr.f32.gmra.mrb[0].mxu0 %v5195
        %v5532 = vpop.f32.mrb[0].mxu0
        %v5533 = vadd.f32 %v5278, %v5532
        %v5534 = vpop.f32.mrb[0].mxu0
        %5535 = vmatprep.mubr.f32.mxu0 %v5199
        %5536 = vmatmul.mubr.f32.gmra.mrb[0].mxu0 %v5198
        %v5537 = vpop.f32.mrb[0].mxu0
        %v5538 = vadd.f32 %v5278, %v5537
        %v5539 = vpop.f32.mrb[0].mxu0
        %5540 = vmatprep.mubr.f32.mxu0 %v5202
        %5541 = vmatmul.mubr.f32.gmra.mrb[0].mxu0 %v5201
        %v5542 = vpop.f32.mrb[0].mxu0
        %v5543 = vadd.f32 %v5278, %v5542
        %v5544 = vpop.f32.mrb[0].mxu0
        %5545 = vmatprep.mubr.f32.mxu0 %v5205
        %5546 = vmatmul.mubr.f32.gmra.mrb[0].mxu0 %v5204
        %v5547 = vpop.f32.mrb[0].mxu0
        %v5548 = vadd.f32 %v5278, %v5547
        %v5549 = vpop.f32.mrb[0].mxu0
        %5550 = vmatprep.mubr.f32.mxu0 %v5208
        %5551 = vmatmul.mubr.f32.gmra.mrb[0].mxu0 %v5207
        %v5552 = vpop.f32.mrb[0].mxu0
        %v5553 = vadd.f32 %v5278, %v5552
        %v5554 = vpop.f32.mrb[0].mxu0
        %5555 = vmatprep.mubr.f32.mxu0 %v5211
        %5556 = vmatmul.mubr.f32.gmra.mrb[0].mxu0 %v5210
        %v5557 = vpop.f32.mrb[0].mxu0
        %v5558 = vadd.f32 %v5278, %v5557
        %v5559 = vpop.f32.mrb[0].mxu0
        %5560 = vmatprep.mubr.f32.mxu0 %v5214
        %5561 = vmatmul.mubr.f32.gmra.mrb[0].mxu0 %v5213
        %v5562 = vpop.f32.mrb[0].mxu0
        %v5563 = vadd.f32 %v5278, %v5562
        %v5564 = vpop.f32.mrb[0].mxu0
        %5565 = vmatprep.mubr.f32.mxu0 %v5217
        %5566 = vmatmul.mubr.f32.gmra.mrb[0].mxu0 %v5216
        %v5567 = vpop.f32.mrb[0].mxu0
        %v5568 = vadd.f32 %v5278, %v5567
        %v5569 = vpop.f32.mrb[0].mxu0
        %5570 = vmatprep.mubr.f32.mxu0 %v5220
        %5571 = vmatmul.mubr.f32.gmra.mrb[0].mxu0 %v5219
        %v5572 = vpop.f32.mrb[0].mxu0
        %v5573 = vadd.f32 %v5278, %v5572
        %v5574 = vpop.f32.mrb[0].mxu0
        %5575 = vmatprep.mubr.f32.mxu0 %v5223
        %5576 = vmatmul.mubr.f32.gmra.mrb[0].mxu0 %v5222
        %v5577 = vpop.f32.mrb[0].mxu0
        %v5578 = vadd.f32 %v5278, %v5577
        %v5579 = vpop.f32.mrb[0].mxu0
        %5580 = vmatprep.mubr.f32.mxu0 %v5226
        %5581 = vmatmul.mubr.f32.gmra.mrb[0].mxu0 %v5225
        %v5582 = vpop.f32.mrb[0].mxu0
        %v5583 = vadd.f32 %v5278, %v5582
        %v5584 = vpop.f32.mrb[0].mxu0
        %5585 = vmatprep.mubr.f32.mxu0 %v5229
        %5586 = vmatmul.mubr.f32.gmra.mrb[0].mxu0 %v5228
        %v5587 = vpop.f32.mrb[0].mxu0
        %v5588 = vadd.f32 %v5278, %v5587
        %v5589 = vpop.f32.mrb[0].mxu0
        %5590 = vmatprep.mubr.f32.mxu0 %v5232
        %5591 = vmatmul.mubr.f32.gmra.mrb[0].mxu0 %v5231
        %v5592 = vpop.f32.mrb[0].mxu0
        %v5593 = vadd.f32 %v5278, %v5592
        %v5594 = vpop.f32.mrb[0].mxu0
        %5595 = vmatprep.mubr.f32.mxu0 %v5235
        %5596 = vmatmul.mubr.f32.gmra.mrb[0].mxu0 %v5234
        %v5597 = vpop.f32.mrb[0].mxu0
        %v5598 = vadd.f32 %v5278, %v5597
        %v5599 = vpop.f32.mrb[0].mxu0
        %5600 = vdwg.mxu0
        %5601 = vmatprep.subr.mxu0 0.0
        %5602 = vmatpush1.msra.mxu0 %v5269
        %5603 = vmatprep.subr.mxu0 0.0
        %5604 = vmatpush1.msra.mxu0 %v5270
        %5605 = vmatprep.subr.mxu0 0.0
        %5606 = vmatpush1.msra.mxu0 %v5271
        %5607 = vmatprep.subr.mxu0 0.0
        %5608 = vmatpush1.msra.mxu0 %v5272
        %5609 = vmatprep.subr.mxu0 0.0
        %5610 = vmatpush1.msra.mxu0 0.0
        %5611 = vmatprep.subr.mxu0 0.0
        %5612 = vmatpush1.msra.mxu0 0.0
        %5613 = vmatprep.subr.mxu0 0.0
        %5614 = vmatpush1.msra.mxu0 0.0
        %5615 = vmatprep.subr.mxu0 0.0
        %5616 = vmatpush1.msra.mxu0 0.0
        %5617 = vmatprep.subr.mxu0 0.0
        %5618 = vmatpush1.msra.mxu0 0.0
        %5619 = vmatprep.subr.mxu0 0.0
        %5620 = vmatpush1.msra.mxu0 0.0
        %5621 = vmatprep.subr.mxu0 0.0
        %5622 = vmatpush1.msra.mxu0 0.0
        %5623 = vmatprep.subr.mxu0 0.0
        %5624 = vmatpush1.msra.mxu0 0.0
        %5625 = vmatprep.subr.mxu0 0.0
        %5626 = vmatpush1.msra.mxu0 0.0
        %5627 = vmatprep.subr.mxu0 0.0
        %5628 = vmatpush1.msra.mxu0 0.0
        %5629 = vmatprep.subr.mxu0 0.0
        %5630 = vmatpush1.msra.mxu0 0.0
        %5631 = vmatprep.subr.mxu0 0.0
        %5632 = vmatpush1.msra.mxu0 0.0
        %5633 = vmatprep.subr.mxu0 0.0
        %5634 = vmatpush1.msra.mxu0 0.0
        %5635 = vmatprep.subr.mxu0 0.0
        %5636 = vmatpush1.msra.mxu0 0.0
        %5637 = vmatprep.subr.mxu0 0.0
        %5638 = vmatpush1.msra.mxu0 0.0
        %5639 = vmatprep.subr.mxu0 0.0
        %5640 = vmatpush1.msra.mxu0 0.0
        %5641 = vmatprep.subr.mxu0 0.0
        %5642 = vmatpush1.msra.mxu0 0.0
        %5643 = vmatprep.subr.mxu0 0.0
        %5644 = vmatpush1.msra.mxu0 0.0
        %5645 = vmatprep.subr.mxu0 0.0
        %5646 = vmatpush1.msra.mxu0 0.0
        %5647 = vmatprep.subr.mxu0 0.0
        %5648 = vmatpush1.msra.mxu0 0.0
        %5649 = vmatprep.subr.mxu0 0.0
        %5650 = vmatpush1.msra.mxu0 0.0
        %5651 = vmatprep.subr.mxu0 0.0
        %5652 = vmatpush1.msra.mxu0 0.0
        %5653 = vmatprep.subr.mxu0 0.0
        %5654 = vmatpush1.msra.mxu0 0.0
        %5655 = vmatprep.subr.mxu0 0.0
        %5656 = vmatpush1.msra.mxu0 0.0
        %5657 = vmatprep.subr.mxu0 0.0
        %5658 = vmatpush1.msra.mxu0 0.0
        %5659 = vmatprep.subr.mxu0 0.0
        %5660 = vmatpush1.msra.mxu0 0.0
        %5661 = vmatprep.subr.mxu0 0.0
        %5662 = vmatpush1.msra.mxu0 0.0
        %5663 = vmatprep.subr.mxu0 0.0
        %5664 = vmatpush1.msra.mxu0 0.0
        %5665 = vmatprep.mubr.f32.mxu0 0.0
        %5666 = vmatmul.mubr.f32.gmra.mrb[0].mxu0 %v5281
        %v5667 = vpop.f32.mrb[0].mxu0
        %v5668 = vadd.f32 %v5443, %v5667
        %v5669 = vpop.f32.mrb[0].mxu0
        %5670 = vmatprep.mubr.f32.mxu0 0.0
        %5671 = vmatmul.mubr.f32.gmra.mrb[0].mxu0 %v5284
        %v5672 = vpop.f32.mrb[0].mxu0
        %v5673 = vadd.f32 %v5448, %v5672
        %v5674 = vpop.f32.mrb[0].mxu0
        %5675 = vmatprep.mubr.f32.mxu0 0.0
        %5676 = vmatmul.mubr.f32.gmra.mrb[0].mxu0 %v5287
        %v5677 = vpop.f32.mrb[0].mxu0
        %v5678 = vadd.f32 %v5453, %v5677
        %v5679 = vpop.f32.mrb[0].mxu0
        %5680 = vmatprep.mubr.f32.mxu0 0.0
        %5681 = vmatmul.mubr.f32.gmra.mrb[0].mxu0 %v5290
        %v5682 = vpop.f32.mrb[0].mxu0
        %v5683 = vadd.f32 %v5458, %v5682
        %v5684 = vpop.f32.mrb[0].mxu0
        %5685 = vmatprep.mubr.f32.mxu0 0.0
        %5686 = vmatmul.mubr.f32.gmra.mrb[0].mxu0 %v5293
        %v5687 = vpop.f32.mrb[0].mxu0
        %v5688 = vadd.f32 %v5463, %v5687
        %v5689 = vpop.f32.mrb[0].mxu0
        %5690 = vmatprep.mubr.f32.mxu0 0.0
        %5691 = vmatmul.mubr.f32.gmra.mrb[0].mxu0 %v5296
        %v5692 = vpop.f32.mrb[0].mxu0
        %v5693 = vadd.f32 %v5468, %v5692
        %v5694 = vpop.f32.mrb[0].mxu0
        %5695 = vmatprep.mubr.f32.mxu0 0.0
        %5696 = vmatmul.mubr.f32.gmra.mrb[0].mxu0 %v5299
        %v5697 = vpop.f32.mrb[0].mxu0
        %v5698 = vadd.f32 %v5473, %v5697
        %v5699 = vpop.f32.mrb[0].mxu0
        %5700 = vmatprep.mubr.f32.mxu0 0.0
        %5701 = vmatmul.mubr.f32.gmra.mrb[0].mxu0 %v5302
        %v5702 = vpop.f32.mrb[0].mxu0
        %v5703 = vadd.f32 %v5478, %v5702
        %v5704 = vpop.f32.mrb[0].mxu0
        %5705 = vmatprep.mubr.f32.mxu0 0.0
        %5706 = vmatmul.mubr.f32.gmra.mrb[0].mxu0 %v5305
        %v5707 = vpop.f32.mrb[0].mxu0
        %v5708 = vadd.f32 %v5483, %v5707
        %v5709 = vpop.f32.mrb[0].mxu0
        %5710 = vmatprep.mubr.f32.mxu0 0.0
        %5711 = vmatmul.mubr.f32.gmra.mrb[0].mxu0 %v5308
        %v5712 = vpop.f32.mrb[0].mxu0
        %v5713 = vadd.f32 %v5488, %v5712
        %v5714 = vpop.f32.mrb[0].mxu0
        %5715 = vmatprep.mubr.f32.mxu0 0.0
        %5716 = vmatmul.mubr.f32.gmra.mrb[0].mxu0 %v5311
        %v5717 = vpop.f32.mrb[0].mxu0
        %v5718 = vadd.f32 %v5493, %v5717
        %v5719 = vpop.f32.mrb[0].mxu0
        %5720 = vmatprep.mubr.f32.mxu0 0.0
        %5721 = vmatmul.mubr.f32.gmra.mrb[0].mxu0 %v5314
        %v5722 = vpop.f32.mrb[0].mxu0
        %v5723 = vadd.f32 %v5498, %v5722
        %v5724 = vpop.f32.mrb[0].mxu0
        %5725 = vmatprep.mubr.f32.mxu0 0.0
        %5726 = vmatmul.mubr.f32.gmra.mrb[0].mxu0 %v5317
        %v5727 = vpop.f32.mrb[0].mxu0
        %v5728 = vadd.f32 %v5503, %v5727
        %v5729 = vpop.f32.mrb[0].mxu0
        %5730 = vmatprep.mubr.f32.mxu0 0.0
        %5731 = vmatmul.mubr.f32.gmra.mrb[0].mxu0 %v5320
        %v5732 = vpop.f32.mrb[0].mxu0
        %v5733 = vadd.f32 %v5508, %v5732
        %v5734 = vpop.f32.mrb[0].mxu0
        %5735 = vmatprep.mubr.f32.mxu0 0.0
        %5736 = vmatmul.mubr.f32.gmra.mrb[0].mxu0 %v5323
        %v5737 = vpop.f32.mrb[0].mxu0
        %v5738 = vadd.f32 %v5513, %v5737
        %v5739 = vpop.f32.mrb[0].mxu0
        %5740 = vmatprep.mubr.f32.mxu0 0.0
        %5741 = vmatmul.mubr.f32.gmra.mrb[0].mxu0 %v5326
        %v5742 = vpop.f32.mrb[0].mxu0
        %v5743 = vadd.f32 %v5518, %v5742
        %v5744 = vpop.f32.mrb[0].mxu0
        %5745 = vmatprep.mubr.f32.mxu0 0.0
        %5746 = vmatmul.mubr.f32.gmra.mrb[0].mxu0 %v5329
        %v5747 = vpop.f32.mrb[0].mxu0
        %v5748 = vadd.f32 %v5523, %v5747
        %v5749 = vpop.f32.mrb[0].mxu0
        %5750 = vmatprep.mubr.f32.mxu0 0.0
        %5751 = vmatmul.mubr.f32.gmra.mrb[0].mxu0 %v5332
        %v5752 = vpop.f32.mrb[0].mxu0
        %v5753 = vadd.f32 %v5528, %v5752
        %v5754 = vpop.f32.mrb[0].mxu0
        %5755 = vmatprep.mubr.f32.mxu0 0.0
        %5756 = vmatmul.mubr.f32.gmra.mrb[0].mxu0 %v5335
        %v5757 = vpop.f32.mrb[0].mxu0
        %v5758 = vadd.f32 %v5533, %v5757
        %v5759 = vpop.f32.mrb[0].mxu0
        %5760 = vmatprep.mubr.f32.mxu0 0.0
        %5761 = vmatmul.mubr.f32.gmra.mrb[0].mxu0 %v5338
        %v5762 = vpop.f32.mrb[0].mxu0
        %v5763 = vadd.f32 %v5538, %v5762
        %v5764 = vpop.f32.mrb[0].mxu0
        %5765 = vmatprep.mubr.f32.mxu0 0.0
        %5766 = vmatmul.mubr.f32.gmra.mrb[0].mxu0 %v5341
        %v5767 = vpop.f32.mrb[0].mxu0
        %v5768 = vadd.f32 %v5543, %v5767
        %v5769 = vpop.f32.mrb[0].mxu0
        %5770 = vmatprep.mubr.f32.mxu0 0.0
        %5771 = vmatmul.mubr.f32.gmra.mrb[0].mxu0 %v5344
        %v5772 = vpop.f32.mrb[0].mxu0
        %v5773 = vadd.f32 %v5548, %v5772
        %v5774 = vpop.f32.mrb[0].mxu0
        %5775 = vmatprep.mubr.f32.mxu0 0.0
        %5776 = vmatmul.mubr.f32.gmra.mrb[0].mxu0 %v5347
        %v5777 = vpop.f32.mrb[0].mxu0
        %v5778 = vadd.f32 %v5553, %v5777
        %v5779 = vpop.f32.mrb[0].mxu0
        %5780 = vmatprep.mubr.f32.mxu0 0.0
        %5781 = vmatmul.mubr.f32.gmra.mrb[0].mxu0 %v5350
        %v5782 = vpop.f32.mrb[0].mxu0
        %v5783 = vadd.f32 %v5558, %v5782
        %v5784 = vpop.f32.mrb[0].mxu0
        %5785 = vmatprep.mubr.f32.mxu0 0.0
        %5786 = vmatmul.mubr.f32.gmra.mrb[0].mxu0 %v5353
        %v5787 = vpop.f32.mrb[0].mxu0
        %v5788 = vadd.f32 %v5563, %v5787
        %v5789 = vpop.f32.mrb[0].mxu0
        %5790 = vmatprep.mubr.f32.mxu0 0.0
        %5791 = vmatmul.mubr.f32.gmra.mrb[0].mxu0 %v5356
        %v5792 = vpop.f32.mrb[0].mxu0
        %v5793 = vadd.f32 %v5568, %v5792
        %v5794 = vpop.f32.mrb[0].mxu0
        %5795 = vmatprep.mubr.f32.mxu0 0.0
        %5796 = vmatmul.mubr.f32.gmra.mrb[0].mxu0 %v5359
        %v5797 = vpop.f32.mrb[0].mxu0
        %v5798 = vadd.f32 %v5573, %v5797
        %v5799 = vpop.f32.mrb[0].mxu0
        %5800 = vmatprep.mubr.f32.mxu0 0.0
        %5801 = vmatmul.mubr.f32.gmra.mrb[0].mxu0 %v5362
        %v5802 = vpop.f32.mrb[0].mxu0
        %v5803 = vadd.f32 %v5578, %v5802
        %v5804 = vpop.f32.mrb[0].mxu0
        %5805 = vmatprep.mubr.f32.mxu0 0.0
        %5806 = vmatmul.mubr.f32.gmra.mrb[0].mxu0 %v5365
        %v5807 = vpop.f32.mrb[0].mxu0
        %v5808 = vadd.f32 %v5583, %v5807
        %v5809 = vpop.f32.mrb[0].mxu0
        %5810 = vmatprep.mubr.f32.mxu0 0.0
        %5811 = vmatmul.mubr.f32.gmra.mrb[0].mxu0 %v5368
        %v5812 = vpop.f32.mrb[0].mxu0
        %v5813 = vadd.f32 %v5588, %v5812
        %v5814 = vpop.f32.mrb[0].mxu0
        %5815 = vmatprep.mubr.f32.mxu0 0.0
        %5816 = vmatmul.mubr.f32.gmra.mrb[0].mxu0 %v5371
        %v5817 = vpop.f32.mrb[0].mxu0
        %v5818 = vadd.f32 %v5593, %v5817
        %v5819 = vpop.f32.mrb[0].mxu0
        %5820 = vmatprep.mubr.f32.mxu0 0.0
        %5821 = vmatmul.mubr.f32.gmra.mrb[0].mxu0 %v5374
        %v5822 = vpop.f32.mrb[0].mxu0
        %v5823 = vadd.f32 %v5598, %v5822
        %v5824 = vpop.f32.mrb[0].mxu0
        %5825 = vdwg.mxu0
        %5826 = vxpose.xlu0.b32.start [1/16] %v5668, 128
        %5827 = vxpose.xlu0.b32.cont [2/16] %v5673, 128
        %5828 = vxpose.xlu0.b32.cont [3/16] %v5678, 128
        %5829 = vxpose.xlu0.b32.cont [4/16] %v5683, 128
        %5830 = vxpose.xlu0.b32.cont [5/16] %v5688, 128
        %5831 = vxpose.xlu0.b32.cont [6/16] %v5693, 128
        %5832 = vxpose.xlu0.b32.cont [7/16] %v5698, 128
        %5833 = vxpose.xlu0.b32.cont [8/16] %v5703, 128
        %5834 = vxpose.xlu0.b32.cont [9/16] %v5708, 128
        %5835 = vxpose.xlu0.b32.cont [10/16] %v5713, 128
        %5836 = vxpose.xlu0.b32.cont [11/16] %v5718, 128
        %5837 = vxpose.xlu0.b32.cont [12/16] %v5723, 128
        %5838 = vxpose.xlu0.b32.cont [13/16] %v5728, 128
        %5839 = vxpose.xlu0.b32.cont [14/16] %v5733, 128
        %5840 = vxpose.xlu0.b32.cont [15/16] %v5738, 128
        %5841 = vxpose.xlu0.b32.end [16/16] %v5743, 128
        %v5842 = vpop.trf.xlu0
        %v5843 = vpop.trf.xlu0
        %v5844 = vpop.trf.xlu0
        %v5845 = vpop.trf.xlu0
        %v5846 = vpop.trf.xlu0
        %v5847 = vpop.trf.xlu0
        %v5848 = vpop.trf.xlu0
        %v5849 = vpop.trf.xlu0
        %v5850 = vpop.trf.xlu0
        %v5851 = vpop.trf.xlu0
        %v5852 = vpop.trf.xlu0
        %v5853 = vpop.trf.xlu0
        %v5854 = vpop.trf.xlu0
        %v5855 = vpop.trf.xlu0
        %v5856 = vpop.trf.xlu0
        %v5857 = vpop.trf.xlu0
        %5858 = vxpose.xlu0.b32.start [1/16] %v5748, 128
        %5859 = vxpose.xlu0.b32.cont [2/16] %v5753, 128
        %5860 = vxpose.xlu0.b32.cont [3/16] %v5758, 128
        %5861 = vxpose.xlu0.b32.cont [4/16] %v5763, 128
        %5862 = vxpose.xlu0.b32.cont [5/16] %v5768, 128
        %5863 = vxpose.xlu0.b32.cont [6/16] %v5773, 128
        %5864 = vxpose.xlu0.b32.cont [7/16] %v5778, 128
        %5865 = vxpose.xlu0.b32.cont [8/16] %v5783, 128
        %5866 = vxpose.xlu0.b32.cont [9/16] %v5788, 128
        %5867 = vxpose.xlu0.b32.cont [10/16] %v5793, 128
        %5868 = vxpose.xlu0.b32.cont [11/16] %v5798, 128
        %5869 = vxpose.xlu0.b32.cont [12/16] %v5803, 128
        %5870 = vxpose.xlu0.b32.cont [13/16] %v5808, 128
        %5871 = vxpose.xlu0.b32.cont [14/16] %v5813, 128
        %5872 = vxpose.xlu0.b32.cont [15/16] %v5818, 128
        %5873 = vxpose.xlu0.b32.end [16/16] %v5823, 128
        %v5874 = vpop.trf.xlu0
        %v5875 = vpop.trf.xlu0
        %v5876 = vpop.trf.xlu0
        %v5877 = vpop.trf.xlu0
        %v5878 = vpop.trf.xlu0
        %v5879 = vpop.trf.xlu0
        %v5880 = vpop.trf.xlu0
        %v5881 = vpop.trf.xlu0
        %v5882 = vpop.trf.xlu0
        %v5883 = vpop.trf.xlu0
        %v5884 = vpop.trf.xlu0
        %v5885 = vpop.trf.xlu0
        %v5886 = vpop.trf.xlu0
        %v5887 = vpop.trf.xlu0
        %v5888 = vpop.trf.xlu0
        %v5889 = vpop.trf.xlu0
        %5890 = vst [vmem:[%s423] sm:$0xff] %v5842
        %5891 = vst [vmem:[%s423 + $0x8] sm:$0xff] %v5874
        %5892 = vst [vmem:[%s423 + $0x10] sm:$0xf] %v5843
        %5893 = vst [vmem:[%s423 + $0x18] sm:$0xf] %v5875
        %s5894 = sand.u32 %s210, 1
        %s5895 = scalar_lea.sflag [#allocation6], %s5894
        %s5896 = sand.u32 %s210, 1
        %s5897 = smul.addr %s5896, 32
        %s5898 = scalar_lea.vmem [#allocation18], %s5897
        // Predicated region
        $region92: #{lite_srnet_forward.1} parent=51 // pred_check
          %p5899 = pneg %p220
        $region93: #{lite_srnet_forward.1} parent=51 // pred_check_branch
          %5901 = sbr.rel (%p5899) target = $region95
        $region94: #{lite_srnet_forward.1} parent=51 // pred_region
          %s5903 = ssub.s32 512, 512
          %5904 = vsyncadd %s5895, %s5903
          %s5905 = smul.addr %s29, 4
          %s5906 = smul.addr %s5905, 128
          %s5907 = scalar_lea.hbm %s8, %s5906
          %s5908 = sshll.u32 %s5898, 4
          %s5909 = int_to_ptr.vmem [resolvable:$true] %s5908
          %5914 = dma.vmem_to_hbm [thread:$0]  %s5909, 512, %s5907, %s5895, 256, 256, 16
        $region95: #{lite_srnet_forward.1} parent=51 // pred_fallthru
          _
      $region52: #{lite_srnet_forward.1} parent=5 // pred_fallthru
        _
      %p5915 = scmp.le.s32.totalorder 2, %s24
      // Predicated region
      $region96: #{lite_srnet_forward.1} parent=5 // pred_check
        %p5916 = pneg %p5915
      $region97: #{lite_srnet_forward.1} parent=5 // pred_check_branch
        %5918 = sbr.rel (%p5916) target = $region99
      $region98: #{lite_srnet_forward.1} parent=5 // pred_region
        %s5919 = ssub.s32 %s24, 2
        // Predicated region
        $region100: #{lite_srnet_forward.1} parent=98 // pred_check
          %p5920 = pneg %p226
        $region101: #{lite_srnet_forward.1} parent=98 // pred_check_branch
          %5922 = sbr.rel (%p5920) target = $region103
        $region102: #{lite_srnet_forward.1} parent=98 // pred_region
          %s5923 = sand.u32 %s211, 1
          %s5924 = scalar_lea.sflag [#allocation6], %s5923
          %s5925 = sand.u32 %s211, 1
          %s5926 = smul.addr %s5925, 32
          %s5927 = scalar_lea.vmem [#allocation18], %s5926
          %5928 = dma.done %s5924, 512
        $region103: #{lite_srnet_forward.1} parent=98 // pred_fallthru
          _
      $region99: #{lite_srnet_forward.1} parent=5 // pred_fallthru
        _
    $region6: #{lite_srnet_forward.1} parent=1 // loop_footer
      %s28 = sadd.s32 1, %s24
    $region7: #{lite_srnet_forward.1} parent=1 // loop_footer_branch
      %23 = sbr.rel target = $region3
    $region8: #{lite_srnet_forward.1} parent=1 // loop_exit
      _
    %5929 = vsyncpa [#allocation5], 1
    %s5930 = scalar_lea.sflag [#allocation5], 1
    %5931 = vsyncpa %s5930, 1
    %5932 = vsyncpa [#allocation8], 1
    %5933 = vsyncpa [#allocation11], 1
    %5934 = vsyncpa [#allocation14], 1
    %5935 = vsyncpa [#allocation17], 1
    %5936 = vsyncpa [#allocation6], 1
    %s5937 = scalar_lea.sflag [#allocation6], 1
    %5938 = vsyncpa %s5937, 1

</llo_original>
